<compile_context>
chip_gen: v6e
topology: v6e:2x2x1
jax: 0.10.0
libtpu: 0.0.40
codegen_flags: <defaults>
</compile_context>

<pallas_src>
import jax
import jax.numpy as jnp
from jax import lax
from jax.experimental import pallas as pl
from jax.experimental.pallas import tpu as pltpu

# ----------------------------- model dims (small, synthetic) -----------------
C = 3            # image channels
IMG = 32         # image spatial size (TODO(synk): bicubic Resize(224) of
                 # tensor_preprocess has no clean Pallas equivalent; kept at 32)
PATCH = 16       # patch size -> 2x2 = 4 patches
GRID = IMG // PATCH
NPATCH = GRID * GRID
S = NPATCH + 1   # valid tokens incl. CLS = 5
S_PAD = 8        # tokens padded to a sublane multiple
D = 64           # transformer width ("embedding_dim")
NH = 4           # attention heads
DH = D // NH     # head dim
NL = 2           # transformer layers
MLP = 4 * D      # MLP hidden
P = 48           # style projection dim (backbone.proj output dim)
OUT_LANES = 128  # lane-dense padded style output width
PATCH_DIM = C * PATCH * PATCH


# ----------------------------- in-kernel helpers ------------------------------
def _bf16(x):
    return x.astype(jnp.bfloat16)


def _mm(a, b):
    """[M,K] @ [K,N] with bf16 MXU operands and f32 accumulation."""
    return lax.dot_general(_bf16(a), _bf16(b), (((1,), (0,)), ((), ())),
                           preferred_element_type=jnp.float32)


def _ln(x, g, b):
    """LayerNorm over the last dim, f32 math, eps=1e-5 (matches nn.LayerNorm)."""
    mu = jnp.mean(x, axis=-1, keepdims=True)
    xc = x - mu
    var = jnp.mean(xc * xc, axis=-1, keepdims=True)
    return xc * lax.rsqrt(var + 1e-5) * g + b


# ----------------------------- fused backbone + style kernel ------------------
def _csd_kernel(patches_ref, tmpl_ref, w_patch_ref,
                ln_pre_g_ref, ln_pre_b_ref,
                ln1_g_ref, ln1_b_ref, w_in_ref, b_in_ref,
                w_out_ref, b_out_ref,
                ln2_g_ref, ln2_b_ref, w_fc_ref, b_fc_ref,
                w_proj_ref, b_proj_ref,
                ln_post_g_ref, ln_post_b_ref, style_w_ref,
                style_ref):
    scale = 1.0 / float(DH) ** 0.5

    # Additive key mask: padded key positions (>= S) are never attended to.
    key_pos = lax.broadcasted_iota(jnp.int32, (1, S_PAD), 1)
    key_mask = jnp.where(key_pos < S, 0.0, -1e9).astype(jnp.float32)   # [1,S_PAD]

    # --- patch embed (conv1 as matmul) + CLS/positional template, ln_pre -----
    tok = _mm(patches_ref[0], w_patch_ref[...]) + tmpl_ref[...]    # [S_PAD, D] f32
    x = _ln(tok, ln_pre_g_ref[...], ln_pre_b_ref[...])

    # --- transformer layers (activations stay as values / in vregs) ----------
    for l in range(NL):
        # x = x + W_out( MHA( LN1(x) ) )
        h = _ln(x, ln1_g_ref[l], ln1_b_ref[l])
        qkv = _bf16(_mm(h, w_in_ref[l]) + b_in_ref[l])             # [S_PAD, 3D] bf16
        heads = []
        for hd in range(NH):                                       # NH=4, static
            c = hd * DH
            q = qkv[:, c:c + DH]                                   # [S_PAD, DH]
            k = qkv[:, D + c:D + c + DH]
            v = qkv[:, 2 * D + c:2 * D + c + DH]
            # q @ k^T without materialized transpose (bf16 MXU, f32 acc)
            s = lax.dot_general(q, k, (((1,), (1,)), ((), ())),
                                preferred_element_type=jnp.float32) * scale
            s = s + key_mask                                       # mask pad keys
            s = s - jnp.max(s, axis=-1, keepdims=True)             # f32 softmax
            p = jnp.exp(s)
            p = p * pl.reciprocal(jnp.sum(p, axis=-1, keepdims=True), approx=True)
            heads.append(lax.dot_general(_bf16(p), v, (((1,), (0,)), ((), ())),
                                         preferred_element_type=jnp.float32))
        attn = jnp.concatenate(heads, axis=-1)                     # [S_PAD, D] f32
        x = x + _mm(attn, w_out_ref[l]) + b_out_ref[l]             # fused residual

        # x = x + MLP( LN2(x) ), QuickGELU in f32
        h2 = _ln(x, ln2_g_ref[l], ln2_b_ref[l])
        m = _mm(h2, w_fc_ref[l]) + b_fc_ref[l]
        m = m * jax.nn.sigmoid(1.702 * m)
        x = x + _mm(m, w_proj_ref[l]) + b_proj_ref[l]

    # --- CLS token -> ln_post -> style projection -> L2 normalize ------------
    feat = _ln(x[0:1, :], ln_post_g_ref[...], ln_post_b_ref[...])  # [1, D]
    sty = _mm(feat, style_w_ref[...])                              # [1, 128] (zero-padded)
    nrm = jnp.sqrt(jnp.sum(sty * sty, axis=-1, keepdims=True))
    sty_n = sty / jnp.maximum(nrm, 1e-12)                          # F.normalize(p=2)
    # lane-dense full-tile store; wrapper reads row 0, first P lanes
    style_ref[0] = jnp.broadcast_to(sty_n, (S_PAD, OUT_LANES))


def _const_spec(shape):
    zeros = (0,) * len(shape)
    return pl.BlockSpec(shape, lambda b, _z=zeros: _z)


def _backbone_style(params, images):
    """images: preprocessed [B, C, IMG, IMG] -> L2-normalized style [B, P]."""
    B = images.shape[0]
    f32, bf16 = jnp.float32, jnp.bfloat16

    # patch extraction, padded to S_PAD token rows (row 0 = CLS slot, 5..7 pad)
    p = images.reshape(B, C, GRID, PATCH, GRID, PATCH)
    p = p.transpose(0, 2, 4, 1, 3, 5).reshape(B, NPATCH, PATCH_DIM)
    patches_pad = jnp.zeros((B, S_PAD, PATCH_DIM), bf16)
    patches_pad = patches_pad.at[:, 1:S, :].set(p.astype(bf16))

    # additive token template: CLS embedding + positional embedding
    tmpl = jnp.zeros((S_PAD, D), f32)
    tmpl = tmpl.at[0, :].set(params["class_emb"] + params["pos_emb"][0])
    tmpl = tmpl.at[1:S, :].set(params["pos_emb"][1:S])

    # style projection zero-padded to 128 lanes (padding does not affect the
    # L2 norm, trimmed in the wrapper)
    style_w = jnp.zeros((D, OUT_LANES), bf16)
    style_w = style_w.at[:, :P].set(params["style_proj"].astype(bf16))

    inputs = [
        patches_pad,
        tmpl,
        params["conv1_w"].reshape(D, PATCH_DIM).T.astype(bf16),
        params["ln_pre_g"].reshape(1, D).astype(f32),
        params["ln_pre_b"].reshape(1, D).astype(f32),
        params["ln1_g"].astype(f32), params["ln1_b"].astype(f32),
        params["w_in"].astype(bf16), params["b_in"].astype(f32),
        params["w_out"].astype(bf16), params["b_out"].astype(f32),
        params["ln2_g"].astype(f32), params["ln2_b"].astype(f32),
        params["w_fc"].astype(bf16), params["b_fc"].astype(f32),
        params["w_proj"].astype(bf16), params["b_proj"].astype(f32),
        params["ln_post_g"].reshape(1, D).astype(f32),
        params["ln_post_b"].reshape(1, D).astype(f32),
        style_w,
    ]
    in_specs = [pl.BlockSpec((1, S_PAD, PATCH_DIM), lambda b: (b, 0, 0))]
    in_specs += [_const_spec(tuple(a.shape)) for a in inputs[1:]]

    out = pl.pallas_call(
        _csd_kernel,
        out_shape=jax.ShapeDtypeStruct((B, S_PAD, OUT_LANES), f32),
        grid=(B,),
        in_specs=in_specs,
        out_specs=pl.BlockSpec((1, S_PAD, OUT_LANES), lambda b: (b, 0, 0)),
        compiler_params=pltpu.CompilerParams(
            dimension_semantics=("parallel",)),   # 2x on v7x (2 TensorCores)
    )(*inputs)
    return out[:, 0, :P]


# ----------------------------- parameters (deterministic) --------------------
def make_params(key):
    def nxt():
        nonlocal key
        key, sub = jax.random.split(key)
        return sub

    f32 = jnp.float32
    return {
        "conv1_w": jax.random.normal(nxt(), (D, C, PATCH, PATCH), f32) * 0.02,
        "class_emb": jax.random.normal(nxt(), (D,), f32) * 0.02,
        "pos_emb": jax.random.normal(nxt(), (S, D), f32) * 0.02,
        "ln_pre_g": jnp.ones((D,), f32), "ln_pre_b": jnp.zeros((D,), f32),
        "ln_post_g": jnp.ones((D,), f32), "ln_post_b": jnp.zeros((D,), f32),
        # last_layer_style = deepcopy(backbone.proj): [D, P]
        "style_proj": jax.random.normal(nxt(), (D, P), f32) * 0.02,
        # stacked per-layer weights (leading axis = layer)
        "ln1_g": jnp.ones((NL, 1, D), f32), "ln1_b": jnp.zeros((NL, 1, D), f32),
        "w_in": jax.random.normal(nxt(), (NL, D, 3 * D), f32) * 0.02,
        "b_in": jnp.zeros((NL, 1, 3 * D), f32),
        "w_out": jax.random.normal(nxt(), (NL, D, D), f32) * 0.02,
        "b_out": jnp.zeros((NL, 1, D), f32),
        "ln2_g": jnp.ones((NL, 1, D), f32), "ln2_b": jnp.zeros((NL, 1, D), f32),
        "w_fc": jax.random.normal(nxt(), (NL, D, MLP), f32) * 0.02,
        "b_fc": jnp.zeros((NL, 1, MLP), f32),
        "w_proj": jax.random.normal(nxt(), (NL, MLP, D), f32) * 0.02,
        "b_proj": jnp.zeros((NL, 1, D), f32),
    }


# ----------------------------- forward glue -----------------------------------
def tensor_preprocess(x):
    """transforms.Compose([Resize(224,bicubic), Normalize(-1,2), Normalize(CLIP)])."""
    # TODO(synk): bicubic Resize(224) has no clean Pallas equivalent; spatial
    # size is kept as-is for this synthetic backbone.
    x = (x + 1.0) / 2.0                                   # Normalize(mean=-1, std=2)
    mean = jnp.array([0.48145466, 0.4578275, 0.40821073],
                     jnp.float32).reshape(1, C, 1, 1)
    std = jnp.array([0.26862954, 0.26130258, 0.27577711],
                    jnp.float32).reshape(1, C, 1, 1)
    return (x - mean) / std


@jax.jit
def define_ref_image_style_prototype(params, ref_images):
    return _backbone_style(params, tensor_preprocess(ref_images))   # [R, P]


@jax.jit
def csd_clip_forward(params, ref_style_feature, styled_data):
    style = _backbone_style(params, tensor_preprocess(styled_data))  # [B, P]
    # tiny matmul + reductions done in the wrapper (style already lives in HBM)
    sims = style @ ref_style_feature.T                               # [B, R]
    mean_details = jnp.mean(sims, axis=-1)
    max_v = jnp.max(sims, axis=-1)
    max_id = jnp.argmax(sims, axis=-1).astype(jnp.int32)             # first max, as torch
    return {
        "CSD_similarity_mean": jnp.mean(mean_details),
        "CSD_similarity_max": jnp.mean(max_v),
        "CSD_similarity_mean_details": mean_details,
        "CSD_similarity_max_v_details": max_v,
        "CSD_similarity_max_id_details": max_id,
    }


# ----------------------------- main -------------------------------------------
if __name__ == "__main__":
    key = jax.random.PRNGKey(0)
    kp, kref, kdata = jax.random.split(key, 3)

    params = make_params(kp)
    ref_images = jax.random.uniform(kref, (3, C, IMG, IMG), jnp.float32,
                                    minval=-1.0, maxval=1.0)
    styled_data = jax.random.uniform(kdata, (2, C, IMG, IMG), jnp.float32,
                                     minval=-1.0, maxval=1.0)

    ref_style_feature = define_ref_image_style_prototype(params, ref_images)
    ref_style_feature = jax.block_until_ready(ref_style_feature)
    out = csd_clip_forward(params, ref_style_feature, styled_data)
    out = jax.tree_util.tree_map(jax.block_until_ready, out)

    assert ref_style_feature.shape == (3, P)
    assert out["CSD_similarity_mean_details"].shape == (2,)
    assert out["CSD_similarity_max_v_details"].shape == (2,)
    assert out["CSD_similarity_max_id_details"].dtype == jnp.int32
    assert bool(jnp.isfinite(out["CSD_similarity_mean"]))
    print("KERNEL_OK")
</pallas_src>

<mosaic_0001>
module attributes {stable_mosaic.version = 11 : i64} {
  func.func @_csd_kernel(%arg0: i32, %arg1: memref<1x8x768xbf16, #tpu.memory_space<vmem>>, %arg2: memref<8x64xf32, #tpu.memory_space<vmem>>, %arg3: memref<768x64xbf16, #tpu.memory_space<vmem>>, %arg4: memref<1x64xf32, #tpu.memory_space<vmem>>, %arg5: memref<1x64xf32, #tpu.memory_space<vmem>>, %arg6: memref<2x1x64xf32, #tpu.memory_space<vmem>>, %arg7: memref<2x1x64xf32, #tpu.memory_space<vmem>>, %arg8: memref<2x64x192xbf16, #tpu.memory_space<vmem>>, %arg9: memref<2x1x192xf32, #tpu.memory_space<vmem>>, %arg10: memref<2x64x64xbf16, #tpu.memory_space<vmem>>, %arg11: memref<2x1x64xf32, #tpu.memory_space<vmem>>, %arg12: memref<2x1x64xf32, #tpu.memory_space<vmem>>, %arg13: memref<2x1x64xf32, #tpu.memory_space<vmem>>, %arg14: memref<2x64x256xbf16, #tpu.memory_space<vmem>>, %arg15: memref<2x1x256xf32, #tpu.memory_space<vmem>>, %arg16: memref<2x256x64xbf16, #tpu.memory_space<vmem>>, %arg17: memref<2x1x64xf32, #tpu.memory_space<vmem>>, %arg18: memref<1x64xf32, #tpu.memory_space<vmem>>, %arg19: memref<1x64xf32, #tpu.memory_space<vmem>>, %arg20: memref<64x128xbf16, #tpu.memory_space<vmem>>, %arg21: memref<1x8x128xf32, #tpu.memory_space<vmem>>) attributes {dimension_semantics = [#tpu.dimension_semantics<parallel>], iteration_bounds = array<i64: 3>, scalar_prefetch = 0 : i64, scratch_operands = 0 : i64, tpu.core_type = #tpu.core_type<tc>, window_params = [{transform_indices = @transform_0, window_bounds = array<i64: 1, 8, 768>}, {pipeline_mode = #tpu.pipeline_mode<synchronous>, transform_indices = @transform_1, window_bounds = array<i64: 8, 64>}, {pipeline_mode = #tpu.pipeline_mode<synchronous>, transform_indices = @transform_2, window_bounds = array<i64: 768, 64>}, {pipeline_mode = #tpu.pipeline_mode<synchronous>, transform_indices = @transform_3, window_bounds = array<i64: 1, 64>}, {pipeline_mode = #tpu.pipeline_mode<synchronous>, transform_indices = @transform_4, window_bounds = array<i64: 1, 64>}, {pipeline_mode = #tpu.pipeline_mode<synchronous>, transform_indices = @transform_5, window_bounds = array<i64: 2, 1, 64>}, {pipeline_mode = #tpu.pipeline_mode<synchronous>, transform_indices = @transform_6, window_bounds = array<i64: 2, 1, 64>}, {pipeline_mode = #tpu.pipeline_mode<synchronous>, transform_indices = @transform_7, window_bounds = array<i64: 2, 64, 192>}, {pipeline_mode = #tpu.pipeline_mode<synchronous>, transform_indices = @transform_8, window_bounds = array<i64: 2, 1, 192>}, {pipeline_mode = #tpu.pipeline_mode<synchronous>, transform_indices = @transform_9, window_bounds = array<i64: 2, 64, 64>}, {pipeline_mode = #tpu.pipeline_mode<synchronous>, transform_indices = @transform_10, window_bounds = array<i64: 2, 1, 64>}, {pipeline_mode = #tpu.pipeline_mode<synchronous>, transform_indices = @transform_11, window_bounds = array<i64: 2, 1, 64>}, {pipeline_mode = #tpu.pipeline_mode<synchronous>, transform_indices = @transform_12, window_bounds = array<i64: 2, 1, 64>}, {pipeline_mode = #tpu.pipeline_mode<synchronous>, transform_indices = @transform_13, window_bounds = array<i64: 2, 64, 256>}, {pipeline_mode = #tpu.pipeline_mode<synchronous>, transform_indices = @transform_14, window_bounds = array<i64: 2, 1, 256>}, {pipeline_mode = #tpu.pipeline_mode<synchronous>, transform_indices = @transform_15, window_bounds = array<i64: 2, 256, 64>}, {pipeline_mode = #tpu.pipeline_mode<synchronous>, transform_indices = @transform_16, window_bounds = array<i64: 2, 1, 64>}, {pipeline_mode = #tpu.pipeline_mode<synchronous>, transform_indices = @transform_17, window_bounds = array<i64: 1, 64>}, {pipeline_mode = #tpu.pipeline_mode<synchronous>, transform_indices = @transform_18, window_bounds = array<i64: 1, 64>}, {pipeline_mode = #tpu.pipeline_mode<synchronous>, transform_indices = @transform_19, window_bounds = array<i64: 64, 128>}, {transform_indices = @transform_20, window_bounds = array<i64: 1, 8, 128>}]} {
    %0 = tpu.iota {dimensions = array<i32: 1>} : vector<1x8xi32>
    %c5_i32 = arith.constant 5 : i32
    %1 = vector.broadcast %c5_i32 : i32 to vector<1x8xi32>
    %2 = arith.cmpi slt, %0, %1 : vector<1x8xi32>
    %cst = arith.constant 0.000000e+00 : f32
    %cst_0 = arith.constant -1.000000e+09 : f32
    %3 = vector.broadcast %cst : f32 to vector<1x8xf32>
    %4 = vector.broadcast %cst_0 : f32 to vector<1x8xf32>
    %5 = arith.select %2, %3, %4 : vector<1x8xi1>, vector<1x8xf32>
    %c0 = arith.constant 0 : index
    %c0_1 = arith.constant 0 : index
    %c0_2 = arith.constant 0 : index
    %6 = vector.load %arg1[%c0, %c0_1, %c0_2] : memref<1x8x768xbf16, #tpu.memory_space<vmem>>, vector<1x8x768xbf16>
    %7 = vector.shape_cast %6 : vector<1x8x768xbf16> to vector<8x768xbf16>
    %c0_3 = arith.constant 0 : index
    %c0_4 = arith.constant 0 : index
    %8 = vector.load %arg3[%c0_3, %c0_4] : memref<768x64xbf16, #tpu.memory_space<vmem>>, vector<768x64xbf16>
    %cst_5 = arith.constant dense<0.000000e+00> : vector<8x64xf32>
    %9 = tpu.matmul %7, %8, %cst_5 {dimension_numbers = #tpu.dot_dimension_numbers<[1], [0], [0], [1], [0, 0, 1, 1], [], []>} : vector<8x768xbf16>, vector<768x64xbf16>, vector<8x64xf32> -> vector<8x64xf32>
    %c0_6 = arith.constant 0 : index
    %c0_7 = arith.constant 0 : index
    %10 = vector.load %arg2[%c0_6, %c0_7] : memref<8x64xf32, #tpu.memory_space<vmem>>, vector<8x64xf32>
    %11 = arith.addf %9, %10 : vector<8x64xf32>
    %c0_8 = arith.constant 0 : index
    %c0_9 = arith.constant 0 : index
    %12 = vector.load %arg4[%c0_8, %c0_9] : memref<1x64xf32, #tpu.memory_space<vmem>>, vector<1x64xf32>
    %c0_10 = arith.constant 0 : index
    %c0_11 = arith.constant 0 : index
    %13 = vector.load %arg5[%c0_10, %c0_11] : memref<1x64xf32, #tpu.memory_space<vmem>>, vector<1x64xf32>
    %cst_12 = arith.constant dense<0.000000e+00> : vector<8xf32>
    %14 = vector.multi_reduction <add>, %11, %cst_12 [1] : vector<8x64xf32> to vector<8xf32>
    %15 = vector.shape_cast %14 : vector<8xf32> to vector<8x1xf32>
    %cst_13 = arith.constant 6.400000e+01 : f32
    %16 = vector.broadcast %cst_13 : f32 to vector<8x1xf32>
    %17 = arith.divf %15, %16 : vector<8x1xf32>
    %18 = vector.broadcast %17 : vector<8x1xf32> to vector<8x64xf32>
    %19 = arith.subf %11, %18 : vector<8x64xf32>
    %20 = arith.mulf %19, %19 : vector<8x64xf32>
    %cst_14 = arith.constant dense<0.000000e+00> : vector<8xf32>
    %21 = vector.multi_reduction <add>, %20, %cst_14 [1] : vector<8x64xf32> to vector<8xf32>
    %22 = vector.shape_cast %21 : vector<8xf32> to vector<8x1xf32>
    %cst_15 = arith.constant 6.400000e+01 : f32
    %23 = vector.broadcast %cst_15 : f32 to vector<8x1xf32>
    %24 = arith.divf %22, %23 : vector<8x1xf32>
    %cst_16 = arith.constant 9.99999974E-6 : f32
    %25 = vector.broadcast %cst_16 : f32 to vector<8x1xf32>
    %26 = arith.addf %24, %25 : vector<8x1xf32>
    %27 = math.rsqrt %26 : vector<8x1xf32>
    %28 = vector.broadcast %27 : vector<8x1xf32> to vector<8x64xf32>
    %29 = arith.mulf %19, %28 : vector<8x64xf32>
    %30 = vector.broadcast %12 : vector<1x64xf32> to vector<8x64xf32>
    %31 = arith.mulf %29, %30 : vector<8x64xf32>
    %32 = vector.broadcast %13 : vector<1x64xf32> to vector<8x64xf32>
    %33 = arith.addf %31, %32 : vector<8x64xf32>
    %c0_17 = arith.constant 0 : index
    %c0_18 = arith.constant 0 : index
    %c0_19 = arith.constant 0 : index
    %34 = vector.load %arg6[%c0_17, %c0_18, %c0_19] : memref<2x1x64xf32, #tpu.memory_space<vmem>>, vector<1x1x64xf32>
    %35 = vector.shape_cast %34 : vector<1x1x64xf32> to vector<1x64xf32>
    %c0_20 = arith.constant 0 : index
    %c0_21 = arith.constant 0 : index
    %c0_22 = arith.constant 0 : index
    %36 = vector.load %arg7[%c0_20, %c0_21, %c0_22] : memref<2x1x64xf32, #tpu.memory_space<vmem>>, vector<1x1x64xf32>
    %37 = vector.shape_cast %36 : vector<1x1x64xf32> to vector<1x64xf32>
    %cst_23 = arith.constant dense<0.000000e+00> : vector<8xf32>
    %38 = vector.multi_reduction <add>, %33, %cst_23 [1] : vector<8x64xf32> to vector<8xf32>
    %39 = vector.shape_cast %38 : vector<8xf32> to vector<8x1xf32>
    %cst_24 = arith.constant 6.400000e+01 : f32
    %40 = vector.broadcast %cst_24 : f32 to vector<8x1xf32>
    %41 = arith.divf %39, %40 : vector<8x1xf32>
    %42 = vector.broadcast %41 : vector<8x1xf32> to vector<8x64xf32>
    %43 = arith.subf %33, %42 : vector<8x64xf32>
    %44 = arith.mulf %43, %43 : vector<8x64xf32>
    %cst_25 = arith.constant dense<0.000000e+00> : vector<8xf32>
    %45 = vector.multi_reduction <add>, %44, %cst_25 [1] : vector<8x64xf32> to vector<8xf32>
    %46 = vector.shape_cast %45 : vector<8xf32> to vector<8x1xf32>
    %cst_26 = arith.constant 6.400000e+01 : f32
    %47 = vector.broadcast %cst_26 : f32 to vector<8x1xf32>
    %48 = arith.divf %46, %47 : vector<8x1xf32>
    %cst_27 = arith.constant 9.99999974E-6 : f32
    %49 = vector.broadcast %cst_27 : f32 to vector<8x1xf32>
    %50 = arith.addf %48, %49 : vector<8x1xf32>
    %51 = math.rsqrt %50 : vector<8x1xf32>
    %52 = vector.broadcast %51 : vector<8x1xf32> to vector<8x64xf32>
    %53 = arith.mulf %43, %52 : vector<8x64xf32>
    %54 = vector.broadcast %35 : vector<1x64xf32> to vector<8x64xf32>
    %55 = arith.mulf %53, %54 : vector<8x64xf32>
    %56 = vector.broadcast %37 : vector<1x64xf32> to vector<8x64xf32>
    %57 = arith.addf %55, %56 : vector<8x64xf32>
    %c0_28 = arith.constant 0 : index
    %c0_29 = arith.constant 0 : index
    %c0_30 = arith.constant 0 : index
    %58 = vector.load %arg8[%c0_28, %c0_29, %c0_30] : memref<2x64x192xbf16, #tpu.memory_space<vmem>>, vector<1x64x192xbf16>
    %59 = vector.shape_cast %58 : vector<1x64x192xbf16> to vector<64x192xbf16>
    %60 = arith.truncf %57 : vector<8x64xf32> to vector<8x64xbf16>
    %cst_31 = arith.constant dense<0.000000e+00> : vector<8x192xf32>
    %61 = tpu.matmul %60, %59, %cst_31 {dimension_numbers = #tpu.dot_dimension_numbers<[1], [0], [0], [1], [0, 0, 1, 1], [], []>} : vector<8x64xbf16>, vector<64x192xbf16>, vector<8x192xf32> -> vector<8x192xf32>
    %c0_32 = arith.constant 0 : index
    %c0_33 = arith.constant 0 : index
    %c0_34 = arith.constant 0 : index
    %62 = vector.load %arg9[%c0_32, %c0_33, %c0_34] : memref<2x1x192xf32, #tpu.memory_space<vmem>>, vector<1x1x192xf32>
    %63 = vector.shape_cast %62 : vector<1x1x192xf32> to vector<1x192xf32>
    %64 = vector.broadcast %63 : vector<1x192xf32> to vector<8x192xf32>
    %65 = arith.addf %61, %64 : vector<8x192xf32>
    %66 = arith.truncf %65 : vector<8x192xf32> to vector<8x192xbf16>
    %67 = vector.extract_strided_slice %66 {offsets = [0, 0], sizes = [8, 16], strides = [1, 1]} : vector<8x192xbf16> to vector<8x16xbf16>
    %68 = vector.extract_strided_slice %66 {offsets = [0, 64], sizes = [8, 16], strides = [1, 1]} : vector<8x192xbf16> to vector<8x16xbf16>
    %69 = vector.extract_strided_slice %66 {offsets = [0, 128], sizes = [8, 16], strides = [1, 1]} : vector<8x192xbf16> to vector<8x16xbf16>
    %cst_35 = arith.constant dense<0.000000e+00> : vector<8x8xf32>
    %70 = tpu.matmul %67, %68, %cst_35 {dimension_numbers = #tpu.dot_dimension_numbers<[1], [1], [0], [0], [0, 0, 1, 0], [], []>} : vector<8x16xbf16>, vector<8x16xbf16>, vector<8x8xf32> -> vector<8x8xf32>
    %cst_36 = arith.constant 2.500000e-01 : f32
    %71 = vector.broadcast %cst_36 : f32 to vector<8x8xf32>
    %72 = arith.mulf %70, %71 : vector<8x8xf32>
    %73 = vector.broadcast %5 : vector<1x8xf32> to vector<8x8xf32>
    %74 = arith.addf %72, %73 : vector<8x8xf32>
    %cst_37 = arith.constant dense<0xFF800000> : vector<8xf32>
    %75 = vector.multi_reduction <maximumf>, %74, %cst_37 [1] : vector<8x8xf32> to vector<8xf32>
    %76 = vector.shape_cast %75 : vector<8xf32> to vector<8x1xf32>
    %77 = vector.broadcast %76 : vector<8x1xf32> to vector<8x8xf32>
    %78 = arith.subf %74, %77 : vector<8x8xf32>
    %79 = math.exp %78 : vector<8x8xf32>
    %cst_38 = arith.constant dense<0.000000e+00> : vector<8xf32>
    %80 = vector.multi_reduction <add>, %79, %cst_38 [1] : vector<8x8xf32> to vector<8xf32>
    %81 = vector.shape_cast %80 : vector<8xf32> to vector<8x1xf32>
    %82 = tpu.reciprocal %81 {approx = true} : vector<8x1xf32> -> vector<8x1xf32>
    %83 = vector.broadcast %82 : vector<8x1xf32> to vector<8x8xf32>
    %84 = arith.mulf %79, %83 : vector<8x8xf32>
    %85 = arith.truncf %84 : vector<8x8xf32> to vector<8x8xbf16>
    %cst_39 = arith.constant dense<0.000000e+00> : vector<8x16xf32>
    %86 = tpu.matmul %85, %69, %cst_39 {dimension_numbers = #tpu.dot_dimension_numbers<[1], [0], [0], [1], [0, 0, 1, 1], [], []>} : vector<8x8xbf16>, vector<8x16xbf16>, vector<8x16xf32> -> vector<8x16xf32>
    %87 = vector.extract_strided_slice %66 {offsets = [0, 16], sizes = [8, 16], strides = [1, 1]} : vector<8x192xbf16> to vector<8x16xbf16>
    %88 = vector.extract_strided_slice %66 {offsets = [0, 80], sizes = [8, 16], strides = [1, 1]} : vector<8x192xbf16> to vector<8x16xbf16>
    %89 = vector.extract_strided_slice %66 {offsets = [0, 144], sizes = [8, 16], strides = [1, 1]} : vector<8x192xbf16> to vector<8x16xbf16>
    %cst_40 = arith.constant dense<0.000000e+00> : vector<8x8xf32>
    %90 = tpu.matmul %87, %88, %cst_40 {dimension_numbers = #tpu.dot_dimension_numbers<[1], [1], [0], [0], [0, 0, 1, 0], [], []>} : vector<8x16xbf16>, vector<8x16xbf16>, vector<8x8xf32> -> vector<8x8xf32>
    %cst_41 = arith.constant 2.500000e-01 : f32
    %91 = vector.broadcast %cst_41 : f32 to vector<8x8xf32>
    %92 = arith.mulf %90, %91 : vector<8x8xf32>
    %93 = vector.broadcast %5 : vector<1x8xf32> to vector<8x8xf32>
    %94 = arith.addf %92, %93 : vector<8x8xf32>
    %cst_42 = arith.constant dense<0xFF800000> : vector<8xf32>
    %95 = vector.multi_reduction <maximumf>, %94, %cst_42 [1] : vector<8x8xf32> to vector<8xf32>
    %96 = vector.shape_cast %95 : vector<8xf32> to vector<8x1xf32>
    %97 = vector.broadcast %96 : vector<8x1xf32> to vector<8x8xf32>
    %98 = arith.subf %94, %97 : vector<8x8xf32>
    %99 = math.exp %98 : vector<8x8xf32>
    %cst_43 = arith.constant dense<0.000000e+00> : vector<8xf32>
    %100 = vector.multi_reduction <add>, %99, %cst_43 [1] : vector<8x8xf32> to vector<8xf32>
    %101 = vector.shape_cast %100 : vector<8xf32> to vector<8x1xf32>
    %102 = tpu.reciprocal %101 {approx = true} : vector<8x1xf32> -> vector<8x1xf32>
    %103 = vector.broadcast %102 : vector<8x1xf32> to vector<8x8xf32>
    %104 = arith.mulf %99, %103 : vector<8x8xf32>
    %105 = arith.truncf %104 : vector<8x8xf32> to vector<8x8xbf16>
    %cst_44 = arith.constant dense<0.000000e+00> : vector<8x16xf32>
    %106 = tpu.matmul %105, %89, %cst_44 {dimension_numbers = #tpu.dot_dimension_numbers<[1], [0], [0], [1], [0, 0, 1, 1], [], []>} : vector<8x8xbf16>, vector<8x16xbf16>, vector<8x16xf32> -> vector<8x16xf32>
    %107 = vector.extract_strided_slice %66 {offsets = [0, 32], sizes = [8, 16], strides = [1, 1]} : vector<8x192xbf16> to vector<8x16xbf16>
    %108 = vector.extract_strided_slice %66 {offsets = [0, 96], sizes = [8, 16], strides = [1, 1]} : vector<8x192xbf16> to vector<8x16xbf16>
    %109 = vector.extract_strided_slice %66 {offsets = [0, 160], sizes = [8, 16], strides = [1, 1]} : vector<8x192xbf16> to vector<8x16xbf16>
    %cst_45 = arith.constant dense<0.000000e+00> : vector<8x8xf32>
    %110 = tpu.matmul %107, %108, %cst_45 {dimension_numbers = #tpu.dot_dimension_numbers<[1], [1], [0], [0], [0, 0, 1, 0], [], []>} : vector<8x16xbf16>, vector<8x16xbf16>, vector<8x8xf32> -> vector<8x8xf32>
    %cst_46 = arith.constant 2.500000e-01 : f32
    %111 = vector.broadcast %cst_46 : f32 to vector<8x8xf32>
    %112 = arith.mulf %110, %111 : vector<8x8xf32>
    %113 = vector.broadcast %5 : vector<1x8xf32> to vector<8x8xf32>
    %114 = arith.addf %112, %113 : vector<8x8xf32>
    %cst_47 = arith.constant dense<0xFF800000> : vector<8xf32>
    %115 = vector.multi_reduction <maximumf>, %114, %cst_47 [1] : vector<8x8xf32> to vector<8xf32>
    %116 = vector.shape_cast %115 : vector<8xf32> to vector<8x1xf32>
    %117 = vector.broadcast %116 : vector<8x1xf32> to vector<8x8xf32>
    %118 = arith.subf %114, %117 : vector<8x8xf32>
    %119 = math.exp %118 : vector<8x8xf32>
    %cst_48 = arith.constant dense<0.000000e+00> : vector<8xf32>
    %120 = vector.multi_reduction <add>, %119, %cst_48 [1] : vector<8x8xf32> to vector<8xf32>
    %121 = vector.shape_cast %120 : vector<8xf32> to vector<8x1xf32>
    %122 = tpu.reciprocal %121 {approx = true} : vector<8x1xf32> -> vector<8x1xf32>
    %123 = vector.broadcast %122 : vector<8x1xf32> to vector<8x8xf32>
    %124 = arith.mulf %119, %123 : vector<8x8xf32>
    %125 = arith.truncf %124 : vector<8x8xf32> to vector<8x8xbf16>
    %cst_49 = arith.constant dense<0.000000e+00> : vector<8x16xf32>
    %126 = tpu.matmul %125, %109, %cst_49 {dimension_numbers = #tpu.dot_dimension_numbers<[1], [0], [0], [1], [0, 0, 1, 1], [], []>} : vector<8x8xbf16>, vector<8x16xbf16>, vector<8x16xf32> -> vector<8x16xf32>
    %127 = vector.extract_strided_slice %66 {offsets = [0, 48], sizes = [8, 16], strides = [1, 1]} : vector<8x192xbf16> to vector<8x16xbf16>
    %128 = vector.extract_strided_slice %66 {offsets = [0, 112], sizes = [8, 16], strides = [1, 1]} : vector<8x192xbf16> to vector<8x16xbf16>
    %129 = vector.extract_strided_slice %66 {offsets = [0, 176], sizes = [8, 16], strides = [1, 1]} : vector<8x192xbf16> to vector<8x16xbf16>
    %cst_50 = arith.constant dense<0.000000e+00> : vector<8x8xf32>
    %130 = tpu.matmul %127, %128, %cst_50 {dimension_numbers = #tpu.dot_dimension_numbers<[1], [1], [0], [0], [0, 0, 1, 0], [], []>} : vector<8x16xbf16>, vector<8x16xbf16>, vector<8x8xf32> -> vector<8x8xf32>
    %cst_51 = arith.constant 2.500000e-01 : f32
    %131 = vector.broadcast %cst_51 : f32 to vector<8x8xf32>
    %132 = arith.mulf %130, %131 : vector<8x8xf32>
    %133 = vector.broadcast %5 : vector<1x8xf32> to vector<8x8xf32>
    %134 = arith.addf %132, %133 : vector<8x8xf32>
    %cst_52 = arith.constant dense<0xFF800000> : vector<8xf32>
    %135 = vector.multi_reduction <maximumf>, %134, %cst_52 [1] : vector<8x8xf32> to vector<8xf32>
    %136 = vector.shape_cast %135 : vector<8xf32> to vector<8x1xf32>
    %137 = vector.broadcast %136 : vector<8x1xf32> to vector<8x8xf32>
    %138 = arith.subf %134, %137 : vector<8x8xf32>
    %139 = math.exp %138 : vector<8x8xf32>
    %cst_53 = arith.constant dense<0.000000e+00> : vector<8xf32>
    %140 = vector.multi_reduction <add>, %139, %cst_53 [1] : vector<8x8xf32> to vector<8xf32>
    %141 = vector.shape_cast %140 : vector<8xf32> to vector<8x1xf32>
    %142 = tpu.reciprocal %141 {approx = true} : vector<8x1xf32> -> vector<8x1xf32>
    %143 = vector.broadcast %142 : vector<8x1xf32> to vector<8x8xf32>
    %144 = arith.mulf %139, %143 : vector<8x8xf32>
    %145 = arith.truncf %144 : vector<8x8xf32> to vector<8x8xbf16>
    %cst_54 = arith.constant dense<0.000000e+00> : vector<8x16xf32>
    %146 = tpu.matmul %145, %129, %cst_54 {dimension_numbers = #tpu.dot_dimension_numbers<[1], [0], [0], [1], [0, 0, 1, 1], [], []>} : vector<8x8xbf16>, vector<8x16xbf16>, vector<8x16xf32> -> vector<8x16xf32>
    %147 = tpu.concatenate %86, %106, %126, %146 in 1 : vector<8x16xf32>, vector<8x16xf32>, vector<8x16xf32>, vector<8x16xf32> -> vector<8x64xf32>
    %c0_55 = arith.constant 0 : index
    %c0_56 = arith.constant 0 : index
    %c0_57 = arith.constant 0 : index
    %148 = vector.load %arg10[%c0_55, %c0_56, %c0_57] : memref<2x64x64xbf16, #tpu.memory_space<vmem>>, vector<1x64x64xbf16>
    %149 = vector.shape_cast %148 : vector<1x64x64xbf16> to vector<64x64xbf16>
    %150 = arith.truncf %147 : vector<8x64xf32> to vector<8x64xbf16>
    %cst_58 = arith.constant dense<0.000000e+00> : vector<8x64xf32>
    %151 = tpu.matmul %150, %149, %cst_58 {dimension_numbers = #tpu.dot_dimension_numbers<[1], [0], [0], [1], [0, 0, 1, 1], [], []>} : vector<8x64xbf16>, vector<64x64xbf16>, vector<8x64xf32> -> vector<8x64xf32>
    %152 = arith.addf %33, %151 : vector<8x64xf32>
    %c0_59 = arith.constant 0 : index
    %c0_60 = arith.constant 0 : index
    %c0_61 = arith.constant 0 : index
    %153 = vector.load %arg11[%c0_59, %c0_60, %c0_61] : memref<2x1x64xf32, #tpu.memory_space<vmem>>, vector<1x1x64xf32>
    %154 = vector.shape_cast %153 : vector<1x1x64xf32> to vector<1x64xf32>
    %155 = vector.broadcast %154 : vector<1x64xf32> to vector<8x64xf32>
    %156 = arith.addf %152, %155 : vector<8x64xf32>
    %c0_62 = arith.constant 0 : index
    %c0_63 = arith.constant 0 : index
    %c0_64 = arith.constant 0 : index
    %157 = vector.load %arg12[%c0_62, %c0_63, %c0_64] : memref<2x1x64xf32, #tpu.memory_space<vmem>>, vector<1x1x64xf32>
    %158 = vector.shape_cast %157 : vector<1x1x64xf32> to vector<1x64xf32>
    %c0_65 = arith.constant 0 : index
    %c0_66 = arith.constant 0 : index
    %c0_67 = arith.constant 0 : index
    %159 = vector.load %arg13[%c0_65, %c0_66, %c0_67] : memref<2x1x64xf32, #tpu.memory_space<vmem>>, vector<1x1x64xf32>
    %160 = vector.shape_cast %159 : vector<1x1x64xf32> to vector<1x64xf32>
    %cst_68 = arith.constant dense<0.000000e+00> : vector<8xf32>
    %161 = vector.multi_reduction <add>, %156, %cst_68 [1] : vector<8x64xf32> to vector<8xf32>
    %162 = vector.shape_cast %161 : vector<8xf32> to vector<8x1xf32>
    %cst_69 = arith.constant 6.400000e+01 : f32
    %163 = vector.broadcast %cst_69 : f32 to vector<8x1xf32>
    %164 = arith.divf %162, %163 : vector<8x1xf32>
    %165 = vector.broadcast %164 : vector<8x1xf32> to vector<8x64xf32>
    %166 = arith.subf %156, %165 : vector<8x64xf32>
    %167 = arith.mulf %166, %166 : vector<8x64xf32>
    %cst_70 = arith.constant dense<0.000000e+00> : vector<8xf32>
    %168 = vector.multi_reduction <add>, %167, %cst_70 [1] : vector<8x64xf32> to vector<8xf32>
    %169 = vector.shape_cast %168 : vector<8xf32> to vector<8x1xf32>
    %cst_71 = arith.constant 6.400000e+01 : f32
    %170 = vector.broadcast %cst_71 : f32 to vector<8x1xf32>
    %171 = arith.divf %169, %170 : vector<8x1xf32>
    %cst_72 = arith.constant 9.99999974E-6 : f32
    %172 = vector.broadcast %cst_72 : f32 to vector<8x1xf32>
    %173 = arith.addf %171, %172 : vector<8x1xf32>
    %174 = math.rsqrt %173 : vector<8x1xf32>
    %175 = vector.broadcast %174 : vector<8x1xf32> to vector<8x64xf32>
    %176 = arith.mulf %166, %175 : vector<8x64xf32>
    %177 = vector.broadcast %158 : vector<1x64xf32> to vector<8x64xf32>
    %178 = arith.mulf %176, %177 : vector<8x64xf32>
    %179 = vector.broadcast %160 : vector<1x64xf32> to vector<8x64xf32>
    %180 = arith.addf %178, %179 : vector<8x64xf32>
    %c0_73 = arith.constant 0 : index
    %c0_74 = arith.constant 0 : index
    %c0_75 = arith.constant 0 : index
    %181 = vector.load %arg14[%c0_73, %c0_74, %c0_75] : memref<2x64x256xbf16, #tpu.memory_space<vmem>>, vector<1x64x256xbf16>
    %182 = vector.shape_cast %181 : vector<1x64x256xbf16> to vector<64x256xbf16>
    %183 = arith.truncf %180 : vector<8x64xf32> to vector<8x64xbf16>
    %cst_76 = arith.constant dense<0.000000e+00> : vector<8x256xf32>
    %184 = tpu.matmul %183, %182, %cst_76 {dimension_numbers = #tpu.dot_dimension_numbers<[1], [0], [0], [1], [0, 0, 1, 1], [], []>} : vector<8x64xbf16>, vector<64x256xbf16>, vector<8x256xf32> -> vector<8x256xf32>
    %c0_77 = arith.constant 0 : index
    %c0_78 = arith.constant 0 : index
    %c0_79 = arith.constant 0 : index
    %185 = vector.load %arg15[%c0_77, %c0_78, %c0_79] : memref<2x1x256xf32, #tpu.memory_space<vmem>>, vector<1x1x256xf32>
    %186 = vector.shape_cast %185 : vector<1x1x256xf32> to vector<1x256xf32>
    %187 = vector.broadcast %186 : vector<1x256xf32> to vector<8x256xf32>
    %188 = arith.addf %184, %187 : vector<8x256xf32>
    %cst_80 = arith.constant 1.702000e+00 : f32
    %189 = vector.broadcast %cst_80 : f32 to vector<8x256xf32>
    %190 = arith.mulf %189, %188 : vector<8x256xf32>
    %191 = arith.negf %190 : vector<8x256xf32>
    %192 = math.exp %191 : vector<8x256xf32>
    %cst_81 = arith.constant 1.000000e+00 : f32
    %193 = vector.broadcast %cst_81 : f32 to vector<8x256xf32>
    %194 = arith.addf %193, %192 : vector<8x256xf32>
    %195 = arith.divf %193, %194 : vector<8x256xf32>
    %196 = arith.mulf %188, %195 : vector<8x256xf32>
    %c0_82 = arith.constant 0 : index
    %c0_83 = arith.constant 0 : index
    %c0_84 = arith.constant 0 : index
    %197 = vector.load %arg16[%c0_82, %c0_83, %c0_84] : memref<2x256x64xbf16, #tpu.memory_space<vmem>>, vector<1x256x64xbf16>
    %198 = vector.shape_cast %197 : vector<1x256x64xbf16> to vector<256x64xbf16>
    %199 = arith.truncf %196 : vector<8x256xf32> to vector<8x256xbf16>
    %cst_85 = arith.constant dense<0.000000e+00> : vector<8x64xf32>
    %200 = tpu.matmul %199, %198, %cst_85 {dimension_numbers = #tpu.dot_dimension_numbers<[1], [0], [0], [1], [0, 0, 1, 1], [], []>} : vector<8x256xbf16>, vector<256x64xbf16>, vector<8x64xf32> -> vector<8x64xf32>
    %201 = arith.addf %156, %200 : vector<8x64xf32>
    %c0_86 = arith.constant 0 : index
    %c0_87 = arith.constant 0 : index
    %c0_88 = arith.constant 0 : index
    %202 = vector.load %arg17[%c0_86, %c0_87, %c0_88] : memref<2x1x64xf32, #tpu.memory_space<vmem>>, vector<1x1x64xf32>
    %203 = vector.shape_cast %202 : vector<1x1x64xf32> to vector<1x64xf32>
    %204 = vector.broadcast %203 : vector<1x64xf32> to vector<8x64xf32>
    %205 = arith.addf %201, %204 : vector<8x64xf32>
    %c1 = arith.constant 1 : index
    %c0_89 = arith.constant 0 : index
    %c0_90 = arith.constant 0 : index
    %206 = vector.load %arg6[%c1, %c0_89, %c0_90] : memref<2x1x64xf32, #tpu.memory_space<vmem>>, vector<1x1x64xf32>
    %207 = vector.shape_cast %206 : vector<1x1x64xf32> to vector<1x64xf32>
    %c1_91 = arith.constant 1 : index
    %c0_92 = arith.constant 0 : index
    %c0_93 = arith.constant 0 : index
    %208 = vector.load %arg7[%c1_91, %c0_92, %c0_93] : memref<2x1x64xf32, #tpu.memory_space<vmem>>, vector<1x1x64xf32>
    %209 = vector.shape_cast %208 : vector<1x1x64xf32> to vector<1x64xf32>
    %cst_94 = arith.constant dense<0.000000e+00> : vector<8xf32>
    %210 = vector.multi_reduction <add>, %205, %cst_94 [1] : vector<8x64xf32> to vector<8xf32>
    %211 = vector.shape_cast %210 : vector<8xf32> to vector<8x1xf32>
    %cst_95 = arith.constant 6.400000e+01 : f32
    %212 = vector.broadcast %cst_95 : f32 to vector<8x1xf32>
    %213 = arith.divf %211, %212 : vector<8x1xf32>
    %214 = vector.broadcast %213 : vector<8x1xf32> to vector<8x64xf32>
    %215 = arith.subf %205, %214 : vector<8x64xf32>
    %216 = arith.mulf %215, %215 : vector<8x64xf32>
    %cst_96 = arith.constant dense<0.000000e+00> : vector<8xf32>
    %217 = vector.multi_reduction <add>, %216, %cst_96 [1] : vector<8x64xf32> to vector<8xf32>
    %218 = vector.shape_cast %217 : vector<8xf32> to vector<8x1xf32>
    %cst_97 = arith.constant 6.400000e+01 : f32
    %219 = vector.broadcast %cst_97 : f32 to vector<8x1xf32>
    %220 = arith.divf %218, %219 : vector<8x1xf32>
    %cst_98 = arith.constant 9.99999974E-6 : f32
    %221 = vector.broadcast %cst_98 : f32 to vector<8x1xf32>
    %222 = arith.addf %220, %221 : vector<8x1xf32>
    %223 = math.rsqrt %222 : vector<8x1xf32>
    %224 = vector.broadcast %223 : vector<8x1xf32> to vector<8x64xf32>
    %225 = arith.mulf %215, %224 : vector<8x64xf32>
    %226 = vector.broadcast %207 : vector<1x64xf32> to vector<8x64xf32>
    %227 = arith.mulf %225, %226 : vector<8x64xf32>
    %228 = vector.broadcast %209 : vector<1x64xf32> to vector<8x64xf32>
    %229 = arith.addf %227, %228 : vector<8x64xf32>
    %c1_99 = arith.constant 1 : index
    %c0_100 = arith.constant 0 : index
    %c0_101 = arith.constant 0 : index
    %230 = vector.load %arg8[%c1_99, %c0_100, %c0_101] : memref<2x64x192xbf16, #tpu.memory_space<vmem>>, vector<1x64x192xbf16>
    %231 = vector.shape_cast %230 : vector<1x64x192xbf16> to vector<64x192xbf16>
    %232 = arith.truncf %229 : vector<8x64xf32> to vector<8x64xbf16>
    %cst_102 = arith.constant dense<0.000000e+00> : vector<8x192xf32>
    %233 = tpu.matmul %232, %231, %cst_102 {dimension_numbers = #tpu.dot_dimension_numbers<[1], [0], [0], [1], [0, 0, 1, 1], [], []>} : vector<8x64xbf16>, vector<64x192xbf16>, vector<8x192xf32> -> vector<8x192xf32>
    %c1_103 = arith.constant 1 : index
    %c0_104 = arith.constant 0 : index
    %c0_105 = arith.constant 0 : index
    %234 = vector.load %arg9[%c1_103, %c0_104, %c0_105] : memref<2x1x192xf32, #tpu.memory_space<vmem>>, vector<1x1x192xf32>
    %235 = vector.shape_cast %234 : vector<1x1x192xf32> to vector<1x192xf32>
    %236 = vector.broadcast %235 : vector<1x192xf32> to vector<8x192xf32>
    %237 = arith.addf %233, %236 : vector<8x192xf32>
    %238 = arith.truncf %237 : vector<8x192xf32> to vector<8x192xbf16>
    %239 = vector.extract_strided_slice %238 {offsets = [0, 0], sizes = [8, 16], strides = [1, 1]} : vector<8x192xbf16> to vector<8x16xbf16>
    %240 = vector.extract_strided_slice %238 {offsets = [0, 64], sizes = [8, 16], strides = [1, 1]} : vector<8x192xbf16> to vector<8x16xbf16>
    %241 = vector.extract_strided_slice %238 {offsets = [0, 128], sizes = [8, 16], strides = [1, 1]} : vector<8x192xbf16> to vector<8x16xbf16>
    %cst_106 = arith.constant dense<0.000000e+00> : vector<8x8xf32>
    %242 = tpu.matmul %239, %240, %cst_106 {dimension_numbers = #tpu.dot_dimension_numbers<[1], [1], [0], [0], [0, 0, 1, 0], [], []>} : vector<8x16xbf16>, vector<8x16xbf16>, vector<8x8xf32> -> vector<8x8xf32>
    %cst_107 = arith.constant 2.500000e-01 : f32
    %243 = vector.broadcast %cst_107 : f32 to vector<8x8xf32>
    %244 = arith.mulf %242, %243 : vector<8x8xf32>
    %245 = vector.broadcast %5 : vector<1x8xf32> to vector<8x8xf32>
    %246 = arith.addf %244, %245 : vector<8x8xf32>
    %cst_108 = arith.constant dense<0xFF800000> : vector<8xf32>
    %247 = vector.multi_reduction <maximumf>, %246, %cst_108 [1] : vector<8x8xf32> to vector<8xf32>
    %248 = vector.shape_cast %247 : vector<8xf32> to vector<8x1xf32>
    %249 = vector.broadcast %248 : vector<8x1xf32> to vector<8x8xf32>
    %250 = arith.subf %246, %249 : vector<8x8xf32>
    %251 = math.exp %250 : vector<8x8xf32>
    %cst_109 = arith.constant dense<0.000000e+00> : vector<8xf32>
    %252 = vector.multi_reduction <add>, %251, %cst_109 [1] : vector<8x8xf32> to vector<8xf32>
    %253 = vector.shape_cast %252 : vector<8xf32> to vector<8x1xf32>
    %254 = tpu.reciprocal %253 {approx = true} : vector<8x1xf32> -> vector<8x1xf32>
    %255 = vector.broadcast %254 : vector<8x1xf32> to vector<8x8xf32>
    %256 = arith.mulf %251, %255 : vector<8x8xf32>
    %257 = arith.truncf %256 : vector<8x8xf32> to vector<8x8xbf16>
    %cst_110 = arith.constant dense<0.000000e+00> : vector<8x16xf32>
    %258 = tpu.matmul %257, %241, %cst_110 {dimension_numbers = #tpu.dot_dimension_numbers<[1], [0], [0], [1], [0, 0, 1, 1], [], []>} : vector<8x8xbf16>, vector<8x16xbf16>, vector<8x16xf32> -> vector<8x16xf32>
    %259 = vector.extract_strided_slice %238 {offsets = [0, 16], sizes = [8, 16], strides = [1, 1]} : vector<8x192xbf16> to vector<8x16xbf16>
    %260 = vector.extract_strided_slice %238 {offsets = [0, 80], sizes = [8, 16], strides = [1, 1]} : vector<8x192xbf16> to vector<8x16xbf16>
    %261 = vector.extract_strided_slice %238 {offsets = [0, 144], sizes = [8, 16], strides = [1, 1]} : vector<8x192xbf16> to vector<8x16xbf16>
    %cst_111 = arith.constant dense<0.000000e+00> : vector<8x8xf32>
    %262 = tpu.matmul %259, %260, %cst_111 {dimension_numbers = #tpu.dot_dimension_numbers<[1], [1], [0], [0], [0, 0, 1, 0], [], []>} : vector<8x16xbf16>, vector<8x16xbf16>, vector<8x8xf32> -> vector<8x8xf32>
    %cst_112 = arith.constant 2.500000e-01 : f32
    %263 = vector.broadcast %cst_112 : f32 to vector<8x8xf32>
    %264 = arith.mulf %262, %263 : vector<8x8xf32>
    %265 = vector.broadcast %5 : vector<1x8xf32> to vector<8x8xf32>
    %266 = arith.addf %264, %265 : vector<8x8xf32>
    %cst_113 = arith.constant dense<0xFF800000> : vector<8xf32>
    %267 = vector.multi_reduction <maximumf>, %266, %cst_113 [1] : vector<8x8xf32> to vector<8xf32>
    %268 = vector.shape_cast %267 : vector<8xf32> to vector<8x1xf32>
    %269 = vector.broadcast %268 : vector<8x1xf32> to vector<8x8xf32>
    %270 = arith.subf %266, %269 : vector<8x8xf32>
    %271 = math.exp %270 : vector<8x8xf32>
    %cst_114 = arith.constant dense<0.000000e+00> : vector<8xf32>
    %272 = vector.multi_reduction <add>, %271, %cst_114 [1] : vector<8x8xf32> to vector<8xf32>
    %273 = vector.shape_cast %272 : vector<8xf32> to vector<8x1xf32>
    %274 = tpu.reciprocal %273 {approx = true} : vector<8x1xf32> -> vector<8x1xf32>
    %275 = vector.broadcast %274 : vector<8x1xf32> to vector<8x8xf32>
    %276 = arith.mulf %271, %275 : vector<8x8xf32>
    %277 = arith.truncf %276 : vector<8x8xf32> to vector<8x8xbf16>
    %cst_115 = arith.constant dense<0.000000e+00> : vector<8x16xf32>
    %278 = tpu.matmul %277, %261, %cst_115 {dimension_numbers = #tpu.dot_dimension_numbers<[1], [0], [0], [1], [0, 0, 1, 1], [], []>} : vector<8x8xbf16>, vector<8x16xbf16>, vector<8x16xf32> -> vector<8x16xf32>
    %279 = vector.extract_strided_slice %238 {offsets = [0, 32], sizes = [8, 16], strides = [1, 1]} : vector<8x192xbf16> to vector<8x16xbf16>
    %280 = vector.extract_strided_slice %238 {offsets = [0, 96], sizes = [8, 16], strides = [1, 1]} : vector<8x192xbf16> to vector<8x16xbf16>
    %281 = vector.extract_strided_slice %238 {offsets = [0, 160], sizes = [8, 16], strides = [1, 1]} : vector<8x192xbf16> to vector<8x16xbf16>
    %cst_116 = arith.constant dense<0.000000e+00> : vector<8x8xf32>
    %282 = tpu.matmul %279, %280, %cst_116 {dimension_numbers = #tpu.dot_dimension_numbers<[1], [1], [0], [0], [0, 0, 1, 0], [], []>} : vector<8x16xbf16>, vector<8x16xbf16>, vector<8x8xf32> -> vector<8x8xf32>
    %cst_117 = arith.constant 2.500000e-01 : f32
    %283 = vector.broadcast %cst_117 : f32 to vector<8x8xf32>
    %284 = arith.mulf %282, %283 : vector<8x8xf32>
    %285 = vector.broadcast %5 : vector<1x8xf32> to vector<8x8xf32>
    %286 = arith.addf %284, %285 : vector<8x8xf32>
    %cst_118 = arith.constant dense<0xFF800000> : vector<8xf32>
    %287 = vector.multi_reduction <maximumf>, %286, %cst_118 [1] : vector<8x8xf32> to vector<8xf32>
    %288 = vector.shape_cast %287 : vector<8xf32> to vector<8x1xf32>
    %289 = vector.broadcast %288 : vector<8x1xf32> to vector<8x8xf32>
    %290 = arith.subf %286, %289 : vector<8x8xf32>
    %291 = math.exp %290 : vector<8x8xf32>
    %cst_119 = arith.constant dense<0.000000e+00> : vector<8xf32>
    %292 = vector.multi_reduction <add>, %291, %cst_119 [1] : vector<8x8xf32> to vector<8xf32>
    %293 = vector.shape_cast %292 : vector<8xf32> to vector<8x1xf32>
    %294 = tpu.reciprocal %293 {approx = true} : vector<8x1xf32> -> vector<8x1xf32>
    %295 = vector.broadcast %294 : vector<8x1xf32> to vector<8x8xf32>
    %296 = arith.mulf %291, %295 : vector<8x8xf32>
    %297 = arith.truncf %296 : vector<8x8xf32> to vector<8x8xbf16>
    %cst_120 = arith.constant dense<0.000000e+00> : vector<8x16xf32>
    %298 = tpu.matmul %297, %281, %cst_120 {dimension_numbers = #tpu.dot_dimension_numbers<[1], [0], [0], [1], [0, 0, 1, 1], [], []>} : vector<8x8xbf16>, vector<8x16xbf16>, vector<8x16xf32> -> vector<8x16xf32>
    %299 = vector.extract_strided_slice %238 {offsets = [0, 48], sizes = [8, 16], strides = [1, 1]} : vector<8x192xbf16> to vector<8x16xbf16>
    %300 = vector.extract_strided_slice %238 {offsets = [0, 112], sizes = [8, 16], strides = [1, 1]} : vector<8x192xbf16> to vector<8x16xbf16>
    %301 = vector.extract_strided_slice %238 {offsets = [0, 176], sizes = [8, 16], strides = [1, 1]} : vector<8x192xbf16> to vector<8x16xbf16>
    %cst_121 = arith.constant dense<0.000000e+00> : vector<8x8xf32>
    %302 = tpu.matmul %299, %300, %cst_121 {dimension_numbers = #tpu.dot_dimension_numbers<[1], [1], [0], [0], [0, 0, 1, 0], [], []>} : vector<8x16xbf16>, vector<8x16xbf16>, vector<8x8xf32> -> vector<8x8xf32>
    %cst_122 = arith.constant 2.500000e-01 : f32
    %303 = vector.broadcast %cst_122 : f32 to vector<8x8xf32>
    %304 = arith.mulf %302, %303 : vector<8x8xf32>
    %305 = vector.broadcast %5 : vector<1x8xf32> to vector<8x8xf32>
    %306 = arith.addf %304, %305 : vector<8x8xf32>
    %cst_123 = arith.constant dense<0xFF800000> : vector<8xf32>
    %307 = vector.multi_reduction <maximumf>, %306, %cst_123 [1] : vector<8x8xf32> to vector<8xf32>
    %308 = vector.shape_cast %307 : vector<8xf32> to vector<8x1xf32>
    %309 = vector.broadcast %308 : vector<8x1xf32> to vector<8x8xf32>
    %310 = arith.subf %306, %309 : vector<8x8xf32>
    %311 = math.exp %310 : vector<8x8xf32>
    %cst_124 = arith.constant dense<0.000000e+00> : vector<8xf32>
    %312 = vector.multi_reduction <add>, %311, %cst_124 [1] : vector<8x8xf32> to vector<8xf32>
    %313 = vector.shape_cast %312 : vector<8xf32> to vector<8x1xf32>
    %314 = tpu.reciprocal %313 {approx = true} : vector<8x1xf32> -> vector<8x1xf32>
    %315 = vector.broadcast %314 : vector<8x1xf32> to vector<8x8xf32>
    %316 = arith.mulf %311, %315 : vector<8x8xf32>
    %317 = arith.truncf %316 : vector<8x8xf32> to vector<8x8xbf16>
    %cst_125 = arith.constant dense<0.000000e+00> : vector<8x16xf32>
    %318 = tpu.matmul %317, %301, %cst_125 {dimension_numbers = #tpu.dot_dimension_numbers<[1], [0], [0], [1], [0, 0, 1, 1], [], []>} : vector<8x8xbf16>, vector<8x16xbf16>, vector<8x16xf32> -> vector<8x16xf32>
    %319 = tpu.concatenate %258, %278, %298, %318 in 1 : vector<8x16xf32>, vector<8x16xf32>, vector<8x16xf32>, vector<8x16xf32> -> vector<8x64xf32>
    %c1_126 = arith.constant 1 : index
    %c0_127 = arith.constant 0 : index
    %c0_128 = arith.constant 0 : index
    %320 = vector.load %arg10[%c1_126, %c0_127, %c0_128] : memref<2x64x64xbf16, #tpu.memory_space<vmem>>, vector<1x64x64xbf16>
    %321 = vector.shape_cast %320 : vector<1x64x64xbf16> to vector<64x64xbf16>
    %322 = arith.truncf %319 : vector<8x64xf32> to vector<8x64xbf16>
    %cst_129 = arith.constant dense<0.000000e+00> : vector<8x64xf32>
    %323 = tpu.matmul %322, %321, %cst_129 {dimension_numbers = #tpu.dot_dimension_numbers<[1], [0], [0], [1], [0, 0, 1, 1], [], []>} : vector<8x64xbf16>, vector<64x64xbf16>, vector<8x64xf32> -> vector<8x64xf32>
    %324 = arith.addf %205, %323 : vector<8x64xf32>
    %c1_130 = arith.constant 1 : index
    %c0_131 = arith.constant 0 : index
    %c0_132 = arith.constant 0 : index
    %325 = vector.load %arg11[%c1_130, %c0_131, %c0_132] : memref<2x1x64xf32, #tpu.memory_space<vmem>>, vector<1x1x64xf32>
    %326 = vector.shape_cast %325 : vector<1x1x64xf32> to vector<1x64xf32>
    %327 = vector.broadcast %326 : vector<1x64xf32> to vector<8x64xf32>
    %328 = arith.addf %324, %327 : vector<8x64xf32>
    %c1_133 = arith.constant 1 : index
    %c0_134 = arith.constant 0 : index
    %c0_135 = arith.constant 0 : index
    %329 = vector.load %arg12[%c1_133, %c0_134, %c0_135] : memref<2x1x64xf32, #tpu.memory_space<vmem>>, vector<1x1x64xf32>
    %330 = vector.shape_cast %329 : vector<1x1x64xf32> to vector<1x64xf32>
    %c1_136 = arith.constant 1 : index
    %c0_137 = arith.constant 0 : index
    %c0_138 = arith.constant 0 : index
    %331 = vector.load %arg13[%c1_136, %c0_137, %c0_138] : memref<2x1x64xf32, #tpu.memory_space<vmem>>, vector<1x1x64xf32>
    %332 = vector.shape_cast %331 : vector<1x1x64xf32> to vector<1x64xf32>
    %cst_139 = arith.constant dense<0.000000e+00> : vector<8xf32>
    %333 = vector.multi_reduction <add>, %328, %cst_139 [1] : vector<8x64xf32> to vector<8xf32>
    %334 = vector.shape_cast %333 : vector<8xf32> to vector<8x1xf32>
    %cst_140 = arith.constant 6.400000e+01 : f32
    %335 = vector.broadcast %cst_140 : f32 to vector<8x1xf32>
    %336 = arith.divf %334, %335 : vector<8x1xf32>
    %337 = vector.broadcast %336 : vector<8x1xf32> to vector<8x64xf32>
    %338 = arith.subf %328, %337 : vector<8x64xf32>
    %339 = arith.mulf %338, %338 : vector<8x64xf32>
    %cst_141 = arith.constant dense<0.000000e+00> : vector<8xf32>
    %340 = vector.multi_reduction <add>, %339, %cst_141 [1] : vector<8x64xf32> to vector<8xf32>
    %341 = vector.shape_cast %340 : vector<8xf32> to vector<8x1xf32>
    %cst_142 = arith.constant 6.400000e+01 : f32
    %342 = vector.broadcast %cst_142 : f32 to vector<8x1xf32>
    %343 = arith.divf %341, %342 : vector<8x1xf32>
    %cst_143 = arith.constant 9.99999974E-6 : f32
    %344 = vector.broadcast %cst_143 : f32 to vector<8x1xf32>
    %345 = arith.addf %343, %344 : vector<8x1xf32>
    %346 = math.rsqrt %345 : vector<8x1xf32>
    %347 = vector.broadcast %346 : vector<8x1xf32> to vector<8x64xf32>
    %348 = arith.mulf %338, %347 : vector<8x64xf32>
    %349 = vector.broadcast %330 : vector<1x64xf32> to vector<8x64xf32>
    %350 = arith.mulf %348, %349 : vector<8x64xf32>
    %351 = vector.broadcast %332 : vector<1x64xf32> to vector<8x64xf32>
    %352 = arith.addf %350, %351 : vector<8x64xf32>
    %c1_144 = arith.constant 1 : index
    %c0_145 = arith.constant 0 : index
    %c0_146 = arith.constant 0 : index
    %353 = vector.load %arg14[%c1_144, %c0_145, %c0_146] : memref<2x64x256xbf16, #tpu.memory_space<vmem>>, vector<1x64x256xbf16>
    %354 = vector.shape_cast %353 : vector<1x64x256xbf16> to vector<64x256xbf16>
    %355 = arith.truncf %352 : vector<8x64xf32> to vector<8x64xbf16>
    %cst_147 = arith.constant dense<0.000000e+00> : vector<8x256xf32>
    %356 = tpu.matmul %355, %354, %cst_147 {dimension_numbers = #tpu.dot_dimension_numbers<[1], [0], [0], [1], [0, 0, 1, 1], [], []>} : vector<8x64xbf16>, vector<64x256xbf16>, vector<8x256xf32> -> vector<8x256xf32>
    %c1_148 = arith.constant 1 : index
    %c0_149 = arith.constant 0 : index
    %c0_150 = arith.constant 0 : index
    %357 = vector.load %arg15[%c1_148, %c0_149, %c0_150] : memref<2x1x256xf32, #tpu.memory_space<vmem>>, vector<1x1x256xf32>
    %358 = vector.shape_cast %357 : vector<1x1x256xf32> to vector<1x256xf32>
    %359 = vector.broadcast %358 : vector<1x256xf32> to vector<8x256xf32>
    %360 = arith.addf %356, %359 : vector<8x256xf32>
    %cst_151 = arith.constant 1.702000e+00 : f32
    %361 = vector.broadcast %cst_151 : f32 to vector<8x256xf32>
    %362 = arith.mulf %361, %360 : vector<8x256xf32>
    %363 = arith.negf %362 : vector<8x256xf32>
    %364 = math.exp %363 : vector<8x256xf32>
    %cst_152 = arith.constant 1.000000e+00 : f32
    %365 = vector.broadcast %cst_152 : f32 to vector<8x256xf32>
    %366 = arith.addf %365, %364 : vector<8x256xf32>
    %367 = arith.divf %365, %366 : vector<8x256xf32>
    %368 = arith.mulf %360, %367 : vector<8x256xf32>
    %c1_153 = arith.constant 1 : index
    %c0_154 = arith.constant 0 : index
    %c0_155 = arith.constant 0 : index
    %369 = vector.load %arg16[%c1_153, %c0_154, %c0_155] : memref<2x256x64xbf16, #tpu.memory_space<vmem>>, vector<1x256x64xbf16>
    %370 = vector.shape_cast %369 : vector<1x256x64xbf16> to vector<256x64xbf16>
    %371 = arith.truncf %368 : vector<8x256xf32> to vector<8x256xbf16>
    %cst_156 = arith.constant dense<0.000000e+00> : vector<8x64xf32>
    %372 = tpu.matmul %371, %370, %cst_156 {dimension_numbers = #tpu.dot_dimension_numbers<[1], [0], [0], [1], [0, 0, 1, 1], [], []>} : vector<8x256xbf16>, vector<256x64xbf16>, vector<8x64xf32> -> vector<8x64xf32>
    %373 = arith.addf %328, %372 : vector<8x64xf32>
    %c1_157 = arith.constant 1 : index
    %c0_158 = arith.constant 0 : index
    %c0_159 = arith.constant 0 : index
    %374 = vector.load %arg17[%c1_157, %c0_158, %c0_159] : memref<2x1x64xf32, #tpu.memory_space<vmem>>, vector<1x1x64xf32>
    %375 = vector.shape_cast %374 : vector<1x1x64xf32> to vector<1x64xf32>
    %376 = vector.broadcast %375 : vector<1x64xf32> to vector<8x64xf32>
    %377 = arith.addf %373, %376 : vector<8x64xf32>
    %378 = vector.extract_strided_slice %377 {offsets = [0, 0], sizes = [1, 64], strides = [1, 1]} : vector<8x64xf32> to vector<1x64xf32>
    %c0_160 = arith.constant 0 : index
    %c0_161 = arith.constant 0 : index
    %379 = vector.load %arg18[%c0_160, %c0_161] : memref<1x64xf32, #tpu.memory_space<vmem>>, vector<1x64xf32>
    %c0_162 = arith.constant 0 : index
    %c0_163 = arith.constant 0 : index
    %380 = vector.load %arg19[%c0_162, %c0_163] : memref<1x64xf32, #tpu.memory_space<vmem>>, vector<1x64xf32>
    %cst_164 = arith.constant dense<0.000000e+00> : vector<1xf32>
    %381 = vector.multi_reduction <add>, %378, %cst_164 [1] : vector<1x64xf32> to vector<1xf32>
    %382 = vector.shape_cast %381 : vector<1xf32> to vector<1x1xf32>
    %cst_165 = arith.constant 6.400000e+01 : f32
    %383 = vector.broadcast %cst_165 : f32 to vector<1x1xf32>
    %384 = arith.divf %382, %383 : vector<1x1xf32>
    %385 = vector.broadcast %384 : vector<1x1xf32> to vector<1x64xf32>
    %386 = arith.subf %378, %385 : vector<1x64xf32>
    %387 = arith.mulf %386, %386 : vector<1x64xf32>
    %cst_166 = arith.constant dense<0.000000e+00> : vector<1xf32>
    %388 = vector.multi_reduction <add>, %387, %cst_166 [1] : vector<1x64xf32> to vector<1xf32>
    %389 = vector.shape_cast %388 : vector<1xf32> to vector<1x1xf32>
    %cst_167 = arith.constant 6.400000e+01 : f32
    %390 = vector.broadcast %cst_167 : f32 to vector<1x1xf32>
    %391 = arith.divf %389, %390 : vector<1x1xf32>
    %cst_168 = arith.constant 9.99999974E-6 : f32
    %392 = vector.broadcast %cst_168 : f32 to vector<1x1xf32>
    %393 = arith.addf %391, %392 : vector<1x1xf32>
    %394 = math.rsqrt %393 : vector<1x1xf32>
    %395 = vector.broadcast %394 : vector<1x1xf32> to vector<1x64xf32>
    %396 = arith.mulf %386, %395 : vector<1x64xf32>
    %397 = arith.mulf %396, %379 : vector<1x64xf32>
    %398 = arith.addf %397, %380 : vector<1x64xf32>
    %c0_169 = arith.constant 0 : index
    %c0_170 = arith.constant 0 : index
    %399 = vector.load %arg20[%c0_169, %c0_170] : memref<64x128xbf16, #tpu.memory_space<vmem>>, vector<64x128xbf16>
    %400 = arith.truncf %398 : vector<1x64xf32> to vector<1x64xbf16>
    %cst_171 = arith.constant dense<0.000000e+00> : vector<1x128xf32>
    %401 = tpu.matmul %400, %399, %cst_171 {dimension_numbers = #tpu.dot_dimension_numbers<[1], [0], [0], [1], [0, 0, 1, 1], [], []>} : vector<1x64xbf16>, vector<64x128xbf16>, vector<1x128xf32> -> vector<1x128xf32>
    %402 = arith.mulf %401, %401 : vector<1x128xf32>
    %cst_172 = arith.constant dense<0.000000e+00> : vector<1xf32>
    %403 = vector.multi_reduction <add>, %402, %cst_172 [1] : vector<1x128xf32> to vector<1xf32>
    %404 = vector.shape_cast %403 : vector<1xf32> to vector<1x1xf32>
    %405 = math.sqrt %404 : vector<1x1xf32>
    %cst_173 = arith.constant 9.99999996E-13 : f32
    %406 = vector.broadcast %cst_173 : f32 to vector<1x1xf32>
    %407 = arith.maximumf %405, %406 : vector<1x1xf32>
    %408 = vector.broadcast %407 : vector<1x1xf32> to vector<1x128xf32>
    %409 = arith.divf %401, %408 : vector<1x128xf32>
    %410 = vector.shape_cast %409 : vector<1x128xf32> to vector<1x128xf32>
    %411 = vector.broadcast %410 : vector<1x128xf32> to vector<8x128xf32>
    %c0_174 = arith.constant 0 : index
    %c0_175 = arith.constant 0 : index
    %c0_176 = arith.constant 0 : index
    %412 = vector.load %arg21[%c0_174, %c0_175, %c0_176] : memref<1x8x128xf32, #tpu.memory_space<vmem>>, vector<1x8x128xf32>
    %413 = vector.shape_cast %412 : vector<1x8x128xf32> to vector<8x128xf32>
    %414 = vector.shape_cast %411 : vector<8x128xf32> to vector<1x8x128xf32>
    tpu.vector_store %arg21[%c0_174, %c0_175, %c0_176], %414 {strides = array<i32>} : memref<1x8x128xf32, #tpu.memory_space<vmem>>, vector<1x8x128xf32>,
    return
  }
  func.func @transform_0(%arg0: i32) -> (i32, i32, i32) {
    %c0_i32 = arith.constant 0 : i32
    %c0_i32_0 = arith.constant 0 : i32
    %c0_i32_1 = arith.constant 0 : i32
    return %arg0, %c0_i32, %c0_i32_0 : i32, i32, i32
  }
  func.func @transform_1(%arg0: i32) -> (i32, i32) {
    %c0_i32 = arith.constant 0 : i32
    %c0_i32_0 = arith.constant 0 : i32
    %c0_i32_1 = arith.constant 0 : i32
    return %c0_i32, %c0_i32_0 : i32, i32
  }
  func.func @transform_2(%arg0: i32) -> (i32, i32) {
    %c0_i32 = arith.constant 0 : i32
    %c0_i32_0 = arith.constant 0 : i32
    %c0_i32_1 = arith.constant 0 : i32
    return %c0_i32, %c0_i32_0 : i32, i32
  }
  func.func @transform_3(%arg0: i32) -> (i32, i32) {
    %c0_i32 = arith.constant 0 : i32
    %c0_i32_0 = arith.constant 0 : i32
    %c0_i32_1 = arith.constant 0 : i32
    return %c0_i32, %c0_i32_0 : i32, i32
  }
  func.func @transform_4(%arg0: i32) -> (i32, i32) {
    %c0_i32 = arith.constant 0 : i32
    %c0_i32_0 = arith.constant 0 : i32
    %c0_i32_1 = arith.constant 0 : i32
    return %c0_i32, %c0_i32_0 : i32, i32
  }
  func.func @transform_5(%arg0: i32) -> (i32, i32, i32) {
    %c0_i32 = arith.constant 0 : i32
    %c0_i32_0 = arith.constant 0 : i32
    %c0_i32_1 = arith.constant 0 : i32
    %c0_i32_2 = arith.constant 0 : i32
    return %c0_i32, %c0_i32_0, %c0_i32_1 : i32, i32, i32
  }
  func.func @transform_6(%arg0: i32) -> (i32, i32, i32) {
    %c0_i32 = arith.constant 0 : i32
    %c0_i32_0 = arith.constant 0 : i32
    %c0_i32_1 = arith.constant 0 : i32
    %c0_i32_2 = arith.constant 0 : i32
    return %c0_i32, %c0_i32_0, %c0_i32_1 : i32, i32, i32
  }
  func.func @transform_7(%arg0: i32) -> (i32, i32, i32) {
    %c0_i32 = arith.constant 0 : i32
    %c0_i32_0 = arith.constant 0 : i32
    %c0_i32_1 = arith.constant 0 : i32
    %c0_i32_2 = arith.constant 0 : i32
    return %c0_i32, %c0_i32_0, %c0_i32_1 : i32, i32, i32
  }
  func.func @transform_8(%arg0: i32) -> (i32, i32, i32) {
    %c0_i32 = arith.constant 0 : i32
    %c0_i32_0 = arith.constant 0 : i32
    %c0_i32_1 = arith.constant 0 : i32
    %c0_i32_2 = arith.constant 0 : i32
    return %c0_i32, %c0_i32_0, %c0_i32_1 : i32, i32, i32
  }
  func.func @transform_9(%arg0: i32) -> (i32, i32, i32) {
    %c0_i32 = arith.constant 0 : i32
    %c0_i32_0 = arith.constant 0 : i32
    %c0_i32_1 = arith.constant 0 : i32
    %c0_i32_2 = arith.constant 0 : i32
    return %c0_i32, %c0_i32_0, %c0_i32_1 : i32, i32, i32
  }
  func.func @transform_10(%arg0: i32) -> (i32, i32, i32) {
    %c0_i32 = arith.constant 0 : i32
    %c0_i32_0 = arith.constant 0 : i32
    %c0_i32_1 = arith.constant 0 : i32
    %c0_i32_2 = arith.constant 0 : i32
    return %c0_i32, %c0_i32_0, %c0_i32_1 : i32, i32, i32
  }
  func.func @transform_11(%arg0: i32) -> (i32, i32, i32) {
    %c0_i32 = arith.constant 0 : i32
    %c0_i32_0 = arith.constant 0 : i32
    %c0_i32_1 = arith.constant 0 : i32
    %c0_i32_2 = arith.constant 0 : i32
    return %c0_i32, %c0_i32_0, %c0_i32_1 : i32, i32, i32
  }
  func.func @transform_12(%arg0: i32) -> (i32, i32, i32) {
    %c0_i32 = arith.constant 0 : i32
    %c0_i32_0 = arith.constant 0 : i32
    %c0_i32_1 = arith.constant 0 : i32
    %c0_i32_2 = arith.constant 0 : i32
    return %c0_i32, %c0_i32_0, %c0_i32_1 : i32, i32, i32
  }
  func.func @transform_13(%arg0: i32) -> (i32, i32, i32) {
    %c0_i32 = arith.constant 0 : i32
    %c0_i32_0 = arith.constant 0 : i32
    %c0_i32_1 = arith.constant 0 : i32
    %c0_i32_2 = arith.constant 0 : i32
    return %c0_i32, %c0_i32_0, %c0_i32_1 : i32, i32, i32
  }
  func.func @transform_14(%arg0: i32) -> (i32, i32, i32) {
    %c0_i32 = arith.constant 0 : i32
    %c0_i32_0 = arith.constant 0 : i32
    %c0_i32_1 = arith.constant 0 : i32
    %c0_i32_2 = arith.constant 0 : i32
    return %c0_i32, %c0_i32_0, %c0_i32_1 : i32, i32, i32
  }
  func.func @transform_15(%arg0: i32) -> (i32, i32, i32) {
    %c0_i32 = arith.constant 0 : i32
    %c0_i32_0 = arith.constant 0 : i32
    %c0_i32_1 = arith.constant 0 : i32
    %c0_i32_2 = arith.constant 0 : i32
    return %c0_i32, %c0_i32_0, %c0_i32_1 : i32, i32, i32
  }
  func.func @transform_16(%arg0: i32) -> (i32, i32, i32) {
    %c0_i32 = arith.constant 0 : i32
    %c0_i32_0 = arith.constant 0 : i32
    %c0_i32_1 = arith.constant 0 : i32
    %c0_i32_2 = arith.constant 0 : i32
    return %c0_i32, %c0_i32_0, %c0_i32_1 : i32, i32, i32
  }
  func.func @transform_17(%arg0: i32) -> (i32, i32) {
    %c0_i32 = arith.constant 0 : i32
    %c0_i32_0 = arith.constant 0 : i32
    %c0_i32_1 = arith.constant 0 : i32
    return %c0_i32, %c0_i32_0 : i32, i32
  }
  func.func @transform_18(%arg0: i32) -> (i32, i32) {
    %c0_i32 = arith.constant 0 : i32
    %c0_i32_0 = arith.constant 0 : i32
    %c0_i32_1 = arith.constant 0 : i32
    return %c0_i32, %c0_i32_0 : i32, i32
  }
  func.func @transform_19(%arg0: i32) -> (i32, i32) {
    %c0_i32 = arith.constant 0 : i32
    %c0_i32_0 = arith.constant 0 : i32
    %c0_i32_1 = arith.constant 0 : i32
    return %c0_i32, %c0_i32_0 : i32, i32
  }
  func.func @transform_20(%arg0: i32) -> (i32, i32, i32) {
    %c0_i32 = arith.constant 0 : i32
    %c0_i32_0 = arith.constant 0 : i32
    %c0_i32_1 = arith.constant 0 : i32
    return %arg0, %c0_i32, %c0_i32_0 : i32, i32, i32
  }
}

</mosaic_0001>

<llo_original>
// kernel: define_ref_image_style_prototype.1
$region0: #{define_ref_image_style_prototype.1}
  #allocation0 [shape = 'u32[]', space=smem, size = 0x4, offset = 0x4, fixed_abs, tag = 'smem constant byte address 0x4 - core index']
  #allocation1 [shape = 'u32[144,128]{1,0:T(1,128)}', space=vmem, size = 0x12000, scoped, tag = 'internal scratch']
  %s0 = inlined_call_operand.vmem [shape: bf16[3,8,768], index: 0, kind: input, shape index: {}]
  %s1 = inlined_call_operand.vmem [shape: f32[8,64], index: 1, kind: input, shape index: {}]
  %s2 = inlined_call_operand.vmem [shape: bf16[768,64], index: 2, kind: input, shape index: {}]
  %s3 = inlined_call_operand.vmem [shape: f32[1,64], index: 3, kind: input, shape index: {}]
  %s4 = inlined_call_operand.vmem [shape: f32[1,64], index: 4, kind: input, shape index: {}]
  %s5 = inlined_call_operand.vmem [shape: f32[2,1,64], index: 5, kind: input, shape index: {}]
  %s6 = inlined_call_operand.vmem [shape: f32[2,1,64], index: 6, kind: input, shape index: {}]
  %s7 = inlined_call_operand.vmem [shape: bf16[2,64,192], index: 7, kind: input, shape index: {}]
  %s8 = inlined_call_operand.vmem [shape: f32[2,1,192], index: 8, kind: input, shape index: {}]
  %s9 = inlined_call_operand.vmem [shape: bf16[2,64,64], index: 9, kind: input, shape index: {}]
  %s10 = inlined_call_operand.vmem [shape: f32[2,1,64], index: 10, kind: input, shape index: {}]
  %s11 = inlined_call_operand.vmem [shape: f32[2,1,64], index: 11, kind: input, shape index: {}]
  %s12 = inlined_call_operand.vmem [shape: f32[2,1,64], index: 12, kind: input, shape index: {}]
  %s13 = inlined_call_operand.vmem [shape: bf16[2,64,256], index: 13, kind: input, shape index: {}]
  %s14 = inlined_call_operand.vmem [shape: f32[2,1,256], index: 14, kind: input, shape index: {}]
  %s15 = inlined_call_operand.vmem [shape: bf16[2,256,64], index: 15, kind: input, shape index: {}]
  %s16 = inlined_call_operand.vmem [shape: f32[2,1,64], index: 16, kind: input, shape index: {}]
  %s17 = inlined_call_operand.vmem [shape: f32[1,64], index: 17, kind: input, shape index: {}]
  %s18 = inlined_call_operand.vmem [shape: f32[1,64], index: 18, kind: input, shape index: {}]
  %s19 = inlined_call_operand.vmem [shape: bf16[64,128], index: 19, kind: input, shape index: {}]
  %s20 = inlined_call_operand.vmem [shape: f32[3,8,128], index: 20, kind: output, shape index: {}]
  %s21 = sld [smem:[#allocation0]]
  $region113: #{define_ref_image_style_prototype.1} parent=0
    _
  %s23 = ssub.s32 1, %s21
  %s24 = scalar_select 0, %s23, %s21
  loop: start=0, step=1, limit=5
  $region2: #{define_ref_image_style_prototype.1} parent=0 // loop_pre_header
    _
  $region3: #{define_ref_image_style_prototype.1} parent=0 // loop_header
    %s26 = sphi 0, %s30
    %p27 = scmp.ge.s32.totalorder %s26, 5
    %s36 = sphi 0, %s38
    %s39 = sphi 0, %s36
    %s40 = sphi 0, %s39
    %s56 = sphi 0, %s40
    %s60 = sphi 0, %s60
    %s62 = sphi 0, %s60
    %s63 = sphi 0, %s62
    %s77 = sphi 0, %s63
    %s81 = sphi 0, %s81
    %s83 = sphi 0, %s81
    %s84 = sphi 0, %s83
    %s98 = sphi 0, %s84
    %s102 = sphi 0, %s102
    %s104 = sphi 0, %s102
    %s105 = sphi 0, %s104
    %s119 = sphi 0, %s105
    %s123 = sphi 0, %s123
    %s125 = sphi 0, %s123
    %s126 = sphi 0, %s125
    %s140 = sphi 0, %s126
    %s144 = sphi 0, %s144
    %s146 = sphi 0, %s144
    %s147 = sphi 0, %s146
    %s161 = sphi 0, %s147
    %s165 = sphi 0, %s165
    %s167 = sphi 0, %s165
    %s168 = sphi 0, %s167
    %s182 = sphi 0, %s168
    %s186 = sphi 0, %s186
    %s188 = sphi 0, %s186
    %s189 = sphi 0, %s188
    %s203 = sphi 0, %s189
    %s207 = sphi 0, %s207
    %s209 = sphi 0, %s207
    %s210 = sphi 0, %s209
    %s224 = sphi 0, %s210
    %s228 = sphi 0, %s228
    %s230 = sphi 0, %s228
    %s231 = sphi 0, %s230
    %s245 = sphi 0, %s231
    %s249 = sphi 0, %s249
    %s251 = sphi 0, %s249
    %s252 = sphi 0, %s251
    %s266 = sphi 0, %s252
    %s270 = sphi 0, %s270
    %s272 = sphi 0, %s270
    %s273 = sphi 0, %s272
    %s287 = sphi 0, %s273
    %s291 = sphi 0, %s291
    %s293 = sphi 0, %s291
    %s294 = sphi 0, %s293
    %s308 = sphi 0, %s294
    %s312 = sphi 0, %s312
    %s314 = sphi 0, %s312
    %s315 = sphi 0, %s314
    %s329 = sphi 0, %s315
    %s333 = sphi 0, %s333
    %s335 = sphi 0, %s333
    %s336 = sphi 0, %s335
    %s350 = sphi 0, %s336
    %s354 = sphi 0, %s354
    %s356 = sphi 0, %s354
    %s357 = sphi 0, %s356
    %s371 = sphi 0, %s357
    %s375 = sphi 0, %s375
    %s377 = sphi 0, %s375
    %s378 = sphi 0, %s377
    %s392 = sphi 0, %s378
    %s396 = sphi 0, %s396
    %s398 = sphi 0, %s396
    %s399 = sphi 0, %s398
    %s413 = sphi 0, %s399
    %s417 = sphi 0, %s417
    %s419 = sphi 0, %s417
    %s420 = sphi 0, %s419
    %s434 = sphi 0, %s420
    %s438 = sphi 0, %s438
    %s440 = sphi 0, %s438
    %s441 = sphi 0, %s440
    %s455 = sphi 0, %s441
    %s461 = sphi 0, %s463
    %s464 = sphi 0, %s461
    %s465 = sphi 0, %s464
    %s481 = sphi 0, %s465
  $region4: #{define_ref_image_style_prototype.1} parent=0 // loop_header_branch
    %29 = sbr.rel (%p27) target = $region8
  $region5: #{define_ref_image_style_prototype.1} parent=0 // loop_body
    %s31 = ssub.s32 %s26, 1
    %s32 = ssub.s32 %s26, 2
    %s33 = sadd.s32 %s26, 1
    %s34 = ssub.s32 %s26, %s33
    %p35 = scmp.eq.s32.totalorder %s34, 0
    %s37 = sadd.s32 %s36, 1
    %s38 = scalar_select %p35, %s36, %s37
    %p41 = pneg %p35
    %p42 = scmp.eq.s32.totalorder %s26, 2
    %p43 = por %p41, %p42
    %p44 = scmp.ne.s32.totalorder %s36, %s39
    %p45 = scmp.eq.s32.totalorder %s26, 0
    %p46 = por %p44, %p45
    %p47 = scmp.ne.s32.totalorder %s36, %s39
    %p48 = scmp.eq.s32.totalorder %s31, 2
    %p49 = por %p47, %p48
    %p50 = scmp.ne.s32.totalorder %s39, %s40
    %p51 = scmp.eq.s32.totalorder %s31, 0
    %p52 = por %p50, %p51
    %p53 = scmp.ne.s32.totalorder %s39, %s40
    %p54 = scmp.eq.s32.totalorder %s32, 2
    %p55 = por %p53, %p54
    %p57 = scmp.ne.s32.totalorder %s40, %s56
    %p58 = scmp.eq.s32.totalorder %s32, 0
    %p59 = por %p57, %p58
    %s61 = sadd.s32 %s60, 1
    %p64 = scmp.eq.s32.totalorder %s26, 2
    %p65 = scmp.ne.s32.totalorder %s60, %s62
    %p66 = scmp.eq.s32.totalorder %s26, 0
    %p67 = por %p65, %p66
    %p68 = scmp.ne.s32.totalorder %s60, %s62
    %p69 = scmp.eq.s32.totalorder %s31, 2
    %p70 = por %p68, %p69
    %p71 = scmp.ne.s32.totalorder %s62, %s63
    %p72 = scmp.eq.s32.totalorder %s31, 0
    %p73 = por %p71, %p72
    %p74 = scmp.ne.s32.totalorder %s62, %s63
    %p75 = scmp.eq.s32.totalorder %s32, 2
    %p76 = por %p74, %p75
    %p78 = scmp.ne.s32.totalorder %s63, %s77
    %p79 = scmp.eq.s32.totalorder %s32, 0
    %p80 = por %p78, %p79
    %s82 = sadd.s32 %s81, 1
    %p85 = scmp.eq.s32.totalorder %s26, 2
    %p86 = scmp.ne.s32.totalorder %s81, %s83
    %p87 = scmp.eq.s32.totalorder %s26, 0
    %p88 = por %p86, %p87
    %p89 = scmp.ne.s32.totalorder %s81, %s83
    %p90 = scmp.eq.s32.totalorder %s31, 2
    %p91 = por %p89, %p90
    %p92 = scmp.ne.s32.totalorder %s83, %s84
    %p93 = scmp.eq.s32.totalorder %s31, 0
    %p94 = por %p92, %p93
    %p95 = scmp.ne.s32.totalorder %s83, %s84
    %p96 = scmp.eq.s32.totalorder %s32, 2
    %p97 = por %p95, %p96
    %p99 = scmp.ne.s32.totalorder %s84, %s98
    %p100 = scmp.eq.s32.totalorder %s32, 0
    %p101 = por %p99, %p100
    %s103 = sadd.s32 %s102, 1
    %p106 = scmp.eq.s32.totalorder %s26, 2
    %p107 = scmp.ne.s32.totalorder %s102, %s104
    %p108 = scmp.eq.s32.totalorder %s26, 0
    %p109 = por %p107, %p108
    %p110 = scmp.ne.s32.totalorder %s102, %s104
    %p111 = scmp.eq.s32.totalorder %s31, 2
    %p112 = por %p110, %p111
    %p113 = scmp.ne.s32.totalorder %s104, %s105
    %p114 = scmp.eq.s32.totalorder %s31, 0
    %p115 = por %p113, %p114
    %p116 = scmp.ne.s32.totalorder %s104, %s105
    %p117 = scmp.eq.s32.totalorder %s32, 2
    %p118 = por %p116, %p117
    %p120 = scmp.ne.s32.totalorder %s105, %s119
    %p121 = scmp.eq.s32.totalorder %s32, 0
    %p122 = por %p120, %p121
    %s124 = sadd.s32 %s123, 1
    %p127 = scmp.eq.s32.totalorder %s26, 2
    %p128 = scmp.ne.s32.totalorder %s123, %s125
    %p129 = scmp.eq.s32.totalorder %s26, 0
    %p130 = por %p128, %p129
    %p131 = scmp.ne.s32.totalorder %s123, %s125
    %p132 = scmp.eq.s32.totalorder %s31, 2
    %p133 = por %p131, %p132
    %p134 = scmp.ne.s32.totalorder %s125, %s126
    %p135 = scmp.eq.s32.totalorder %s31, 0
    %p136 = por %p134, %p135
    %p137 = scmp.ne.s32.totalorder %s125, %s126
    %p138 = scmp.eq.s32.totalorder %s32, 2
    %p139 = por %p137, %p138
    %p141 = scmp.ne.s32.totalorder %s126, %s140
    %p142 = scmp.eq.s32.totalorder %s32, 0
    %p143 = por %p141, %p142
    %s145 = sadd.s32 %s144, 1
    %p148 = scmp.eq.s32.totalorder %s26, 2
    %p149 = scmp.ne.s32.totalorder %s144, %s146
    %p150 = scmp.eq.s32.totalorder %s26, 0
    %p151 = por %p149, %p150
    %p152 = scmp.ne.s32.totalorder %s144, %s146
    %p153 = scmp.eq.s32.totalorder %s31, 2
    %p154 = por %p152, %p153
    %p155 = scmp.ne.s32.totalorder %s146, %s147
    %p156 = scmp.eq.s32.totalorder %s31, 0
    %p157 = por %p155, %p156
    %p158 = scmp.ne.s32.totalorder %s146, %s147
    %p159 = scmp.eq.s32.totalorder %s32, 2
    %p160 = por %p158, %p159
    %p162 = scmp.ne.s32.totalorder %s147, %s161
    %p163 = scmp.eq.s32.totalorder %s32, 0
    %p164 = por %p162, %p163
    %s166 = sadd.s32 %s165, 1
    %p169 = scmp.eq.s32.totalorder %s26, 2
    %p170 = scmp.ne.s32.totalorder %s165, %s167
    %p171 = scmp.eq.s32.totalorder %s26, 0
    %p172 = por %p170, %p171
    %p173 = scmp.ne.s32.totalorder %s165, %s167
    %p174 = scmp.eq.s32.totalorder %s31, 2
    %p175 = por %p173, %p174
    %p176 = scmp.ne.s32.totalorder %s167, %s168
    %p177 = scmp.eq.s32.totalorder %s31, 0
    %p178 = por %p176, %p177
    %p179 = scmp.ne.s32.totalorder %s167, %s168
    %p180 = scmp.eq.s32.totalorder %s32, 2
    %p181 = por %p179, %p180
    %p183 = scmp.ne.s32.totalorder %s168, %s182
    %p184 = scmp.eq.s32.totalorder %s32, 0
    %p185 = por %p183, %p184
    %s187 = sadd.s32 %s186, 1
    %p190 = scmp.eq.s32.totalorder %s26, 2
    %p191 = scmp.ne.s32.totalorder %s186, %s188
    %p192 = scmp.eq.s32.totalorder %s26, 0
    %p193 = por %p191, %p192
    %p194 = scmp.ne.s32.totalorder %s186, %s188
    %p195 = scmp.eq.s32.totalorder %s31, 2
    %p196 = por %p194, %p195
    %p197 = scmp.ne.s32.totalorder %s188, %s189
    %p198 = scmp.eq.s32.totalorder %s31, 0
    %p199 = por %p197, %p198
    %p200 = scmp.ne.s32.totalorder %s188, %s189
    %p201 = scmp.eq.s32.totalorder %s32, 2
    %p202 = por %p200, %p201
    %p204 = scmp.ne.s32.totalorder %s189, %s203
    %p205 = scmp.eq.s32.totalorder %s32, 0
    %p206 = por %p204, %p205
    %s208 = sadd.s32 %s207, 1
    %p211 = scmp.eq.s32.totalorder %s26, 2
    %p212 = scmp.ne.s32.totalorder %s207, %s209
    %p213 = scmp.eq.s32.totalorder %s26, 0
    %p214 = por %p212, %p213
    %p215 = scmp.ne.s32.totalorder %s207, %s209
    %p216 = scmp.eq.s32.totalorder %s31, 2
    %p217 = por %p215, %p216
    %p218 = scmp.ne.s32.totalorder %s209, %s210
    %p219 = scmp.eq.s32.totalorder %s31, 0
    %p220 = por %p218, %p219
    %p221 = scmp.ne.s32.totalorder %s209, %s210
    %p222 = scmp.eq.s32.totalorder %s32, 2
    %p223 = por %p221, %p222
    %p225 = scmp.ne.s32.totalorder %s210, %s224
    %p226 = scmp.eq.s32.totalorder %s32, 0
    %p227 = por %p225, %p226
    %s229 = sadd.s32 %s228, 1
    %p232 = scmp.eq.s32.totalorder %s26, 2
    %p233 = scmp.ne.s32.totalorder %s228, %s230
    %p234 = scmp.eq.s32.totalorder %s26, 0
    %p235 = por %p233, %p234
    %p236 = scmp.ne.s32.totalorder %s228, %s230
    %p237 = scmp.eq.s32.totalorder %s31, 2
    %p238 = por %p236, %p237
    %p239 = scmp.ne.s32.totalorder %s230, %s231
    %p240 = scmp.eq.s32.totalorder %s31, 0
    %p241 = por %p239, %p240
    %p242 = scmp.ne.s32.totalorder %s230, %s231
    %p243 = scmp.eq.s32.totalorder %s32, 2
    %p244 = por %p242, %p243
    %p246 = scmp.ne.s32.totalorder %s231, %s245
    %p247 = scmp.eq.s32.totalorder %s32, 0
    %p248 = por %p246, %p247
    %s250 = sadd.s32 %s249, 1
    %p253 = scmp.eq.s32.totalorder %s26, 2
    %p254 = scmp.ne.s32.totalorder %s249, %s251
    %p255 = scmp.eq.s32.totalorder %s26, 0
    %p256 = por %p254, %p255
    %p257 = scmp.ne.s32.totalorder %s249, %s251
    %p258 = scmp.eq.s32.totalorder %s31, 2
    %p259 = por %p257, %p258
    %p260 = scmp.ne.s32.totalorder %s251, %s252
    %p261 = scmp.eq.s32.totalorder %s31, 0
    %p262 = por %p260, %p261
    %p263 = scmp.ne.s32.totalorder %s251, %s252
    %p264 = scmp.eq.s32.totalorder %s32, 2
    %p265 = por %p263, %p264
    %p267 = scmp.ne.s32.totalorder %s252, %s266
    %p268 = scmp.eq.s32.totalorder %s32, 0
    %p269 = por %p267, %p268
    %s271 = sadd.s32 %s270, 1
    %p274 = scmp.eq.s32.totalorder %s26, 2
    %p275 = scmp.ne.s32.totalorder %s270, %s272
    %p276 = scmp.eq.s32.totalorder %s26, 0
    %p277 = por %p275, %p276
    %p278 = scmp.ne.s32.totalorder %s270, %s272
    %p279 = scmp.eq.s32.totalorder %s31, 2
    %p280 = por %p278, %p279
    %p281 = scmp.ne.s32.totalorder %s272, %s273
    %p282 = scmp.eq.s32.totalorder %s31, 0
    %p283 = por %p281, %p282
    %p284 = scmp.ne.s32.totalorder %s272, %s273
    %p285 = scmp.eq.s32.totalorder %s32, 2
    %p286 = por %p284, %p285
    %p288 = scmp.ne.s32.totalorder %s273, %s287
    %p289 = scmp.eq.s32.totalorder %s32, 0
    %p290 = por %p288, %p289
    %s292 = sadd.s32 %s291, 1
    %p295 = scmp.eq.s32.totalorder %s26, 2
    %p296 = scmp.ne.s32.totalorder %s291, %s293
    %p297 = scmp.eq.s32.totalorder %s26, 0
    %p298 = por %p296, %p297
    %p299 = scmp.ne.s32.totalorder %s291, %s293
    %p300 = scmp.eq.s32.totalorder %s31, 2
    %p301 = por %p299, %p300
    %p302 = scmp.ne.s32.totalorder %s293, %s294
    %p303 = scmp.eq.s32.totalorder %s31, 0
    %p304 = por %p302, %p303
    %p305 = scmp.ne.s32.totalorder %s293, %s294
    %p306 = scmp.eq.s32.totalorder %s32, 2
    %p307 = por %p305, %p306
    %p309 = scmp.ne.s32.totalorder %s294, %s308
    %p310 = scmp.eq.s32.totalorder %s32, 0
    %p311 = por %p309, %p310
    %s313 = sadd.s32 %s312, 1
    %p316 = scmp.eq.s32.totalorder %s26, 2
    %p317 = scmp.ne.s32.totalorder %s312, %s314
    %p318 = scmp.eq.s32.totalorder %s26, 0
    %p319 = por %p317, %p318
    %p320 = scmp.ne.s32.totalorder %s312, %s314
    %p321 = scmp.eq.s32.totalorder %s31, 2
    %p322 = por %p320, %p321
    %p323 = scmp.ne.s32.totalorder %s314, %s315
    %p324 = scmp.eq.s32.totalorder %s31, 0
    %p325 = por %p323, %p324
    %p326 = scmp.ne.s32.totalorder %s314, %s315
    %p327 = scmp.eq.s32.totalorder %s32, 2
    %p328 = por %p326, %p327
    %p330 = scmp.ne.s32.totalorder %s315, %s329
    %p331 = scmp.eq.s32.totalorder %s32, 0
    %p332 = por %p330, %p331
    %s334 = sadd.s32 %s333, 1
    %p337 = scmp.eq.s32.totalorder %s26, 2
    %p338 = scmp.ne.s32.totalorder %s333, %s335
    %p339 = scmp.eq.s32.totalorder %s26, 0
    %p340 = por %p338, %p339
    %p341 = scmp.ne.s32.totalorder %s333, %s335
    %p342 = scmp.eq.s32.totalorder %s31, 2
    %p343 = por %p341, %p342
    %p344 = scmp.ne.s32.totalorder %s335, %s336
    %p345 = scmp.eq.s32.totalorder %s31, 0
    %p346 = por %p344, %p345
    %p347 = scmp.ne.s32.totalorder %s335, %s336
    %p348 = scmp.eq.s32.totalorder %s32, 2
    %p349 = por %p347, %p348
    %p351 = scmp.ne.s32.totalorder %s336, %s350
    %p352 = scmp.eq.s32.totalorder %s32, 0
    %p353 = por %p351, %p352
    %s355 = sadd.s32 %s354, 1
    %p358 = scmp.eq.s32.totalorder %s26, 2
    %p359 = scmp.ne.s32.totalorder %s354, %s356
    %p360 = scmp.eq.s32.totalorder %s26, 0
    %p361 = por %p359, %p360
    %p362 = scmp.ne.s32.totalorder %s354, %s356
    %p363 = scmp.eq.s32.totalorder %s31, 2
    %p364 = por %p362, %p363
    %p365 = scmp.ne.s32.totalorder %s356, %s357
    %p366 = scmp.eq.s32.totalorder %s31, 0
    %p367 = por %p365, %p366
    %p368 = scmp.ne.s32.totalorder %s356, %s357
    %p369 = scmp.eq.s32.totalorder %s32, 2
    %p370 = por %p368, %p369
    %p372 = scmp.ne.s32.totalorder %s357, %s371
    %p373 = scmp.eq.s32.totalorder %s32, 0
    %p374 = por %p372, %p373
    %s376 = sadd.s32 %s375, 1
    %p379 = scmp.eq.s32.totalorder %s26, 2
    %p380 = scmp.ne.s32.totalorder %s375, %s377
    %p381 = scmp.eq.s32.totalorder %s26, 0
    %p382 = por %p380, %p381
    %p383 = scmp.ne.s32.totalorder %s375, %s377
    %p384 = scmp.eq.s32.totalorder %s31, 2
    %p385 = por %p383, %p384
    %p386 = scmp.ne.s32.totalorder %s377, %s378
    %p387 = scmp.eq.s32.totalorder %s31, 0
    %p388 = por %p386, %p387
    %p389 = scmp.ne.s32.totalorder %s377, %s378
    %p390 = scmp.eq.s32.totalorder %s32, 2
    %p391 = por %p389, %p390
    %p393 = scmp.ne.s32.totalorder %s378, %s392
    %p394 = scmp.eq.s32.totalorder %s32, 0
    %p395 = por %p393, %p394
    %s397 = sadd.s32 %s396, 1
    %p400 = scmp.eq.s32.totalorder %s26, 2
    %p401 = scmp.ne.s32.totalorder %s396, %s398
    %p402 = scmp.eq.s32.totalorder %s26, 0
    %p403 = por %p401, %p402
    %p404 = scmp.ne.s32.totalorder %s396, %s398
    %p405 = scmp.eq.s32.totalorder %s31, 2
    %p406 = por %p404, %p405
    %p407 = scmp.ne.s32.totalorder %s398, %s399
    %p408 = scmp.eq.s32.totalorder %s31, 0
    %p409 = por %p407, %p408
    %p410 = scmp.ne.s32.totalorder %s398, %s399
    %p411 = scmp.eq.s32.totalorder %s32, 2
    %p412 = por %p410, %p411
    %p414 = scmp.ne.s32.totalorder %s399, %s413
    %p415 = scmp.eq.s32.totalorder %s32, 0
    %p416 = por %p414, %p415
    %s418 = sadd.s32 %s417, 1
    %p421 = scmp.eq.s32.totalorder %s26, 2
    %p422 = scmp.ne.s32.totalorder %s417, %s419
    %p423 = scmp.eq.s32.totalorder %s26, 0
    %p424 = por %p422, %p423
    %p425 = scmp.ne.s32.totalorder %s417, %s419
    %p426 = scmp.eq.s32.totalorder %s31, 2
    %p427 = por %p425, %p426
    %p428 = scmp.ne.s32.totalorder %s419, %s420
    %p429 = scmp.eq.s32.totalorder %s31, 0
    %p430 = por %p428, %p429
    %p431 = scmp.ne.s32.totalorder %s419, %s420
    %p432 = scmp.eq.s32.totalorder %s32, 2
    %p433 = por %p431, %p432
    %p435 = scmp.ne.s32.totalorder %s420, %s434
    %p436 = scmp.eq.s32.totalorder %s32, 0
    %p437 = por %p435, %p436
    %s439 = sadd.s32 %s438, 1
    %p442 = scmp.eq.s32.totalorder %s26, 2
    %p443 = scmp.ne.s32.totalorder %s438, %s440
    %p444 = scmp.eq.s32.totalorder %s26, 0
    %p445 = por %p443, %p444
    %p446 = scmp.ne.s32.totalorder %s438, %s440
    %p447 = scmp.eq.s32.totalorder %s31, 2
    %p448 = por %p446, %p447
    %p449 = scmp.ne.s32.totalorder %s440, %s441
    %p450 = scmp.eq.s32.totalorder %s31, 0
    %p451 = por %p449, %p450
    %p452 = scmp.ne.s32.totalorder %s440, %s441
    %p453 = scmp.eq.s32.totalorder %s32, 2
    %p454 = por %p452, %p453
    %p456 = scmp.ne.s32.totalorder %s441, %s455
    %p457 = scmp.eq.s32.totalorder %s32, 0
    %p458 = por %p456, %p457
    %s459 = ssub.s32 %s26, %s33
    %p460 = scmp.eq.s32.totalorder %s459, 0
    %s462 = sadd.s32 %s461, 1
    %s463 = scalar_select %p460, %s461, %s462
    %p466 = pneg %p460
    %p467 = scmp.eq.s32.totalorder %s26, 2
    %p468 = por %p466, %p467
    %p469 = scmp.ne.s32.totalorder %s461, %s464
    %p470 = scmp.eq.s32.totalorder %s26, 0
    %p471 = por %p469, %p470
    %p472 = scmp.ne.s32.totalorder %s461, %s464
    %p473 = scmp.eq.s32.totalorder %s31, 2
    %p474 = por %p472, %p473
    %p475 = scmp.ne.s32.totalorder %s464, %s465
    %p476 = scmp.eq.s32.totalorder %s31, 0
    %p477 = por %p475, %p476
    %p478 = scmp.ne.s32.totalorder %s464, %s465
    %p479 = scmp.eq.s32.totalorder %s32, 2
    %p480 = por %p478, %p479
    %p482 = scmp.ne.s32.totalorder %s465, %s481
    %p483 = scmp.eq.s32.totalorder %s32, 0
    %p484 = por %p482, %p483
    %p485 = scmp.le.s32.totalorder 1, %s26
    %p486 = scmp.lt.s32.totalorder %s26, 4
    %p487 = pnand %p485, %p486
    %p488 = pneg %p487
    // Predicated region
    $region9: #{define_ref_image_style_prototype.1} parent=5 // pred_check
      _
    $region10: #{define_ref_image_style_prototype.1} parent=5 // pred_check_branch
      %490 = sbr.rel (%p487) target = $region12
    $region11: #{define_ref_image_style_prototype.1} parent=5 // pred_region
      %s491 = ssub.s32 %s26, 1
      // Predicated region
      $region13: #{define_ref_image_style_prototype.1} parent=11 // pred_check
        %p492 = pneg %p73
      $region14: #{define_ref_image_style_prototype.1} parent=11 // pred_check_branch
        %494 = sbr.rel (%p492) target = $region16
      $region15: #{define_ref_image_style_prototype.1} parent=11 // pred_region
        _
      $region16: #{define_ref_image_style_prototype.1} parent=11 // pred_fallthru
        _
      // Predicated region
      $region17: #{define_ref_image_style_prototype.1} parent=11 // pred_check
        %p495 = pneg %p94
      $region18: #{define_ref_image_style_prototype.1} parent=11 // pred_check_branch
        %497 = sbr.rel (%p495) target = $region20
      $region19: #{define_ref_image_style_prototype.1} parent=11 // pred_region
        _
      $region20: #{define_ref_image_style_prototype.1} parent=11 // pred_fallthru
        _
      // Predicated region
      $region21: #{define_ref_image_style_prototype.1} parent=11 // pred_check
        %p498 = pneg %p115
      $region22: #{define_ref_image_style_prototype.1} parent=11 // pred_check_branch
        %500 = sbr.rel (%p498) target = $region24
      $region23: #{define_ref_image_style_prototype.1} parent=11 // pred_region
        _
      $region24: #{define_ref_image_style_prototype.1} parent=11 // pred_fallthru
        _
      // Predicated region
      $region25: #{define_ref_image_style_prototype.1} parent=11 // pred_check
        %p501 = pneg %p136
      $region26: #{define_ref_image_style_prototype.1} parent=11 // pred_check_branch
        %503 = sbr.rel (%p501) target = $region28
      $region27: #{define_ref_image_style_prototype.1} parent=11 // pred_region
        _
      $region28: #{define_ref_image_style_prototype.1} parent=11 // pred_fallthru
        _
      // Predicated region
      $region29: #{define_ref_image_style_prototype.1} parent=11 // pred_check
        %p504 = pneg %p157
      $region30: #{define_ref_image_style_prototype.1} parent=11 // pred_check_branch
        %506 = sbr.rel (%p504) target = $region32
      $region31: #{define_ref_image_style_prototype.1} parent=11 // pred_region
        _
      $region32: #{define_ref_image_style_prototype.1} parent=11 // pred_fallthru
        _
      // Predicated region
      $region33: #{define_ref_image_style_prototype.1} parent=11 // pred_check
        %p507 = pneg %p178
      $region34: #{define_ref_image_style_prototype.1} parent=11 // pred_check_branch
        %509 = sbr.rel (%p507) target = $region36
      $region35: #{define_ref_image_style_prototype.1} parent=11 // pred_region
        _
      $region36: #{define_ref_image_style_prototype.1} parent=11 // pred_fallthru
        _
      // Predicated region
      $region37: #{define_ref_image_style_prototype.1} parent=11 // pred_check
        %p510 = pneg %p199
      $region38: #{define_ref_image_style_prototype.1} parent=11 // pred_check_branch
        %512 = sbr.rel (%p510) target = $region40
      $region39: #{define_ref_image_style_prototype.1} parent=11 // pred_region
        _
      $region40: #{define_ref_image_style_prototype.1} parent=11 // pred_fallthru
        _
      // Predicated region
      $region41: #{define_ref_image_style_prototype.1} parent=11 // pred_check
        %p513 = pneg %p220
      $region42: #{define_ref_image_style_prototype.1} parent=11 // pred_check_branch
        %515 = sbr.rel (%p513) target = $region44
      $region43: #{define_ref_image_style_prototype.1} parent=11 // pred_region
        _
      $region44: #{define_ref_image_style_prototype.1} parent=11 // pred_fallthru
        _
      // Predicated region
      $region45: #{define_ref_image_style_prototype.1} parent=11 // pred_check
        %p516 = pneg %p241
      $region46: #{define_ref_image_style_prototype.1} parent=11 // pred_check_branch
        %518 = sbr.rel (%p516) target = $region48
      $region47: #{define_ref_image_style_prototype.1} parent=11 // pred_region
        _
      $region48: #{define_ref_image_style_prototype.1} parent=11 // pred_fallthru
        _
      // Predicated region
      $region49: #{define_ref_image_style_prototype.1} parent=11 // pred_check
        %p519 = pneg %p262
      $region50: #{define_ref_image_style_prototype.1} parent=11 // pred_check_branch
        %521 = sbr.rel (%p519) target = $region52
      $region51: #{define_ref_image_style_prototype.1} parent=11 // pred_region
        _
      $region52: #{define_ref_image_style_prototype.1} parent=11 // pred_fallthru
        _
      // Predicated region
      $region53: #{define_ref_image_style_prototype.1} parent=11 // pred_check
        %p522 = pneg %p283
      $region54: #{define_ref_image_style_prototype.1} parent=11 // pred_check_branch
        %524 = sbr.rel (%p522) target = $region56
      $region55: #{define_ref_image_style_prototype.1} parent=11 // pred_region
        _
      $region56: #{define_ref_image_style_prototype.1} parent=11 // pred_fallthru
        _
      // Predicated region
      $region57: #{define_ref_image_style_prototype.1} parent=11 // pred_check
        %p525 = pneg %p304
      $region58: #{define_ref_image_style_prototype.1} parent=11 // pred_check_branch
        %527 = sbr.rel (%p525) target = $region60
      $region59: #{define_ref_image_style_prototype.1} parent=11 // pred_region
        _
      $region60: #{define_ref_image_style_prototype.1} parent=11 // pred_fallthru
        _
      // Predicated region
      $region61: #{define_ref_image_style_prototype.1} parent=11 // pred_check
        %p528 = pneg %p325
      $region62: #{define_ref_image_style_prototype.1} parent=11 // pred_check_branch
        %530 = sbr.rel (%p528) target = $region64
      $region63: #{define_ref_image_style_prototype.1} parent=11 // pred_region
        _
      $region64: #{define_ref_image_style_prototype.1} parent=11 // pred_fallthru
        _
      // Predicated region
      $region65: #{define_ref_image_style_prototype.1} parent=11 // pred_check
        %p531 = pneg %p346
      $region66: #{define_ref_image_style_prototype.1} parent=11 // pred_check_branch
        %533 = sbr.rel (%p531) target = $region68
      $region67: #{define_ref_image_style_prototype.1} parent=11 // pred_region
        _
      $region68: #{define_ref_image_style_prototype.1} parent=11 // pred_fallthru
        _
      // Predicated region
      $region69: #{define_ref_image_style_prototype.1} parent=11 // pred_check
        %p534 = pneg %p367
      $region70: #{define_ref_image_style_prototype.1} parent=11 // pred_check_branch
        %536 = sbr.rel (%p534) target = $region72
      $region71: #{define_ref_image_style_prototype.1} parent=11 // pred_region
        _
      $region72: #{define_ref_image_style_prototype.1} parent=11 // pred_fallthru
        _
      // Predicated region
      $region73: #{define_ref_image_style_prototype.1} parent=11 // pred_check
        %p537 = pneg %p388
      $region74: #{define_ref_image_style_prototype.1} parent=11 // pred_check_branch
        %539 = sbr.rel (%p537) target = $region76
      $region75: #{define_ref_image_style_prototype.1} parent=11 // pred_region
        _
      $region76: #{define_ref_image_style_prototype.1} parent=11 // pred_fallthru
        _
      // Predicated region
      $region77: #{define_ref_image_style_prototype.1} parent=11 // pred_check
        %p540 = pneg %p409
      $region78: #{define_ref_image_style_prototype.1} parent=11 // pred_check_branch
        %542 = sbr.rel (%p540) target = $region80
      $region79: #{define_ref_image_style_prototype.1} parent=11 // pred_region
        _
      $region80: #{define_ref_image_style_prototype.1} parent=11 // pred_fallthru
        _
      // Predicated region
      $region81: #{define_ref_image_style_prototype.1} parent=11 // pred_check
        %p543 = pneg %p430
      $region82: #{define_ref_image_style_prototype.1} parent=11 // pred_check_branch
        %545 = sbr.rel (%p543) target = $region84
      $region83: #{define_ref_image_style_prototype.1} parent=11 // pred_region
        _
      $region84: #{define_ref_image_style_prototype.1} parent=11 // pred_fallthru
        _
      // Predicated region
      $region85: #{define_ref_image_style_prototype.1} parent=11 // pred_check
        %p546 = pneg %p451
      $region86: #{define_ref_image_style_prototype.1} parent=11 // pred_check_branch
        %548 = sbr.rel (%p546) target = $region88
      $region87: #{define_ref_image_style_prototype.1} parent=11 // pred_region
        _
      $region88: #{define_ref_image_style_prototype.1} parent=11 // pred_fallthru
        _
    $region12: #{define_ref_image_style_prototype.1} parent=5 // pred_fallthru
      _
    %p549 = scmp.lt.s32.totalorder %s26, 3
    // Predicated region
    $region89: #{define_ref_image_style_prototype.1} parent=5 // pred_check
      %p550 = pneg %p549
    $region90: #{define_ref_image_style_prototype.1} parent=5 // pred_check_branch
      %552 = sbr.rel (%p550) target = $region92
    $region91: #{define_ref_image_style_prototype.1} parent=5 // pred_region
      // Predicated region
      $region93: #{define_ref_image_style_prototype.1} parent=91 // pred_check
        %p553 = pneg %p46
      $region94: #{define_ref_image_style_prototype.1} parent=91 // pred_check_branch
        %555 = sbr.rel (%p553) target = $region96
      $region95: #{define_ref_image_style_prototype.1} parent=91 // pred_region
        %p556 = scmp.lt.s32.totalorder %s26, 2
        %s557 = scalar_select %p556, %s26, 2
        %s558 = smul.addr %s557, 6
        %s559 = smul.addr %s558, 4
        %s560 = scalar_lea.vmem %s0, %s559
      $region96: #{define_ref_image_style_prototype.1} parent=91 // pred_fallthru
        _
    $region92: #{define_ref_image_style_prototype.1} parent=5 // pred_fallthru
      _
    %p561 = scmp.le.s32.totalorder 1, %s26
    %p562 = scmp.lt.s32.totalorder %s26, 4
    %p563 = pnand %p561, %p562
    %p564 = pneg %p563
    // Predicated region
    $region97: #{define_ref_image_style_prototype.1} parent=5 // pred_check
      _
    $region98: #{define_ref_image_style_prototype.1} parent=5 // pred_check_branch
      %566 = sbr.rel (%p563) target = $region100
    $region99: #{define_ref_image_style_prototype.1} parent=5 // pred_region
      %s567 = ssub.s32 %s26, 1
      %p568 = scmp.lt.s32.totalorder %s31, 2
      %s569 = scalar_select %p568, %s31, 2
      %s570 = smul.addr %s569, 6
      %s571 = smul.addr %s570, 4
      %s572 = scalar_lea.vmem %s0, %s571
      %p573 = pneg %p52
      %p574 = pneg %p49
      %p575 = pneg %p73
      %p576 = pneg %p70
      %p577 = pneg %p94
      %p578 = pneg %p91
      %p579 = pneg %p115
      %p580 = pneg %p112
      %p581 = pneg %p136
      %p582 = pneg %p133
      %p583 = pneg %p157
      %p584 = pneg %p154
      %p585 = pneg %p178
      %p586 = pneg %p175
      %p587 = pneg %p199
      %p588 = pneg %p196
      %p589 = pneg %p220
      %p590 = pneg %p217
      %p591 = pneg %p241
      %p592 = pneg %p238
      %p593 = pneg %p262
      %p594 = pneg %p259
      %p595 = pneg %p283
      %p596 = pneg %p280
      %p597 = pneg %p304
      %p598 = pneg %p301
      %p599 = pneg %p325
      %p600 = pneg %p322
      %p601 = pneg %p346
      %p602 = pneg %p343
      %p603 = pneg %p367
      %p604 = pneg %p364
      %p605 = pneg %p388
      %p606 = pneg %p385
      %p607 = pneg %p409
      %p608 = pneg %p406
      %p609 = pneg %p430
      %p610 = pneg %p427
      %p611 = pneg %p451
      %p612 = pneg %p448
      %p613 = pneg %p477
      %p614 = pneg %p474
      %p615 = scmp.lt.s32.totalorder %s31, 2
      %s616 = scalar_select %p615, %s31, 2
      %s617 = smul.addr %s616, 8
      %s618 = scalar_lea.vmem %s20, %s617
      %p619 = scmp.lt.s32.totalorder %s31, 2
      %s620 = scalar_select %p619, %s31, 2
      %s621 = smul.addr %s620, 6
      %s622 = smul.addr %s621, 4
      %s623 = scalar_lea.vmem %s0, %s622
      %p624 = scmp.lt.s32.totalorder %s31, 2
      %s625 = scalar_select %p624, %s31, 2
      %s626 = smul.addr %s625, 8
      %s627 = scalar_lea.vmem %s20, %s626
      %v629 = vlaneseq
      %v630 = vand.u32 %v629, 127
      %vm631 = vcmp.lt.s32.totalorder %v630, 5
      %v632 = vsel %vm631, 0.0, -1e+09
      %v633 = vld [vmem:[%s623] sm:$0xff]
      %v634 = vld [vmem:[%s623 + $0x8] sm:$0xff]
      %v635 = vld [vmem:[%s623 + $0x10] sm:$0xff]
      %v636 = vld [vmem:[%s2] sm:$0xf]
      %v637 = vld [vmem:[%s2 + $0x4] sm:$0xf]
      %v638 = vld [vmem:[%s2 + $0x8] sm:$0xf]
      %v639 = vld [vmem:[%s2 + $0xc] sm:$0xf]
      %v640 = vld [vmem:[%s2 + $0x10] sm:$0xf]
      %v641 = vld [vmem:[%s2 + $0x14] sm:$0xf]
      %v642 = vld [vmem:[%s2 + $0x18] sm:$0xf]
      %v643 = vld [vmem:[%s2 + $0x1c] sm:$0xf]
      %v644 = vld [vmem:[%s2 + $0x20] sm:$0xf]
      %v645 = vld [vmem:[%s2 + $0x24] sm:$0xf]
      %v646 = vld [vmem:[%s2 + $0x28] sm:$0xf]
      %v647 = vld [vmem:[%s2 + $0x2c] sm:$0xf]
      %v648 = vld [vmem:[%s2 + $0x30] sm:$0xf]
      %v649 = vld [vmem:[%s2 + $0x34] sm:$0xf]
      %v650 = vld [vmem:[%s2 + $0x38] sm:$0xf]
      %v651 = vld [vmem:[%s2 + $0x3c] sm:$0xf]
      %v652 = vld [vmem:[%s2 + $0x40] sm:$0xf]
      %v653 = vld [vmem:[%s2 + $0x44] sm:$0xf]
      %v654 = vld [vmem:[%s2 + $0x48] sm:$0xf]
      %v655 = vld [vmem:[%s2 + $0x4c] sm:$0xf]
      %v656 = vld [vmem:[%s2 + $0x50] sm:$0xf]
      %v657 = vld [vmem:[%s2 + $0x54] sm:$0xf]
      %v658 = vld [vmem:[%s2 + $0x58] sm:$0xf]
      %v659 = vld [vmem:[%s2 + $0x5c] sm:$0xf]
      %v660 = vld [vmem:[%s2 + $0x60] sm:$0xf]
      %v661 = vld [vmem:[%s2 + $0x64] sm:$0xf]
      %v662 = vld [vmem:[%s2 + $0x68] sm:$0xf]
      %v663 = vld [vmem:[%s2 + $0x6c] sm:$0xf]
      %v664 = vld [vmem:[%s2 + $0x70] sm:$0xf]
      %v665 = vld [vmem:[%s2 + $0x74] sm:$0xf]
      %v666 = vld [vmem:[%s2 + $0x78] sm:$0xf]
      %v667 = vld [vmem:[%s2 + $0x7c] sm:$0xf]
      %v668 = vld [vmem:[%s2 + $0x80] sm:$0xf]
      %v669 = vld [vmem:[%s2 + $0x84] sm:$0xf]
      %v670 = vld [vmem:[%s2 + $0x88] sm:$0xf]
      %v671 = vld [vmem:[%s2 + $0x8c] sm:$0xf]
      %v672 = vld [vmem:[%s2 + $0x90] sm:$0xf]
      %v673 = vld [vmem:[%s2 + $0x94] sm:$0xf]
      %v674 = vld [vmem:[%s2 + $0x98] sm:$0xf]
      %v675 = vld [vmem:[%s2 + $0x9c] sm:$0xf]
      %v676 = vld [vmem:[%s2 + $0xa0] sm:$0xf]
      %v677 = vld [vmem:[%s2 + $0xa4] sm:$0xf]
      %v678 = vld [vmem:[%s2 + $0xa8] sm:$0xf]
      %v679 = vld [vmem:[%s2 + $0xac] sm:$0xf]
      %v680 = vld [vmem:[%s2 + $0xb0] sm:$0xf]
      %v681 = vld [vmem:[%s2 + $0xb4] sm:$0xf]
      %v682 = vld [vmem:[%s2 + $0xb8] sm:$0xf]
      %v683 = vld [vmem:[%s2 + $0xbc] sm:$0xf]
      %v684 = vld [vmem:[%s2 + $0xc0] sm:$0xf]
      %v685 = vld [vmem:[%s2 + $0xc4] sm:$0xf]
      %v686 = vld [vmem:[%s2 + $0xc8] sm:$0xf]
      %v687 = vld [vmem:[%s2 + $0xcc] sm:$0xf]
      %v688 = vld [vmem:[%s2 + $0xd0] sm:$0xf]
      %v689 = vld [vmem:[%s2 + $0xd4] sm:$0xf]
      %v690 = vld [vmem:[%s2 + $0xd8] sm:$0xf]
      %v691 = vld [vmem:[%s2 + $0xdc] sm:$0xf]
      %v692 = vld [vmem:[%s2 + $0xe0] sm:$0xf]
      %v693 = vld [vmem:[%s2 + $0xe4] sm:$0xf]
      %v694 = vld [vmem:[%s2 + $0xe8] sm:$0xf]
      %v695 = vld [vmem:[%s2 + $0xec] sm:$0xf]
      %v696 = vld [vmem:[%s2 + $0xf0] sm:$0xf]
      %v697 = vld [vmem:[%s2 + $0xf4] sm:$0xf]
      %v698 = vld [vmem:[%s2 + $0xf8] sm:$0xf]
      %v699 = vld [vmem:[%s2 + $0xfc] sm:$0xf]
      %v700 = vld [vmem:[%s2 + $0x100] sm:$0xf]
      %v701 = vld [vmem:[%s2 + $0x104] sm:$0xf]
      %v702 = vld [vmem:[%s2 + $0x108] sm:$0xf]
      %v703 = vld [vmem:[%s2 + $0x10c] sm:$0xf]
      %v704 = vld [vmem:[%s2 + $0x110] sm:$0xf]
      %v705 = vld [vmem:[%s2 + $0x114] sm:$0xf]
      %v706 = vld [vmem:[%s2 + $0x118] sm:$0xf]
      %v707 = vld [vmem:[%s2 + $0x11c] sm:$0xf]
      %v708 = vld [vmem:[%s2 + $0x120] sm:$0xf]
      %v709 = vld [vmem:[%s2 + $0x124] sm:$0xf]
      %v710 = vld [vmem:[%s2 + $0x128] sm:$0xf]
      %v711 = vld [vmem:[%s2 + $0x12c] sm:$0xf]
      %v712 = vld [vmem:[%s2 + $0x130] sm:$0xf]
      %v713 = vld [vmem:[%s2 + $0x134] sm:$0xf]
      %v714 = vld [vmem:[%s2 + $0x138] sm:$0xf]
      %v715 = vld [vmem:[%s2 + $0x13c] sm:$0xf]
      %v716 = vld [vmem:[%s2 + $0x140] sm:$0xf]
      %v717 = vld [vmem:[%s2 + $0x144] sm:$0xf]
      %v718 = vld [vmem:[%s2 + $0x148] sm:$0xf]
      %v719 = vld [vmem:[%s2 + $0x14c] sm:$0xf]
      %v720 = vld [vmem:[%s2 + $0x150] sm:$0xf]
      %v721 = vld [vmem:[%s2 + $0x154] sm:$0xf]
      %v722 = vld [vmem:[%s2 + $0x158] sm:$0xf]
      %v723 = vld [vmem:[%s2 + $0x15c] sm:$0xf]
      %v724 = vld [vmem:[%s2 + $0x160] sm:$0xf]
      %v725 = vld [vmem:[%s2 + $0x164] sm:$0xf]
      %v726 = vld [vmem:[%s2 + $0x168] sm:$0xf]
      %v727 = vld [vmem:[%s2 + $0x16c] sm:$0xf]
      %v728 = vld [vmem:[%s2 + $0x170] sm:$0xf]
      %v729 = vld [vmem:[%s2 + $0x174] sm:$0xf]
      %v730 = vld [vmem:[%s2 + $0x178] sm:$0xf]
      %v731 = vld [vmem:[%s2 + $0x17c] sm:$0xf]
      %v732 = vld [vmem:[%s1] sm:$0xff]
      %v736 = vunpack.c.l.b16 %v633
      %v737 = vunpack.c.h.b16 %v633
      %v738 = vunpack.c.l.b16 %v634
      %v739 = vunpack.c.h.b16 %v634
      %v740 = vunpack.c.l.b16 %v635
      %v741 = vunpack.c.h.b16 %v635
      %v742 = vpack.c.b16 %v736, %v736
      %v743 = vpack.c.b16 %v737, %v737
      %v744 = vpack.c.b16 %v738, %v738
      %v745 = vpack.c.b16 %v739, %v739
      %v746 = vpack.c.b16 %v740, %v740
      %v747 = vpack.c.b16 %v741, %v741
      %v850 = vunpack.c.l.b16 %v636
      %v851 = vunpack.c.l.b16 %v637
      %v852 = vunpack.c.l.b16 %v638
      %v853 = vunpack.c.l.b16 %v639
      %v854 = vunpack.c.l.b16 %v640
      %v855 = vunpack.c.l.b16 %v641
      %v856 = vunpack.c.l.b16 %v642
      %v857 = vunpack.c.l.b16 %v643
      %v858 = vunpack.c.l.b16 %v644
      %v859 = vunpack.c.l.b16 %v645
      %v860 = vunpack.c.l.b16 %v646
      %v861 = vunpack.c.l.b16 %v647
      %v862 = vunpack.c.l.b16 %v648
      %v863 = vunpack.c.l.b16 %v649
      %v864 = vunpack.c.l.b16 %v650
      %v865 = vunpack.c.l.b16 %v651
      %v866 = vunpack.c.l.b16 %v652
      %v867 = vunpack.c.l.b16 %v653
      %v868 = vunpack.c.l.b16 %v654
      %v869 = vunpack.c.l.b16 %v655
      %v870 = vunpack.c.l.b16 %v656
      %v871 = vunpack.c.l.b16 %v657
      %v872 = vunpack.c.l.b16 %v658
      %v873 = vunpack.c.l.b16 %v659
      %v874 = vunpack.c.l.b16 %v660
      %v875 = vunpack.c.l.b16 %v661
      %v876 = vunpack.c.l.b16 %v662
      %v877 = vunpack.c.l.b16 %v663
      %v878 = vunpack.c.l.b16 %v664
      %v879 = vunpack.c.l.b16 %v665
      %v880 = vunpack.c.l.b16 %v666
      %v881 = vunpack.c.l.b16 %v667
      %v882 = vunpack.c.l.b16 %v668
      %v883 = vunpack.c.l.b16 %v669
      %v884 = vunpack.c.l.b16 %v670
      %v885 = vunpack.c.l.b16 %v671
      %v886 = vunpack.c.l.b16 %v672
      %v887 = vunpack.c.l.b16 %v673
      %v888 = vunpack.c.l.b16 %v674
      %v889 = vunpack.c.l.b16 %v675
      %v890 = vunpack.c.l.b16 %v676
      %v891 = vunpack.c.l.b16 %v677
      %v892 = vunpack.c.l.b16 %v678
      %v893 = vunpack.c.l.b16 %v679
      %v894 = vunpack.c.l.b16 %v680
      %v895 = vunpack.c.l.b16 %v681
      %v896 = vunpack.c.l.b16 %v682
      %v897 = vunpack.c.l.b16 %v683
      %v898 = vunpack.c.l.b16 %v684
      %v899 = vunpack.c.l.b16 %v685
      %v900 = vunpack.c.l.b16 %v686
      %v901 = vunpack.c.l.b16 %v687
      %v902 = vunpack.c.l.b16 %v688
      %v903 = vunpack.c.l.b16 %v689
      %v904 = vunpack.c.l.b16 %v690
      %v905 = vunpack.c.l.b16 %v691
      %v906 = vunpack.c.l.b16 %v692
      %v907 = vunpack.c.l.b16 %v693
      %v908 = vunpack.c.l.b16 %v694
      %v909 = vunpack.c.l.b16 %v695
      %v910 = vunpack.c.l.b16 %v696
      %v911 = vunpack.c.l.b16 %v697
      %v912 = vunpack.c.l.b16 %v698
      %v913 = vunpack.c.l.b16 %v699
      %v914 = vunpack.c.l.b16 %v700
      %v915 = vunpack.c.l.b16 %v701
      %v916 = vunpack.c.l.b16 %v702
      %v917 = vunpack.c.l.b16 %v703
      %v918 = vunpack.c.l.b16 %v704
      %v919 = vunpack.c.l.b16 %v705
      %v920 = vunpack.c.l.b16 %v706
      %v921 = vunpack.c.l.b16 %v707
      %v922 = vunpack.c.l.b16 %v708
      %v923 = vunpack.c.l.b16 %v709
      %v924 = vunpack.c.l.b16 %v710
      %v925 = vunpack.c.l.b16 %v711
      %v926 = vunpack.c.l.b16 %v712
      %v927 = vunpack.c.l.b16 %v713
      %v928 = vunpack.c.l.b16 %v714
      %v929 = vunpack.c.l.b16 %v715
      %v930 = vunpack.c.l.b16 %v716
      %v931 = vunpack.c.l.b16 %v717
      %v932 = vunpack.c.l.b16 %v718
      %v933 = vunpack.c.l.b16 %v719
      %v934 = vunpack.c.l.b16 %v720
      %v935 = vunpack.c.l.b16 %v721
      %v936 = vunpack.c.l.b16 %v722
      %v937 = vunpack.c.l.b16 %v723
      %v938 = vunpack.c.l.b16 %v724
      %v939 = vunpack.c.l.b16 %v725
      %v940 = vunpack.c.l.b16 %v726
      %v941 = vunpack.c.l.b16 %v727
      %v942 = vunpack.c.l.b16 %v728
      %v943 = vunpack.c.l.b16 %v729
      %v944 = vunpack.c.l.b16 %v730
      %v945 = vunpack.c.l.b16 %v731
      %v946 = vpack.c.b16 %v851, %v850
      %v947 = vpack.c.b16 %v853, %v852
      %v948 = vpack.c.b16 %v855, %v854
      %v949 = vpack.c.b16 %v857, %v856
      %v950 = vpack.c.b16 %v859, %v858
      %v951 = vpack.c.b16 %v861, %v860
      %v952 = vpack.c.b16 %v863, %v862
      %v953 = vpack.c.b16 %v865, %v864
      %v954 = vpack.c.b16 %v867, %v866
      %v955 = vpack.c.b16 %v869, %v868
      %v956 = vpack.c.b16 %v871, %v870
      %v957 = vpack.c.b16 %v873, %v872
      %v958 = vpack.c.b16 %v875, %v874
      %v959 = vpack.c.b16 %v877, %v876
      %v960 = vpack.c.b16 %v879, %v878
      %v961 = vpack.c.b16 %v881, %v880
      %v962 = vpack.c.b16 %v883, %v882
      %v963 = vpack.c.b16 %v885, %v884
      %v964 = vpack.c.b16 %v887, %v886
      %v965 = vpack.c.b16 %v889, %v888
      %v966 = vpack.c.b16 %v891, %v890
      %v967 = vpack.c.b16 %v893, %v892
      %v968 = vpack.c.b16 %v895, %v894
      %v969 = vpack.c.b16 %v897, %v896
      %v970 = vpack.c.b16 %v899, %v898
      %v971 = vpack.c.b16 %v901, %v900
      %v972 = vpack.c.b16 %v903, %v902
      %v973 = vpack.c.b16 %v905, %v904
      %v974 = vpack.c.b16 %v907, %v906
      %v975 = vpack.c.b16 %v909, %v908
      %v976 = vpack.c.b16 %v911, %v910
      %v977 = vpack.c.b16 %v913, %v912
      %v978 = vpack.c.b16 %v915, %v914
      %v979 = vpack.c.b16 %v917, %v916
      %v980 = vpack.c.b16 %v919, %v918
      %v981 = vpack.c.b16 %v921, %v920
      %v982 = vpack.c.b16 %v923, %v922
      %v983 = vpack.c.b16 %v925, %v924
      %v984 = vpack.c.b16 %v927, %v926
      %v985 = vpack.c.b16 %v929, %v928
      %v986 = vpack.c.b16 %v931, %v930
      %v987 = vpack.c.b16 %v933, %v932
      %v988 = vpack.c.b16 %v935, %v934
      %v989 = vpack.c.b16 %v937, %v936
      %v990 = vpack.c.b16 %v939, %v938
      %v991 = vpack.c.b16 %v941, %v940
      %v992 = vpack.c.b16 %v943, %v942
      %v993 = vpack.c.b16 %v945, %v944
      %1042 = vmatprep.subr.bf16.mxu0 0
      %1043 = vmatpush1.bf16.msra.mxu0 %v953
      %1044 = vmatprep.subr.bf16.mxu0 0
      %1045 = vmatpush1.bf16.msra.mxu0 %v952
      %1046 = vmatprep.subr.bf16.mxu0 0
      %1047 = vmatpush1.bf16.msra.mxu0 %v951
      %1048 = vmatprep.subr.bf16.mxu0 0
      %1049 = vmatpush1.bf16.msra.mxu0 %v950
      %1050 = vmatprep.subr.bf16.mxu0 0
      %1051 = vmatpush1.bf16.msra.mxu0 %v949
      %1052 = vmatprep.subr.bf16.mxu0 0
      %1053 = vmatpush1.bf16.msra.mxu0 %v948
      %1054 = vmatprep.subr.bf16.mxu0 0
      %1055 = vmatpush1.bf16.msra.mxu0 %v947
      %1056 = vmatprep.subr.bf16.mxu0 0
      %1057 = vmatpush1.bf16.msra.mxu0 %v946
      %1058 = vmatprep.subr.bf16.mxu0 0
      %1059 = vmatpush2.bf16.msra.mxu0 %v961
      %1060 = vmatprep.subr.bf16.mxu0 0
      %1061 = vmatpush2.bf16.msra.mxu0 %v960
      %1062 = vmatprep.subr.bf16.mxu0 0
      %1063 = vmatpush2.bf16.msra.mxu0 %v959
      %1064 = vmatprep.subr.bf16.mxu0 0
      %1065 = vmatpush2.bf16.msra.mxu0 %v958
      %1066 = vmatprep.subr.bf16.mxu0 0
      %1067 = vmatpush2.bf16.msra.mxu0 %v957
      %1068 = vmatprep.subr.bf16.mxu0 0
      %1069 = vmatpush2.bf16.msra.mxu0 %v956
      %1070 = vmatprep.subr.bf16.mxu0 0
      %1071 = vmatpush2.bf16.msra.mxu0 %v955
      %1072 = vmatprep.subr.bf16.mxu0 0
      %1073 = vmatpush2.bf16.msra.mxu0 %v954
      %1074 = vmatprep.mubr.bf16.mxu0 %v743
      %1075 = vmatmul.mubr.bf16.gmra.mxu0 %v742
      %v1076 = vpop.f32.mrf.mxu0
      %v1077 = vadd.f32 %v732, %v1076
      %v1078 = vpop.f32.mrf.mxu0
      %v1079 = vpop.f32.mrf.mxu0
      %v1080 = vpop.f32.mrf.mxu0
      %1081 = vdwg.mxu0
      %1082 = vmatprep.subr.bf16.mxu0 0
      %1083 = vmatpush1.bf16.msra.mxu0 %v969
      %1084 = vmatprep.subr.bf16.mxu0 0
      %1085 = vmatpush1.bf16.msra.mxu0 %v968
      %1086 = vmatprep.subr.bf16.mxu0 0
      %1087 = vmatpush1.bf16.msra.mxu0 %v967
      %1088 = vmatprep.subr.bf16.mxu0 0
      %1089 = vmatpush1.bf16.msra.mxu0 %v966
      %1090 = vmatprep.subr.bf16.mxu0 0
      %1091 = vmatpush1.bf16.msra.mxu0 %v965
      %1092 = vmatprep.subr.bf16.mxu0 0
      %1093 = vmatpush1.bf16.msra.mxu0 %v964
      %1094 = vmatprep.subr.bf16.mxu0 0
      %1095 = vmatpush1.bf16.msra.mxu0 %v963
      %1096 = vmatprep.subr.bf16.mxu0 0
      %1097 = vmatpush1.bf16.msra.mxu0 %v962
      %1098 = vmatprep.subr.bf16.mxu0 0
      %1099 = vmatpush2.bf16.msra.mxu0 %v977
      %1100 = vmatprep.subr.bf16.mxu0 0
      %1101 = vmatpush2.bf16.msra.mxu0 %v976
      %1102 = vmatprep.subr.bf16.mxu0 0
      %1103 = vmatpush2.bf16.msra.mxu0 %v975
      %1104 = vmatprep.subr.bf16.mxu0 0
      %1105 = vmatpush2.bf16.msra.mxu0 %v974
      %1106 = vmatprep.subr.bf16.mxu0 0
      %1107 = vmatpush2.bf16.msra.mxu0 %v973
      %1108 = vmatprep.subr.bf16.mxu0 0
      %1109 = vmatpush2.bf16.msra.mxu0 %v972
      %1110 = vmatprep.subr.bf16.mxu0 0
      %1111 = vmatpush2.bf16.msra.mxu0 %v971
      %1112 = vmatprep.subr.bf16.mxu0 0
      %1113 = vmatpush2.bf16.msra.mxu0 %v970
      %1114 = vmatprep.mubr.bf16.mxu0 %v745
      %1115 = vmatmul.mubr.bf16.gmra.mxu0 %v744
      %v1116 = vpop.f32.mrf.mxu0
      %v1117 = vadd.f32 %v1077, %v1116
      %v1118 = vpop.f32.mrf.mxu0
      %v1119 = vpop.f32.mrf.mxu0
      %v1120 = vpop.f32.mrf.mxu0
      %1121 = vdwg.mxu0
      %1122 = vmatprep.subr.bf16.mxu0 0
      %1123 = vmatpush1.bf16.msra.mxu0 %v985
      %1124 = vmatprep.subr.bf16.mxu0 0
      %1125 = vmatpush1.bf16.msra.mxu0 %v984
      %1126 = vmatprep.subr.bf16.mxu0 0
      %1127 = vmatpush1.bf16.msra.mxu0 %v983
      %1128 = vmatprep.subr.bf16.mxu0 0
      %1129 = vmatpush1.bf16.msra.mxu0 %v982
      %1130 = vmatprep.subr.bf16.mxu0 0
      %1131 = vmatpush1.bf16.msra.mxu0 %v981
      %1132 = vmatprep.subr.bf16.mxu0 0
      %1133 = vmatpush1.bf16.msra.mxu0 %v980
      %1134 = vmatprep.subr.bf16.mxu0 0
      %1135 = vmatpush1.bf16.msra.mxu0 %v979
      %1136 = vmatprep.subr.bf16.mxu0 0
      %1137 = vmatpush1.bf16.msra.mxu0 %v978
      %1138 = vmatprep.subr.bf16.mxu0 0
      %1139 = vmatpush2.bf16.msra.mxu0 %v993
      %1140 = vmatprep.subr.bf16.mxu0 0
      %1141 = vmatpush2.bf16.msra.mxu0 %v992
      %1142 = vmatprep.subr.bf16.mxu0 0
      %1143 = vmatpush2.bf16.msra.mxu0 %v991
      %1144 = vmatprep.subr.bf16.mxu0 0
      %1145 = vmatpush2.bf16.msra.mxu0 %v990
      %1146 = vmatprep.subr.bf16.mxu0 0
      %1147 = vmatpush2.bf16.msra.mxu0 %v989
      %1148 = vmatprep.subr.bf16.mxu0 0
      %1149 = vmatpush2.bf16.msra.mxu0 %v988
      %1150 = vmatprep.subr.bf16.mxu0 0
      %1151 = vmatpush2.bf16.msra.mxu0 %v987
      %1152 = vmatprep.subr.bf16.mxu0 0
      %1153 = vmatpush2.bf16.msra.mxu0 %v986
      %1154 = vmatprep.mubr.bf16.mxu0 %v747
      %1155 = vmatmul.mubr.bf16.gmra.mxu0 %v746
      %v1156 = vpop.f32.mrf.mxu0
      %v1157 = vadd.f32 %v1117, %v1156
      %v1158 = vpop.f32.mrf.mxu0
      %v1159 = vpop.f32.mrf.mxu0
      %v1160 = vpop.f32.mrf.mxu0
      %1161 = vdwg.mxu0
      %v1162 = vld [vmem:[%s3] sm:$0x1]
      %v1163 = vld [vmem:[%s4] sm:$0x1]
      %vm1164 = vcmask 523264
      %v1165 = vsel %vm1164, %v1157, 0.0
      %1166 = vadd.xlane.f32.xlu0 %v1165
      %v1167 = vpop.xlane.xlu0 %1166
      %v1168 = vrcp.pop 64.0
      %v1169 = vmul.f32 %v1167, %v1168
      %v1170 = vsub.f32 %v1157, %v1169
      %v1171 = vmul.f32 %v1170, %v1170
      %v1172 = vsel %vm1164, %v1171, 0.0
      %1173 = vadd.xlane.f32.xlu0 %v1172
      %v1174 = vpop.xlane.xlu0 %1173
      %v1175 = vmul.f32 %v1174, %v1168
      %v1176 = vadd.f32 %v1175, 1e-05
      %v1177 = vrsqrt.pop %v1176
      %v1178 = vmul.f32 %v1170, %v1177
      %v1180 = vlaneseq
      %v1181 = vshrl.u32 %v1180, 7
      %v1182 = vsub.s32 0, %v1181
      %v1183 = vrot.slane %v1162, %v1182
      %v1185 = vmul.f32 %v1178, %v1183
      %v1187 = vlaneseq
      %v1188 = vshrl.u32 %v1187, 7
      %v1189 = vsub.s32 0, %v1188
      %v1190 = vrot.slane %v1163, %v1189
      %v1192 = vadd.f32 %v1185, %v1190
      %v1193 = vld [vmem:[%s5] sm:$0x1]
      %v1194 = vld [vmem:[%s6] sm:$0x1]
      %v1195 = vsel %vm1164, %v1192, 0.0
      %1196 = vadd.xlane.f32.xlu0 %v1195
      %v1197 = vpop.xlane.xlu0 %1196
      %v1198 = vmul.f32 %v1197, %v1168
      %v1199 = vsub.f32 %v1192, %v1198
      %v1200 = vmul.f32 %v1199, %v1199
      %v1201 = vsel %vm1164, %v1200, 0.0
      %1202 = vadd.xlane.f32.xlu0 %v1201
      %v1203 = vpop.xlane.xlu0 %1202
      %v1204 = vmul.f32 %v1203, %v1168
      %v1205 = vadd.f32 %v1204, 1e-05
      %v1206 = vrsqrt.pop %v1205
      %v1207 = vmul.f32 %v1199, %v1206
      %v1209 = vlaneseq
      %v1210 = vshrl.u32 %v1209, 7
      %v1211 = vsub.s32 0, %v1210
      %v1212 = vrot.slane %v1193, %v1211
      %v1214 = vmul.f32 %v1207, %v1212
      %v1216 = vlaneseq
      %v1217 = vshrl.u32 %v1216, 7
      %v1218 = vsub.s32 0, %v1217
      %v1219 = vrot.slane %v1194, %v1218
      %v1221 = vadd.f32 %v1214, %v1219
      %v1222 = vld [vmem:[%s7] sm:$0xff]
      %v1223 = vld [vmem:[%s7 + $0x8] sm:$0xff]
      %v1224 = vld [vmem:[%s7 + $0x10] sm:$0xff]
      %v1225 = vld [vmem:[%s7 + $0x18] sm:$0xff]
      %v1226 = vld [vmem:[%s7 + $0x20] sm:$0xff]
      %v1227 = vld [vmem:[%s7 + $0x28] sm:$0xff]
      %v1228 = vld [vmem:[%s7 + $0x30] sm:$0xff]
      %v1229 = vld [vmem:[%s7 + $0x38] sm:$0xff]
      %v1230 = vpack.c.bf16 %v1221, %v1221
      %v1231 = vld [vmem:[%s8] sm:$0x3]
      %v1233 = vlaneseq
      %v1234 = vshrl.u32 %v1233, 7
      %v1235 = vsub.s32 0, %v1234
      %v1236 = vrot.slane %v1231, %v1235
      %v1237 = vlaneseq
      %v1238 = vshrl.u32 %v1237, 7
      %v1239 = vsub.s32 1, %v1238
      %v1240 = vrot.slane %v1231, %v1239
      %v1251 = vunpack.c.l.b16 %v1222
      %v1252 = vunpack.c.h.b16 %v1222
      %v1253 = vunpack.c.l.b16 %v1223
      %v1254 = vunpack.c.h.b16 %v1223
      %v1255 = vunpack.c.l.b16 %v1224
      %v1256 = vunpack.c.h.b16 %v1224
      %v1257 = vunpack.c.l.b16 %v1225
      %v1258 = vunpack.c.h.b16 %v1225
      %v1259 = vunpack.c.l.b16 %v1226
      %v1260 = vunpack.c.h.b16 %v1226
      %v1261 = vunpack.c.l.b16 %v1227
      %v1262 = vunpack.c.h.b16 %v1227
      %v1263 = vunpack.c.l.b16 %v1228
      %v1264 = vunpack.c.h.b16 %v1228
      %v1265 = vunpack.c.l.b16 %v1229
      %v1266 = vunpack.c.h.b16 %v1229
      %v1267 = vpack.c.b16 %v1253, %v1251
      %v1268 = vpack.c.b16 %v1254, %v1252
      %v1269 = vpack.c.b16 %v1257, %v1255
      %v1270 = vpack.c.b16 %v1258, %v1256
      %v1271 = vpack.c.b16 %v1261, %v1259
      %v1272 = vpack.c.b16 %v1262, %v1260
      %v1273 = vpack.c.b16 %v1265, %v1263
      %v1274 = vpack.c.b16 %v1266, %v1264
      %v1284 = vsel %vm1164, %v1230, 0
      %1286 = vmatprep.subr.bf16.mxu0 0
      %1287 = vmatpush1.bf16.msra.mxu0 0
      %1288 = vmatprep.subr.bf16.mxu0 0
      %1289 = vmatpush1.bf16.msra.mxu0 0
      %1290 = vmatprep.subr.bf16.mxu0 0
      %1291 = vmatpush1.bf16.msra.mxu0 0
      %1292 = vmatprep.subr.bf16.mxu0 0
      %1293 = vmatpush1.bf16.msra.mxu0 0
      %1294 = vmatprep.subr.bf16.mxu0 %v1274
      %1295 = vmatpush1.bf16.msra.mxu0 %v1273
      %1296 = vmatprep.subr.bf16.mxu0 %v1272
      %1297 = vmatpush1.bf16.msra.mxu0 %v1271
      %1298 = vmatprep.subr.bf16.mxu0 %v1270
      %1299 = vmatpush1.bf16.msra.mxu0 %v1269
      %1300 = vmatprep.subr.bf16.mxu0 %v1268
      %1301 = vmatpush1.bf16.msra.mxu0 %v1267
      %1302 = vmatprep.subr.bf16.mxu0 0
      %1303 = vmatpush2.bf16.msra.mxu0 0
      %1304 = vmatprep.subr.bf16.mxu0 0
      %1305 = vmatpush2.bf16.msra.mxu0 0
      %1306 = vmatprep.subr.bf16.mxu0 0
      %1307 = vmatpush2.bf16.msra.mxu0 0
      %1308 = vmatprep.subr.bf16.mxu0 0
      %1309 = vmatpush2.bf16.msra.mxu0 0
      %1310 = vmatprep.subr.bf16.mxu0 0
      %1311 = vmatpush2.bf16.msra.mxu0 0
      %1312 = vmatprep.subr.bf16.mxu0 0
      %1313 = vmatpush2.bf16.msra.mxu0 0
      %1314 = vmatprep.subr.bf16.mxu0 0
      %1315 = vmatpush2.bf16.msra.mxu0 0
      %1316 = vmatprep.subr.bf16.mxu0 0
      %1317 = vmatpush2.bf16.msra.mxu0 0
      %1318 = vmatprep.mubr.bf16.mxu0 0
      %1319 = vmatmul.mubr.bf16.gmra.mxu0 %v1284
      %v1320 = vpop.f32.mrf.mxu0
      %v1321 = vadd.f32 %v1236, %v1320
      %v1322 = vpop.f32.mrf.mxu0
      %v1323 = vadd.f32 %v1240, %v1322
      %v1324 = vpop.f32.mrf.mxu0
      %v1325 = vpop.f32.mrf.mxu0
      %1326 = vdwg.mxu0
      %v1327 = vpack.c.bf16 %v1321, %v1321
      %v1328 = vpack.c.bf16 %v1323, %v1323
      %1330 = vrot.lane.b32.xlu0 %v1327, 64
      %v1331 = vpop.permute.xlu0 %1330
      %vm1332 = vcmask 130048
      %v1334 = vsel %vm1332, %v1327, 0
      %v1337 = vsel %vm1332, %v1331, 0
      %1339 = vmatprep.subr.bf16.mxu0 0
      %1340 = vmatpush1.bf16.xpose.msra.mxu0 0
      %1341 = vmatprep.subr.bf16.mxu0 0
      %1342 = vmatpush1.bf16.xpose.msra.mxu0 0
      %1343 = vmatprep.subr.bf16.mxu0 0
      %1344 = vmatpush1.bf16.xpose.msra.mxu0 0
      %1345 = vmatprep.subr.bf16.mxu0 0
      %1346 = vmatpush1.bf16.xpose.msra.mxu0 0
      %1347 = vmatprep.subr.bf16.mxu0 0
      %1348 = vmatpush1.bf16.xpose.msra.mxu0 0
      %1349 = vmatprep.subr.bf16.mxu0 0
      %1350 = vmatpush1.bf16.xpose.msra.mxu0 0
      %1351 = vmatprep.subr.bf16.mxu0 0
      %1352 = vmatpush1.bf16.xpose.msra.mxu0 0
      %1353 = vmatprep.subr.bf16.mxu0 0
      %1354 = vmatpush1.bf16.xpose.msra.mxu0 %v1337
      %1355 = vmatprep.subr.bf16.mxu0 0
      %1356 = vmatpush2.bf16.xpose.msra.mxu0 0
      %1357 = vmatprep.subr.bf16.mxu0 0
      %1358 = vmatpush2.bf16.xpose.msra.mxu0 0
      %1359 = vmatprep.subr.bf16.mxu0 0
      %1360 = vmatpush2.bf16.xpose.msra.mxu0 0
      %1361 = vmatprep.subr.bf16.mxu0 0
      %1362 = vmatpush2.bf16.xpose.msra.mxu0 0
      %1363 = vmatprep.subr.bf16.mxu0 0
      %1364 = vmatpush2.bf16.xpose.msra.mxu0 0
      %1365 = vmatprep.subr.bf16.mxu0 0
      %1366 = vmatpush2.bf16.xpose.msra.mxu0 0
      %1367 = vmatprep.subr.bf16.mxu0 0
      %1368 = vmatpush2.bf16.xpose.msra.mxu0 0
      %1369 = vmatprep.subr.bf16.mxu0 0
      %1370 = vmatpush2.bf16.xpose.msra.mxu0 0
      %1371 = vmatprep.mubr.bf16.mxu0 0
      %1372 = vmatmul.mubr.bf16.gmra.mxu0 %v1334
      %v1373 = vpop.f32.mrf.mxu0
      %v1374 = vadd.f32 0.0, %v1373
      %v1375 = vpop.f32.mrf.mxu0
      %v1376 = vpop.f32.mrf.mxu0
      %v1377 = vpop.f32.mrf.mxu0
      %1378 = vdwg.mxu0
      %v1379 = vmul.f32 %v1374, 0.25
      %v1380 = vadd.f32 %v1379, %v632
      %vm1381 = vcmask 64512
      %v1382 = vsel %vm1381, %v1380, -inf
      %1383 = vmax.xlane.f32.xlu0 %v1382
      %v1384 = vpop.xlane.xlu0 %1383
      %v1385 = vsub.f32 %v1380, %v1384
      %v1386 = vmul.f32 %v1385, 1.442695
      %v1387 = vpow.pop %v1386
      %v1388 = vsel %vm1381, %v1387, 0.0
      %1389 = vadd.xlane.f32.xlu0 %v1388
      %v1390 = vpop.xlane.xlu0 %1389
      %v1391 = vrcp.pop %v1390
      %v1392 = vmul.f32 %v1387, %v1391
      %v1393 = vpack.c.bf16 %v1392, %v1392
      %v1395 = vsel %vm1381, %v1393, 0
      %vm1397 = vcmask 1043456
      %v1399 = vsel %vm1397, %v1328, 0
      %1401 = vmatprep.subr.bf16.mxu0 0
      %1402 = vmatpush1.bf16.msra.mxu0 0
      %1403 = vmatprep.subr.bf16.mxu0 0
      %1404 = vmatpush1.bf16.msra.mxu0 0
      %1405 = vmatprep.subr.bf16.mxu0 0
      %1406 = vmatpush1.bf16.msra.mxu0 0
      %1407 = vmatprep.subr.bf16.mxu0 0
      %1408 = vmatpush1.bf16.msra.mxu0 0
      %1409 = vmatprep.subr.bf16.mxu0 0
      %1410 = vmatpush1.bf16.msra.mxu0 0
      %1411 = vmatprep.subr.bf16.mxu0 0
      %1412 = vmatpush1.bf16.msra.mxu0 0
      %1413 = vmatprep.subr.bf16.mxu0 0
      %1414 = vmatpush1.bf16.msra.mxu0 0
      %1415 = vmatprep.subr.bf16.mxu0 0
      %1416 = vmatpush1.bf16.msra.mxu0 %v1399
      %1417 = vmatprep.subr.bf16.mxu0 0
      %1418 = vmatpush2.bf16.msra.mxu0 0
      %1419 = vmatprep.subr.bf16.mxu0 0
      %1420 = vmatpush2.bf16.msra.mxu0 0
      %1421 = vmatprep.subr.bf16.mxu0 0
      %1422 = vmatpush2.bf16.msra.mxu0 0
      %1423 = vmatprep.subr.bf16.mxu0 0
      %1424 = vmatpush2.bf16.msra.mxu0 0
      %1425 = vmatprep.subr.bf16.mxu0 0
      %1426 = vmatpush2.bf16.msra.mxu0 0
      %1427 = vmatprep.subr.bf16.mxu0 0
      %1428 = vmatpush2.bf16.msra.mxu0 0
      %1429 = vmatprep.subr.bf16.mxu0 0
      %1430 = vmatpush2.bf16.msra.mxu0 0
      %1431 = vmatprep.subr.bf16.mxu0 0
      %1432 = vmatpush2.bf16.msra.mxu0 0
      %1433 = vmatprep.mubr.bf16.mxu0 0
      %1434 = vmatmul.mubr.bf16.gmra.mxu0 %v1395
      %v1435 = vpop.f32.mrf.mxu0
      %v1436 = vadd.f32 0.0, %v1435
      %v1437 = vpop.f32.mrf.mxu0
      %v1438 = vpop.f32.mrf.mxu0
      %v1439 = vpop.f32.mrf.mxu0
      %1440 = vdwg.mxu0
      %1441 = vrot.lane.b32.xlu0 %v1327, 112
      %v1442 = vpop.permute.xlu0 %1441
      %1443 = vrot.lane.b32.xlu0 %v1327, 48
      %v1444 = vpop.permute.xlu0 %1443
      %v1446 = vsel %vm1332, %v1442, 0
      %v1449 = vsel %vm1332, %v1444, 0
      %1451 = vmatprep.subr.bf16.mxu0 0
      %1452 = vmatpush1.bf16.xpose.msra.mxu0 0
      %1453 = vmatprep.subr.bf16.mxu0 0
      %1454 = vmatpush1.bf16.xpose.msra.mxu0 0
      %1455 = vmatprep.subr.bf16.mxu0 0
      %1456 = vmatpush1.bf16.xpose.msra.mxu0 0
      %1457 = vmatprep.subr.bf16.mxu0 0
      %1458 = vmatpush1.bf16.xpose.msra.mxu0 0
      %1459 = vmatprep.subr.bf16.mxu0 0
      %1460 = vmatpush1.bf16.xpose.msra.mxu0 0
      %1461 = vmatprep.subr.bf16.mxu0 0
      %1462 = vmatpush1.bf16.xpose.msra.mxu0 0
      %1463 = vmatprep.subr.bf16.mxu0 0
      %1464 = vmatpush1.bf16.xpose.msra.mxu0 0
      %1465 = vmatprep.subr.bf16.mxu0 0
      %1466 = vmatpush1.bf16.xpose.msra.mxu0 %v1449
      %1467 = vmatprep.subr.bf16.mxu0 0
      %1468 = vmatpush2.bf16.xpose.msra.mxu0 0
      %1469 = vmatprep.subr.bf16.mxu0 0
      %1470 = vmatpush2.bf16.xpose.msra.mxu0 0
      %1471 = vmatprep.subr.bf16.mxu0 0
      %1472 = vmatpush2.bf16.xpose.msra.mxu0 0
      %1473 = vmatprep.subr.bf16.mxu0 0
      %1474 = vmatpush2.bf16.xpose.msra.mxu0 0
      %1475 = vmatprep.subr.bf16.mxu0 0
      %1476 = vmatpush2.bf16.xpose.msra.mxu0 0
      %1477 = vmatprep.subr.bf16.mxu0 0
      %1478 = vmatpush2.bf16.xpose.msra.mxu0 0
      %1479 = vmatprep.subr.bf16.mxu0 0
      %1480 = vmatpush2.bf16.xpose.msra.mxu0 0
      %1481 = vmatprep.subr.bf16.mxu0 0
      %1482 = vmatpush2.bf16.xpose.msra.mxu0 0
      %1483 = vmatprep.mubr.bf16.mxu0 0
      %1484 = vmatmul.mubr.bf16.gmra.mxu0 %v1446
      %v1485 = vpop.f32.mrf.mxu0
      %v1486 = vadd.f32 0.0, %v1485
      %v1487 = vpop.f32.mrf.mxu0
      %v1488 = vpop.f32.mrf.mxu0
      %v1489 = vpop.f32.mrf.mxu0
      %1490 = vdwg.mxu0
      %v1491 = vmul.f32 %v1486, 0.25
      %v1492 = vadd.f32 %v1491, %v632
      %v1493 = vsel %vm1381, %v1492, -inf
      %1494 = vmax.xlane.f32.xlu0 %v1493
      %v1495 = vpop.xlane.xlu0 %1494
      %v1496 = vsub.f32 %v1492, %v1495
      %v1497 = vmul.f32 %v1496, 1.442695
      %v1498 = vpow.pop %v1497
      %v1499 = vsel %vm1381, %v1498, 0.0
      %1500 = vadd.xlane.f32.xlu0 %v1499
      %v1501 = vpop.xlane.xlu0 %1500
      %v1502 = vrcp.pop %v1501
      %v1503 = vmul.f32 %v1498, %v1502
      %v1504 = vpack.c.bf16 %v1503, %v1503
      %1506 = vrot.lane.b32.xlu0 %v1328, 112
      %v1507 = vpop.permute.xlu0 %1506
      %v1509 = vsel %vm1381, %v1504, 0
      %v1512 = vsel %vm1397, %v1507, 0
      %1514 = vmatprep.subr.bf16.mxu0 0
      %1515 = vmatpush1.bf16.msra.mxu0 0
      %1516 = vmatprep.subr.bf16.mxu0 0
      %1517 = vmatpush1.bf16.msra.mxu0 0
      %1518 = vmatprep.subr.bf16.mxu0 0
      %1519 = vmatpush1.bf16.msra.mxu0 0
      %1520 = vmatprep.subr.bf16.mxu0 0
      %1521 = vmatpush1.bf16.msra.mxu0 0
      %1522 = vmatprep.subr.bf16.mxu0 0
      %1523 = vmatpush1.bf16.msra.mxu0 0
      %1524 = vmatprep.subr.bf16.mxu0 0
      %1525 = vmatpush1.bf16.msra.mxu0 0
      %1526 = vmatprep.subr.bf16.mxu0 0
      %1527 = vmatpush1.bf16.msra.mxu0 0
      %1528 = vmatprep.subr.bf16.mxu0 0
      %1529 = vmatpush1.bf16.msra.mxu0 %v1512
      %1530 = vmatprep.subr.bf16.mxu0 0
      %1531 = vmatpush2.bf16.msra.mxu0 0
      %1532 = vmatprep.subr.bf16.mxu0 0
      %1533 = vmatpush2.bf16.msra.mxu0 0
      %1534 = vmatprep.subr.bf16.mxu0 0
      %1535 = vmatpush2.bf16.msra.mxu0 0
      %1536 = vmatprep.subr.bf16.mxu0 0
      %1537 = vmatpush2.bf16.msra.mxu0 0
      %1538 = vmatprep.subr.bf16.mxu0 0
      %1539 = vmatpush2.bf16.msra.mxu0 0
      %1540 = vmatprep.subr.bf16.mxu0 0
      %1541 = vmatpush2.bf16.msra.mxu0 0
      %1542 = vmatprep.subr.bf16.mxu0 0
      %1543 = vmatpush2.bf16.msra.mxu0 0
      %1544 = vmatprep.subr.bf16.mxu0 0
      %1545 = vmatpush2.bf16.msra.mxu0 0
      %1546 = vmatprep.mubr.bf16.mxu0 0
      %1547 = vmatmul.mubr.bf16.gmra.mxu0 %v1509
      %v1548 = vpop.f32.mrf.mxu0
      %v1549 = vadd.f32 0.0, %v1548
      %v1550 = vpop.f32.mrf.mxu0
      %v1551 = vpop.f32.mrf.mxu0
      %v1552 = vpop.f32.mrf.mxu0
      %1553 = vdwg.mxu0
      %1554 = vrot.lane.b32.xlu0 %v1327, 96
      %v1555 = vpop.permute.xlu0 %1554
      %1556 = vrot.lane.b32.xlu0 %v1327, 32
      %v1557 = vpop.permute.xlu0 %1556
      %v1559 = vsel %vm1332, %v1555, 0
      %v1562 = vsel %vm1332, %v1557, 0
      %1564 = vmatprep.subr.bf16.mxu0 0
      %1565 = vmatpush1.bf16.xpose.msra.mxu0 0
      %1566 = vmatprep.subr.bf16.mxu0 0
      %1567 = vmatpush1.bf16.xpose.msra.mxu0 0
      %1568 = vmatprep.subr.bf16.mxu0 0
      %1569 = vmatpush1.bf16.xpose.msra.mxu0 0
      %1570 = vmatprep.subr.bf16.mxu0 0
      %1571 = vmatpush1.bf16.xpose.msra.mxu0 0
      %1572 = vmatprep.subr.bf16.mxu0 0
      %1573 = vmatpush1.bf16.xpose.msra.mxu0 0
      %1574 = vmatprep.subr.bf16.mxu0 0
      %1575 = vmatpush1.bf16.xpose.msra.mxu0 0
      %1576 = vmatprep.subr.bf16.mxu0 0
      %1577 = vmatpush1.bf16.xpose.msra.mxu0 0
      %1578 = vmatprep.subr.bf16.mxu0 0
      %1579 = vmatpush1.bf16.xpose.msra.mxu0 %v1562
      %1580 = vmatprep.subr.bf16.mxu0 0
      %1581 = vmatpush2.bf16.xpose.msra.mxu0 0
      %1582 = vmatprep.subr.bf16.mxu0 0
      %1583 = vmatpush2.bf16.xpose.msra.mxu0 0
      %1584 = vmatprep.subr.bf16.mxu0 0
      %1585 = vmatpush2.bf16.xpose.msra.mxu0 0
      %1586 = vmatprep.subr.bf16.mxu0 0
      %1587 = vmatpush2.bf16.xpose.msra.mxu0 0
      %1588 = vmatprep.subr.bf16.mxu0 0
      %1589 = vmatpush2.bf16.xpose.msra.mxu0 0
      %1590 = vmatprep.subr.bf16.mxu0 0
      %1591 = vmatpush2.bf16.xpose.msra.mxu0 0
      %1592 = vmatprep.subr.bf16.mxu0 0
      %1593 = vmatpush2.bf16.xpose.msra.mxu0 0
      %1594 = vmatprep.subr.bf16.mxu0 0
      %1595 = vmatpush2.bf16.xpose.msra.mxu0 0
      %1596 = vmatprep.mubr.bf16.mxu0 0
      %1597 = vmatmul.mubr.bf16.gmra.mxu0 %v1559
      %v1598 = vpop.f32.mrf.mxu0
      %v1599 = vadd.f32 0.0, %v1598
      %v1600 = vpop.f32.mrf.mxu0
      %v1601 = vpop.f32.mrf.mxu0
      %v1602 = vpop.f32.mrf.mxu0
      %1603 = vdwg.mxu0
      %v1604 = vmul.f32 %v1599, 0.25
      %v1605 = vadd.f32 %v1604, %v632
      %v1606 = vsel %vm1381, %v1605, -inf
      %1607 = vmax.xlane.f32.xlu0 %v1606
      %v1608 = vpop.xlane.xlu0 %1607
      %v1609 = vsub.f32 %v1605, %v1608
      %v1610 = vmul.f32 %v1609, 1.442695
      %v1611 = vpow.pop %v1610
      %v1612 = vsel %vm1381, %v1611, 0.0
      %1613 = vadd.xlane.f32.xlu0 %v1612
      %v1614 = vpop.xlane.xlu0 %1613
      %v1615 = vrcp.pop %v1614
      %v1616 = vmul.f32 %v1611, %v1615
      %v1617 = vpack.c.bf16 %v1616, %v1616
      %1618 = vrot.lane.b32.xlu0 %v1328, 96
      %v1619 = vpop.permute.xlu0 %1618
      %v1621 = vsel %vm1381, %v1617, 0
      %v1624 = vsel %vm1397, %v1619, 0
      %1626 = vmatprep.subr.bf16.mxu0 0
      %1627 = vmatpush1.bf16.msra.mxu0 0
      %1628 = vmatprep.subr.bf16.mxu0 0
      %1629 = vmatpush1.bf16.msra.mxu0 0
      %1630 = vmatprep.subr.bf16.mxu0 0
      %1631 = vmatpush1.bf16.msra.mxu0 0
      %1632 = vmatprep.subr.bf16.mxu0 0
      %1633 = vmatpush1.bf16.msra.mxu0 0
      %1634 = vmatprep.subr.bf16.mxu0 0
      %1635 = vmatpush1.bf16.msra.mxu0 0
      %1636 = vmatprep.subr.bf16.mxu0 0
      %1637 = vmatpush1.bf16.msra.mxu0 0
      %1638 = vmatprep.subr.bf16.mxu0 0
      %1639 = vmatpush1.bf16.msra.mxu0 0
      %1640 = vmatprep.subr.bf16.mxu0 0
      %1641 = vmatpush1.bf16.msra.mxu0 %v1624
      %1642 = vmatprep.subr.bf16.mxu0 0
      %1643 = vmatpush2.bf16.msra.mxu0 0
      %1644 = vmatprep.subr.bf16.mxu0 0
      %1645 = vmatpush2.bf16.msra.mxu0 0
      %1646 = vmatprep.subr.bf16.mxu0 0
      %1647 = vmatpush2.bf16.msra.mxu0 0
      %1648 = vmatprep.subr.bf16.mxu0 0
      %1649 = vmatpush2.bf16.msra.mxu0 0
      %1650 = vmatprep.subr.bf16.mxu0 0
      %1651 = vmatpush2.bf16.msra.mxu0 0
      %1652 = vmatprep.subr.bf16.mxu0 0
      %1653 = vmatpush2.bf16.msra.mxu0 0
      %1654 = vmatprep.subr.bf16.mxu0 0
      %1655 = vmatpush2.bf16.msra.mxu0 0
      %1656 = vmatprep.subr.bf16.mxu0 0
      %1657 = vmatpush2.bf16.msra.mxu0 0
      %1658 = vmatprep.mubr.bf16.mxu0 0
      %1659 = vmatmul.mubr.bf16.gmra.mxu0 %v1621
      %v1660 = vpop.f32.mrf.mxu0
      %v1661 = vadd.f32 0.0, %v1660
      %v1662 = vpop.f32.mrf.mxu0
      %v1663 = vpop.f32.mrf.mxu0
      %v1664 = vpop.f32.mrf.mxu0
      %1665 = vdwg.mxu0
      %1666 = vrot.lane.b32.xlu0 %v1327, 80
      %v1667 = vpop.permute.xlu0 %1666
      %1668 = vrot.lane.b32.xlu0 %v1327, 16
      %v1669 = vpop.permute.xlu0 %1668
      %v1671 = vsel %vm1332, %v1667, 0
      %v1674 = vsel %vm1332, %v1669, 0
      %1676 = vmatprep.subr.bf16.mxu0 0
      %1677 = vmatpush1.bf16.xpose.msra.mxu0 0
      %1678 = vmatprep.subr.bf16.mxu0 0
      %1679 = vmatpush1.bf16.xpose.msra.mxu0 0
      %1680 = vmatprep.subr.bf16.mxu0 0
      %1681 = vmatpush1.bf16.xpose.msra.mxu0 0
      %1682 = vmatprep.subr.bf16.mxu0 0
      %1683 = vmatpush1.bf16.xpose.msra.mxu0 0
      %1684 = vmatprep.subr.bf16.mxu0 0
      %1685 = vmatpush1.bf16.xpose.msra.mxu0 0
      %1686 = vmatprep.subr.bf16.mxu0 0
      %1687 = vmatpush1.bf16.xpose.msra.mxu0 0
      %1688 = vmatprep.subr.bf16.mxu0 0
      %1689 = vmatpush1.bf16.xpose.msra.mxu0 0
      %1690 = vmatprep.subr.bf16.mxu0 0
      %1691 = vmatpush1.bf16.xpose.msra.mxu0 %v1674
      %1692 = vmatprep.subr.bf16.mxu0 0
      %1693 = vmatpush2.bf16.xpose.msra.mxu0 0
      %1694 = vmatprep.subr.bf16.mxu0 0
      %1695 = vmatpush2.bf16.xpose.msra.mxu0 0
      %1696 = vmatprep.subr.bf16.mxu0 0
      %1697 = vmatpush2.bf16.xpose.msra.mxu0 0
      %1698 = vmatprep.subr.bf16.mxu0 0
      %1699 = vmatpush2.bf16.xpose.msra.mxu0 0
      %1700 = vmatprep.subr.bf16.mxu0 0
      %1701 = vmatpush2.bf16.xpose.msra.mxu0 0
      %1702 = vmatprep.subr.bf16.mxu0 0
      %1703 = vmatpush2.bf16.xpose.msra.mxu0 0
      %1704 = vmatprep.subr.bf16.mxu0 0
      %1705 = vmatpush2.bf16.xpose.msra.mxu0 0
      %1706 = vmatprep.subr.bf16.mxu0 0
      %1707 = vmatpush2.bf16.xpose.msra.mxu0 0
      %1708 = vmatprep.mubr.bf16.mxu0 0
      %1709 = vmatmul.mubr.bf16.gmra.mxu0 %v1671
      %v1710 = vpop.f32.mrf.mxu0
      %v1711 = vadd.f32 0.0, %v1710
      %v1712 = vpop.f32.mrf.mxu0
      %v1713 = vpop.f32.mrf.mxu0
      %v1714 = vpop.f32.mrf.mxu0
      %1715 = vdwg.mxu0
      %v1716 = vmul.f32 %v1711, 0.25
      %v1717 = vadd.f32 %v1716, %v632
      %v1718 = vsel %vm1381, %v1717, -inf
      %1719 = vmax.xlane.f32.xlu0 %v1718
      %v1720 = vpop.xlane.xlu0 %1719
      %v1721 = vsub.f32 %v1717, %v1720
      %v1722 = vmul.f32 %v1721, 1.442695
      %v1723 = vpow.pop %v1722
      %v1724 = vsel %vm1381, %v1723, 0.0
      %1725 = vadd.xlane.f32.xlu0 %v1724
      %v1726 = vpop.xlane.xlu0 %1725
      %v1727 = vrcp.pop %v1726
      %v1728 = vmul.f32 %v1723, %v1727
      %v1729 = vpack.c.bf16 %v1728, %v1728
      %1730 = vrot.lane.b32.xlu0 %v1328, 80
      %v1731 = vpop.permute.xlu0 %1730
      %v1733 = vsel %vm1381, %v1729, 0
      %v1736 = vsel %vm1397, %v1731, 0
      %1738 = vmatprep.subr.bf16.mxu0 0
      %1739 = vmatpush1.bf16.msra.mxu0 0
      %1740 = vmatprep.subr.bf16.mxu0 0
      %1741 = vmatpush1.bf16.msra.mxu0 0
      %1742 = vmatprep.subr.bf16.mxu0 0
      %1743 = vmatpush1.bf16.msra.mxu0 0
      %1744 = vmatprep.subr.bf16.mxu0 0
      %1745 = vmatpush1.bf16.msra.mxu0 0
      %1746 = vmatprep.subr.bf16.mxu0 0
      %1747 = vmatpush1.bf16.msra.mxu0 0
      %1748 = vmatprep.subr.bf16.mxu0 0
      %1749 = vmatpush1.bf16.msra.mxu0 0
      %1750 = vmatprep.subr.bf16.mxu0 0
      %1751 = vmatpush1.bf16.msra.mxu0 0
      %1752 = vmatprep.subr.bf16.mxu0 0
      %1753 = vmatpush1.bf16.msra.mxu0 %v1736
      %1754 = vmatprep.subr.bf16.mxu0 0
      %1755 = vmatpush2.bf16.msra.mxu0 0
      %1756 = vmatprep.subr.bf16.mxu0 0
      %1757 = vmatpush2.bf16.msra.mxu0 0
      %1758 = vmatprep.subr.bf16.mxu0 0
      %1759 = vmatpush2.bf16.msra.mxu0 0
      %1760 = vmatprep.subr.bf16.mxu0 0
      %1761 = vmatpush2.bf16.msra.mxu0 0
      %1762 = vmatprep.subr.bf16.mxu0 0
      %1763 = vmatpush2.bf16.msra.mxu0 0
      %1764 = vmatprep.subr.bf16.mxu0 0
      %1765 = vmatpush2.bf16.msra.mxu0 0
      %1766 = vmatprep.subr.bf16.mxu0 0
      %1767 = vmatpush2.bf16.msra.mxu0 0
      %1768 = vmatprep.subr.bf16.mxu0 0
      %1769 = vmatpush2.bf16.msra.mxu0 0
      %1770 = vmatprep.mubr.bf16.mxu0 0
      %1771 = vmatmul.mubr.bf16.gmra.mxu0 %v1733
      %v1772 = vpop.f32.mrf.mxu0
      %v1773 = vadd.f32 0.0, %v1772
      %v1774 = vpop.f32.mrf.mxu0
      %v1775 = vpop.f32.mrf.mxu0
      %v1776 = vpop.f32.mrf.mxu0
      %1777 = vdwg.mxu0
      %1779 = vrot.lane.b32.xlu0 %v1549, 16
      %v1780 = vpop.permute.xlu0 %1779
      %1783 = vrot.lane.b32.xlu0 %v1661, 32
      %v1784 = vpop.permute.xlu0 %1783
      %1787 = vrot.lane.b32.xlu0 %v1773, 48
      %v1788 = vpop.permute.xlu0 %1787
      %v1790 = vsel %vm1332, %v1436, %v1780
      %vm1791 = vcmask 261120
      %v1792 = vsel %vm1791, %v1790, %v1784
      %vm1793 = vcmask 392192
      %v1794 = vsel %vm1793, %v1792, %v1788
      %v1795 = vld [vmem:[%s9] sm:$0xf]
      %v1796 = vld [vmem:[%s9 + $0x4] sm:$0xf]
      %v1797 = vld [vmem:[%s9 + $0x8] sm:$0xf]
      %v1798 = vld [vmem:[%s9 + $0xc] sm:$0xf]
      %v1799 = vld [vmem:[%s9 + $0x10] sm:$0xf]
      %v1800 = vld [vmem:[%s9 + $0x14] sm:$0xf]
      %v1801 = vld [vmem:[%s9 + $0x18] sm:$0xf]
      %v1802 = vld [vmem:[%s9 + $0x1c] sm:$0xf]
      %v1803 = vpack.c.bf16 %v1794, %v1794
      %v1812 = vunpack.c.l.b16 %v1795
      %v1813 = vunpack.c.l.b16 %v1796
      %v1814 = vunpack.c.l.b16 %v1797
      %v1815 = vunpack.c.l.b16 %v1798
      %v1816 = vunpack.c.l.b16 %v1799
      %v1817 = vunpack.c.l.b16 %v1800
      %v1818 = vunpack.c.l.b16 %v1801
      %v1819 = vunpack.c.l.b16 %v1802
      %v1820 = vpack.c.b16 %v1813, %v1812
      %v1821 = vpack.c.b16 %v1815, %v1814
      %v1822 = vpack.c.b16 %v1817, %v1816
      %v1823 = vpack.c.b16 %v1819, %v1818
      %v1829 = vsel %vm1164, %v1803, 0
      %1831 = vmatprep.subr.bf16.mxu0 0
      %1832 = vmatpush1.bf16.msra.mxu0 0
      %1833 = vmatprep.subr.bf16.mxu0 0
      %1834 = vmatpush1.bf16.msra.mxu0 0
      %1835 = vmatprep.subr.bf16.mxu0 0
      %1836 = vmatpush1.bf16.msra.mxu0 0
      %1837 = vmatprep.subr.bf16.mxu0 0
      %1838 = vmatpush1.bf16.msra.mxu0 0
      %1839 = vmatprep.subr.bf16.mxu0 0
      %1840 = vmatpush1.bf16.msra.mxu0 %v1823
      %1841 = vmatprep.subr.bf16.mxu0 0
      %1842 = vmatpush1.bf16.msra.mxu0 %v1822
      %1843 = vmatprep.subr.bf16.mxu0 0
      %1844 = vmatpush1.bf16.msra.mxu0 %v1821
      %1845 = vmatprep.subr.bf16.mxu0 0
      %1846 = vmatpush1.bf16.msra.mxu0 %v1820
      %1847 = vmatprep.subr.bf16.mxu0 0
      %1848 = vmatpush2.bf16.msra.mxu0 0
      %1849 = vmatprep.subr.bf16.mxu0 0
      %1850 = vmatpush2.bf16.msra.mxu0 0
      %1851 = vmatprep.subr.bf16.mxu0 0
      %1852 = vmatpush2.bf16.msra.mxu0 0
      %1853 = vmatprep.subr.bf16.mxu0 0
      %1854 = vmatpush2.bf16.msra.mxu0 0
      %1855 = vmatprep.subr.bf16.mxu0 0
      %1856 = vmatpush2.bf16.msra.mxu0 0
      %1857 = vmatprep.subr.bf16.mxu0 0
      %1858 = vmatpush2.bf16.msra.mxu0 0
      %1859 = vmatprep.subr.bf16.mxu0 0
      %1860 = vmatpush2.bf16.msra.mxu0 0
      %1861 = vmatprep.subr.bf16.mxu0 0
      %1862 = vmatpush2.bf16.msra.mxu0 0
      %1863 = vmatprep.mubr.bf16.mxu0 0
      %1864 = vmatmul.mubr.bf16.gmra.mxu0 %v1829
      %v1865 = vpop.f32.mrf.mxu0
      %v1866 = vadd.f32 0.0, %v1865
      %v1867 = vpop.f32.mrf.mxu0
      %v1868 = vpop.f32.mrf.mxu0
      %v1869 = vpop.f32.mrf.mxu0
      %1870 = vdwg.mxu0
      %v1871 = vadd.f32 %v1192, %v1866
      %v1872 = vld [vmem:[%s10] sm:$0x1]
      %v1874 = vlaneseq
      %v1875 = vshrl.u32 %v1874, 7
      %v1876 = vsub.s32 0, %v1875
      %v1877 = vrot.slane %v1872, %v1876
      %v1879 = vadd.f32 %v1871, %v1877
      %v1880 = vld [vmem:[%s11] sm:$0x1]
      %v1881 = vld [vmem:[%s12] sm:$0x1]
      %v1882 = vsel %vm1164, %v1879, 0.0
      %1883 = vadd.xlane.f32.xlu0 %v1882
      %v1884 = vpop.xlane.xlu0 %1883
      %v1885 = vmul.f32 %v1884, %v1168
      %v1886 = vsub.f32 %v1879, %v1885
      %v1887 = vmul.f32 %v1886, %v1886
      %v1888 = vsel %vm1164, %v1887, 0.0
      %1889 = vadd.xlane.f32.xlu0 %v1888
      %v1890 = vpop.xlane.xlu0 %1889
      %v1891 = vmul.f32 %v1890, %v1168
      %v1892 = vadd.f32 %v1891, 1e-05
      %v1893 = vrsqrt.pop %v1892
      %v1894 = vmul.f32 %v1886, %v1893
      %v1896 = vlaneseq
      %v1897 = vshrl.u32 %v1896, 7
      %v1898 = vsub.s32 0, %v1897
      %v1899 = vrot.slane %v1880, %v1898
      %v1901 = vmul.f32 %v1894, %v1899
      %v1903 = vlaneseq
      %v1904 = vshrl.u32 %v1903, 7
      %v1905 = vsub.s32 0, %v1904
      %v1906 = vrot.slane %v1881, %v1905
      %v1908 = vadd.f32 %v1901, %v1906
      %v1909 = vld [vmem:[%s13] sm:$0xff]
      %v1910 = vld [vmem:[%s13 + $0x8] sm:$0xff]
      %v1911 = vld [vmem:[%s13 + $0x10] sm:$0xff]
      %v1912 = vld [vmem:[%s13 + $0x18] sm:$0xff]
      %v1913 = vld [vmem:[%s13 + $0x20] sm:$0xff]
      %v1914 = vld [vmem:[%s13 + $0x28] sm:$0xff]
      %v1915 = vld [vmem:[%s13 + $0x30] sm:$0xff]
      %v1916 = vld [vmem:[%s13 + $0x38] sm:$0xff]
      %v1917 = vpack.c.bf16 %v1908, %v1908
      %v1918 = vld [vmem:[%s14] sm:$0x3]
      %v1920 = vlaneseq
      %v1921 = vshrl.u32 %v1920, 7
      %v1922 = vsub.s32 0, %v1921
      %v1923 = vrot.slane %v1918, %v1922
      %v1924 = vlaneseq
      %v1925 = vshrl.u32 %v1924, 7
      %v1926 = vsub.s32 1, %v1925
      %v1927 = vrot.slane %v1918, %v1926
      %v1938 = vunpack.c.l.b16 %v1909
      %v1939 = vunpack.c.h.b16 %v1909
      %v1940 = vunpack.c.l.b16 %v1910
      %v1941 = vunpack.c.h.b16 %v1910
      %v1942 = vunpack.c.l.b16 %v1911
      %v1943 = vunpack.c.h.b16 %v1911
      %v1944 = vunpack.c.l.b16 %v1912
      %v1945 = vunpack.c.h.b16 %v1912
      %v1946 = vunpack.c.l.b16 %v1913
      %v1947 = vunpack.c.h.b16 %v1913
      %v1948 = vunpack.c.l.b16 %v1914
      %v1949 = vunpack.c.h.b16 %v1914
      %v1950 = vunpack.c.l.b16 %v1915
      %v1951 = vunpack.c.h.b16 %v1915
      %v1952 = vunpack.c.l.b16 %v1916
      %v1953 = vunpack.c.h.b16 %v1916
      %v1954 = vpack.c.b16 %v1940, %v1938
      %v1955 = vpack.c.b16 %v1941, %v1939
      %v1956 = vpack.c.b16 %v1944, %v1942
      %v1957 = vpack.c.b16 %v1945, %v1943
      %v1958 = vpack.c.b16 %v1948, %v1946
      %v1959 = vpack.c.b16 %v1949, %v1947
      %v1960 = vpack.c.b16 %v1952, %v1950
      %v1961 = vpack.c.b16 %v1953, %v1951
      %v1971 = vsel %vm1164, %v1917, 0
      %1973 = vmatprep.subr.bf16.mxu0 0
      %1974 = vmatpush1.bf16.msra.mxu0 0
      %1975 = vmatprep.subr.bf16.mxu0 0
      %1976 = vmatpush1.bf16.msra.mxu0 0
      %1977 = vmatprep.subr.bf16.mxu0 0
      %1978 = vmatpush1.bf16.msra.mxu0 0
      %1979 = vmatprep.subr.bf16.mxu0 0
      %1980 = vmatpush1.bf16.msra.mxu0 0
      %1981 = vmatprep.subr.bf16.mxu0 %v1961
      %1982 = vmatpush1.bf16.msra.mxu0 %v1960
      %1983 = vmatprep.subr.bf16.mxu0 %v1959
      %1984 = vmatpush1.bf16.msra.mxu0 %v1958
      %1985 = vmatprep.subr.bf16.mxu0 %v1957
      %1986 = vmatpush1.bf16.msra.mxu0 %v1956
      %1987 = vmatprep.subr.bf16.mxu0 %v1955
      %1988 = vmatpush1.bf16.msra.mxu0 %v1954
      %1989 = vmatprep.subr.bf16.mxu0 0
      %1990 = vmatpush2.bf16.msra.mxu0 0
      %1991 = vmatprep.subr.bf16.mxu0 0
      %1992 = vmatpush2.bf16.msra.mxu0 0
      %1993 = vmatprep.subr.bf16.mxu0 0
      %1994 = vmatpush2.bf16.msra.mxu0 0
      %1995 = vmatprep.subr.bf16.mxu0 0
      %1996 = vmatpush2.bf16.msra.mxu0 0
      %1997 = vmatprep.subr.bf16.mxu0 0
      %1998 = vmatpush2.bf16.msra.mxu0 0
      %1999 = vmatprep.subr.bf16.mxu0 0
      %2000 = vmatpush2.bf16.msra.mxu0 0
      %2001 = vmatprep.subr.bf16.mxu0 0
      %2002 = vmatpush2.bf16.msra.mxu0 0
      %2003 = vmatprep.subr.bf16.mxu0 0
      %2004 = vmatpush2.bf16.msra.mxu0 0
      %2005 = vmatprep.mubr.bf16.mxu0 0
      %2006 = vmatmul.mubr.bf16.gmra.mxu0 %v1971
      %v2007 = vpop.f32.mrf.mxu0
      %v2008 = vadd.f32 %v1923, %v2007
      %v2009 = vpop.f32.mrf.mxu0
      %v2010 = vadd.f32 %v1927, %v2009
      %v2011 = vpop.f32.mrf.mxu0
      %v2012 = vpop.f32.mrf.mxu0
      %2013 = vdwg.mxu0
      %v2014 = vmul.f32 %v2008, 1.702
      %v2015 = vmul.f32 %v2010, 1.702
      %v2016 = vxor.u32 %v2014, 2147483648
      %v2017 = vxor.u32 %v2015, 2147483648
      %v2018 = vmul.f32 %v2016, 1.442695
      %v2019 = vpow.pop %v2018
      %v2020 = vmul.f32 %v2017, 1.442695
      %v2021 = vpow.pop %v2020
      %v2022 = vadd.f32 %v2019, 1.0
      %v2023 = vadd.f32 %v2021, 1.0
      %v2024 = vrcp.pop %v2022
      %v2025 = vmul.f32 1.0, %v2024
      %v2026 = vrcp.pop %v2023
      %v2027 = vmul.f32 1.0, %v2026
      %v2028 = vmul.f32 %v2008, %v2025
      %v2029 = vmul.f32 %v2010, %v2027
      %v2030 = vld [vmem:[%s15] sm:$0xf]
      %v2031 = vld [vmem:[%s15 + $0x4] sm:$0xf]
      %v2032 = vld [vmem:[%s15 + $0x8] sm:$0xf]
      %v2033 = vld [vmem:[%s15 + $0xc] sm:$0xf]
      %v2034 = vld [vmem:[%s15 + $0x10] sm:$0xf]
      %v2035 = vld [vmem:[%s15 + $0x14] sm:$0xf]
      %v2036 = vld [vmem:[%s15 + $0x18] sm:$0xf]
      %v2037 = vld [vmem:[%s15 + $0x1c] sm:$0xf]
      %v2038 = vld [vmem:[%s15 + $0x20] sm:$0xf]
      %v2039 = vld [vmem:[%s15 + $0x24] sm:$0xf]
      %v2040 = vld [vmem:[%s15 + $0x28] sm:$0xf]
      %v2041 = vld [vmem:[%s15 + $0x2c] sm:$0xf]
      %v2042 = vld [vmem:[%s15 + $0x30] sm:$0xf]
      %v2043 = vld [vmem:[%s15 + $0x34] sm:$0xf]
      %v2044 = vld [vmem:[%s15 + $0x38] sm:$0xf]
      %v2045 = vld [vmem:[%s15 + $0x3c] sm:$0xf]
      %v2046 = vld [vmem:[%s15 + $0x40] sm:$0xf]
      %v2047 = vld [vmem:[%s15 + $0x44] sm:$0xf]
      %v2048 = vld [vmem:[%s15 + $0x48] sm:$0xf]
      %v2049 = vld [vmem:[%s15 + $0x4c] sm:$0xf]
      %v2050 = vld [vmem:[%s15 + $0x50] sm:$0xf]
      %v2051 = vld [vmem:[%s15 + $0x54] sm:$0xf]
      %v2052 = vld [vmem:[%s15 + $0x58] sm:$0xf]
      %v2053 = vld [vmem:[%s15 + $0x5c] sm:$0xf]
      %v2054 = vld [vmem:[%s15 + $0x60] sm:$0xf]
      %v2055 = vld [vmem:[%s15 + $0x64] sm:$0xf]
      %v2056 = vld [vmem:[%s15 + $0x68] sm:$0xf]
      %v2057 = vld [vmem:[%s15 + $0x6c] sm:$0xf]
      %v2058 = vld [vmem:[%s15 + $0x70] sm:$0xf]
      %v2059 = vld [vmem:[%s15 + $0x74] sm:$0xf]
      %v2060 = vld [vmem:[%s15 + $0x78] sm:$0xf]
      %v2061 = vld [vmem:[%s15 + $0x7c] sm:$0xf]
      %v2062 = vpack.c.bf16 %v2028, %v2028
      %v2063 = vpack.c.bf16 %v2029, %v2029
      %v2096 = vunpack.c.l.b16 %v2030
      %v2097 = vunpack.c.l.b16 %v2031
      %v2098 = vunpack.c.l.b16 %v2032
      %v2099 = vunpack.c.l.b16 %v2033
      %v2100 = vunpack.c.l.b16 %v2034
      %v2101 = vunpack.c.l.b16 %v2035
      %v2102 = vunpack.c.l.b16 %v2036
      %v2103 = vunpack.c.l.b16 %v2037
      %v2104 = vunpack.c.l.b16 %v2038
      %v2105 = vunpack.c.l.b16 %v2039
      %v2106 = vunpack.c.l.b16 %v2040
      %v2107 = vunpack.c.l.b16 %v2041
      %v2108 = vunpack.c.l.b16 %v2042
      %v2109 = vunpack.c.l.b16 %v2043
      %v2110 = vunpack.c.l.b16 %v2044
      %v2111 = vunpack.c.l.b16 %v2045
      %v2112 = vunpack.c.l.b16 %v2046
      %v2113 = vunpack.c.l.b16 %v2047
      %v2114 = vunpack.c.l.b16 %v2048
      %v2115 = vunpack.c.l.b16 %v2049
      %v2116 = vunpack.c.l.b16 %v2050
      %v2117 = vunpack.c.l.b16 %v2051
      %v2118 = vunpack.c.l.b16 %v2052
      %v2119 = vunpack.c.l.b16 %v2053
      %v2120 = vunpack.c.l.b16 %v2054
      %v2121 = vunpack.c.l.b16 %v2055
      %v2122 = vunpack.c.l.b16 %v2056
      %v2123 = vunpack.c.l.b16 %v2057
      %v2124 = vunpack.c.l.b16 %v2058
      %v2125 = vunpack.c.l.b16 %v2059
      %v2126 = vunpack.c.l.b16 %v2060
      %v2127 = vunpack.c.l.b16 %v2061
      %v2128 = vpack.c.b16 %v2097, %v2096
      %v2129 = vpack.c.b16 %v2099, %v2098
      %v2130 = vpack.c.b16 %v2101, %v2100
      %v2131 = vpack.c.b16 %v2103, %v2102
      %v2132 = vpack.c.b16 %v2105, %v2104
      %v2133 = vpack.c.b16 %v2107, %v2106
      %v2134 = vpack.c.b16 %v2109, %v2108
      %v2135 = vpack.c.b16 %v2111, %v2110
      %v2136 = vpack.c.b16 %v2113, %v2112
      %v2137 = vpack.c.b16 %v2115, %v2114
      %v2138 = vpack.c.b16 %v2117, %v2116
      %v2139 = vpack.c.b16 %v2119, %v2118
      %v2140 = vpack.c.b16 %v2121, %v2120
      %v2141 = vpack.c.b16 %v2123, %v2122
      %v2142 = vpack.c.b16 %v2125, %v2124
      %v2143 = vpack.c.b16 %v2127, %v2126
      %2160 = vmatprep.subr.bf16.mxu0 0
      %2161 = vmatpush1.bf16.msra.mxu0 %v2135
      %2162 = vmatprep.subr.bf16.mxu0 0
      %2163 = vmatpush1.bf16.msra.mxu0 %v2134
      %2164 = vmatprep.subr.bf16.mxu0 0
      %2165 = vmatpush1.bf16.msra.mxu0 %v2133
      %2166 = vmatprep.subr.bf16.mxu0 0
      %2167 = vmatpush1.bf16.msra.mxu0 %v2132
      %2168 = vmatprep.subr.bf16.mxu0 0
      %2169 = vmatpush1.bf16.msra.mxu0 %v2131
      %2170 = vmatprep.subr.bf16.mxu0 0
      %2171 = vmatpush1.bf16.msra.mxu0 %v2130
      %2172 = vmatprep.subr.bf16.mxu0 0
      %2173 = vmatpush1.bf16.msra.mxu0 %v2129
      %2174 = vmatprep.subr.bf16.mxu0 0
      %2175 = vmatpush1.bf16.msra.mxu0 %v2128
      %2176 = vmatprep.subr.bf16.mxu0 0
      %2177 = vmatpush2.bf16.msra.mxu0 %v2143
      %2178 = vmatprep.subr.bf16.mxu0 0
      %2179 = vmatpush2.bf16.msra.mxu0 %v2142
      %2180 = vmatprep.subr.bf16.mxu0 0
      %2181 = vmatpush2.bf16.msra.mxu0 %v2141
      %2182 = vmatprep.subr.bf16.mxu0 0
      %2183 = vmatpush2.bf16.msra.mxu0 %v2140
      %2184 = vmatprep.subr.bf16.mxu0 0
      %2185 = vmatpush2.bf16.msra.mxu0 %v2139
      %2186 = vmatprep.subr.bf16.mxu0 0
      %2187 = vmatpush2.bf16.msra.mxu0 %v2138
      %2188 = vmatprep.subr.bf16.mxu0 0
      %2189 = vmatpush2.bf16.msra.mxu0 %v2137
      %2190 = vmatprep.subr.bf16.mxu0 0
      %2191 = vmatpush2.bf16.msra.mxu0 %v2136
      %2192 = vmatprep.mubr.bf16.mxu0 %v2063
      %2193 = vmatmul.mubr.bf16.gmra.mxu0 %v2062
      %v2194 = vpop.f32.mrf.mxu0
      %v2195 = vadd.f32 0.0, %v2194
      %v2196 = vpop.f32.mrf.mxu0
      %v2197 = vpop.f32.mrf.mxu0
      %v2198 = vpop.f32.mrf.mxu0
      %2199 = vdwg.mxu0
      %v2200 = vadd.f32 %v1879, %v2195
      %v2201 = vld [vmem:[%s16] sm:$0x1]
      %v2203 = vlaneseq
      %v2204 = vshrl.u32 %v2203, 7
      %v2205 = vsub.s32 0, %v2204
      %v2206 = vrot.slane %v2201, %v2205
      %v2208 = vadd.f32 %v2200, %v2206
      %s2209 = scalar_lea.vmem %s5, 1
      %v2210 = vld [vmem:[%s2209] sm:$0x1]
      %s2211 = scalar_lea.vmem %s6, 1
      %v2212 = vld [vmem:[%s2211] sm:$0x1]
      %v2213 = vsel %vm1164, %v2208, 0.0
      %2214 = vadd.xlane.f32.xlu0 %v2213
      %v2215 = vpop.xlane.xlu0 %2214
      %v2216 = vmul.f32 %v2215, %v1168
      %v2217 = vsub.f32 %v2208, %v2216
      %v2218 = vmul.f32 %v2217, %v2217
      %v2219 = vsel %vm1164, %v2218, 0.0
      %2220 = vadd.xlane.f32.xlu0 %v2219
      %v2221 = vpop.xlane.xlu0 %2220
      %v2222 = vmul.f32 %v2221, %v1168
      %v2223 = vadd.f32 %v2222, 1e-05
      %v2224 = vrsqrt.pop %v2223
      %v2225 = vmul.f32 %v2217, %v2224
      %v2227 = vlaneseq
      %v2228 = vshrl.u32 %v2227, 7
      %v2229 = vsub.s32 0, %v2228
      %v2230 = vrot.slane %v2210, %v2229
      %v2232 = vmul.f32 %v2225, %v2230
      %v2234 = vlaneseq
      %v2235 = vshrl.u32 %v2234, 7
      %v2236 = vsub.s32 0, %v2235
      %v2237 = vrot.slane %v2212, %v2236
      %v2239 = vadd.f32 %v2232, %v2237
      %s2240 = scalar_lea.vmem %s7, 64
      %v2241 = vld [vmem:[%s2240] sm:$0xff]
      %v2242 = vld [vmem:[%s2240 + $0x8] sm:$0xff]
      %v2243 = vld [vmem:[%s2240 + $0x10] sm:$0xff]
      %v2244 = vld [vmem:[%s2240 + $0x18] sm:$0xff]
      %v2245 = vld [vmem:[%s2240 + $0x20] sm:$0xff]
      %v2246 = vld [vmem:[%s2240 + $0x28] sm:$0xff]
      %v2247 = vld [vmem:[%s2240 + $0x30] sm:$0xff]
      %v2248 = vld [vmem:[%s2240 + $0x38] sm:$0xff]
      %v2249 = vpack.c.bf16 %v2239, %v2239
      %s2250 = scalar_lea.vmem %s8, 2
      %v2251 = vld [vmem:[%s2250] sm:$0x3]
      %v2253 = vlaneseq
      %v2254 = vshrl.u32 %v2253, 7
      %v2255 = vsub.s32 0, %v2254
      %v2256 = vrot.slane %v2251, %v2255
      %v2257 = vlaneseq
      %v2258 = vshrl.u32 %v2257, 7
      %v2259 = vsub.s32 1, %v2258
      %v2260 = vrot.slane %v2251, %v2259
      %v2271 = vunpack.c.l.b16 %v2241
      %v2272 = vunpack.c.h.b16 %v2241
      %v2273 = vunpack.c.l.b16 %v2242
      %v2274 = vunpack.c.h.b16 %v2242
      %v2275 = vunpack.c.l.b16 %v2243
      %v2276 = vunpack.c.h.b16 %v2243
      %v2277 = vunpack.c.l.b16 %v2244
      %v2278 = vunpack.c.h.b16 %v2244
      %v2279 = vunpack.c.l.b16 %v2245
      %v2280 = vunpack.c.h.b16 %v2245
      %v2281 = vunpack.c.l.b16 %v2246
      %v2282 = vunpack.c.h.b16 %v2246
      %v2283 = vunpack.c.l.b16 %v2247
      %v2284 = vunpack.c.h.b16 %v2247
      %v2285 = vunpack.c.l.b16 %v2248
      %v2286 = vunpack.c.h.b16 %v2248
      %v2287 = vpack.c.b16 %v2273, %v2271
      %v2288 = vpack.c.b16 %v2274, %v2272
      %v2289 = vpack.c.b16 %v2277, %v2275
      %v2290 = vpack.c.b16 %v2278, %v2276
      %v2291 = vpack.c.b16 %v2281, %v2279
      %v2292 = vpack.c.b16 %v2282, %v2280
      %v2293 = vpack.c.b16 %v2285, %v2283
      %v2294 = vpack.c.b16 %v2286, %v2284
      %v2304 = vsel %vm1164, %v2249, 0
      %2306 = vmatprep.subr.bf16.mxu0 0
      %2307 = vmatpush1.bf16.msra.mxu0 0
      %2308 = vmatprep.subr.bf16.mxu0 0
      %2309 = vmatpush1.bf16.msra.mxu0 0
      %2310 = vmatprep.subr.bf16.mxu0 0
      %2311 = vmatpush1.bf16.msra.mxu0 0
      %2312 = vmatprep.subr.bf16.mxu0 0
      %2313 = vmatpush1.bf16.msra.mxu0 0
      %2314 = vmatprep.subr.bf16.mxu0 %v2294
      %2315 = vmatpush1.bf16.msra.mxu0 %v2293
      %2316 = vmatprep.subr.bf16.mxu0 %v2292
      %2317 = vmatpush1.bf16.msra.mxu0 %v2291
      %2318 = vmatprep.subr.bf16.mxu0 %v2290
      %2319 = vmatpush1.bf16.msra.mxu0 %v2289
      %2320 = vmatprep.subr.bf16.mxu0 %v2288
      %2321 = vmatpush1.bf16.msra.mxu0 %v2287
      %2322 = vmatprep.subr.bf16.mxu0 0
      %2323 = vmatpush2.bf16.msra.mxu0 0
      %2324 = vmatprep.subr.bf16.mxu0 0
      %2325 = vmatpush2.bf16.msra.mxu0 0
      %2326 = vmatprep.subr.bf16.mxu0 0
      %2327 = vmatpush2.bf16.msra.mxu0 0
      %2328 = vmatprep.subr.bf16.mxu0 0
      %2329 = vmatpush2.bf16.msra.mxu0 0
      %2330 = vmatprep.subr.bf16.mxu0 0
      %2331 = vmatpush2.bf16.msra.mxu0 0
      %2332 = vmatprep.subr.bf16.mxu0 0
      %2333 = vmatpush2.bf16.msra.mxu0 0
      %2334 = vmatprep.subr.bf16.mxu0 0
      %2335 = vmatpush2.bf16.msra.mxu0 0
      %2336 = vmatprep.subr.bf16.mxu0 0
      %2337 = vmatpush2.bf16.msra.mxu0 0
      %2338 = vmatprep.mubr.bf16.mxu0 0
      %2339 = vmatmul.mubr.bf16.gmra.mxu0 %v2304
      %v2340 = vpop.f32.mrf.mxu0
      %v2341 = vadd.f32 %v2256, %v2340
      %v2342 = vpop.f32.mrf.mxu0
      %v2343 = vadd.f32 %v2260, %v2342
      %v2344 = vpop.f32.mrf.mxu0
      %v2345 = vpop.f32.mrf.mxu0
      %2346 = vdwg.mxu0
      %v2347 = vpack.c.bf16 %v2341, %v2341
      %v2348 = vpack.c.bf16 %v2343, %v2343
      %2350 = vrot.lane.b32.xlu0 %v2347, 64
      %v2351 = vpop.permute.xlu0 %2350
      %v2353 = vsel %vm1332, %v2347, 0
      %v2356 = vsel %vm1332, %v2351, 0
      %2358 = vmatprep.subr.bf16.mxu0 0
      %2359 = vmatpush1.bf16.xpose.msra.mxu0 0
      %2360 = vmatprep.subr.bf16.mxu0 0
      %2361 = vmatpush1.bf16.xpose.msra.mxu0 0
      %2362 = vmatprep.subr.bf16.mxu0 0
      %2363 = vmatpush1.bf16.xpose.msra.mxu0 0
      %2364 = vmatprep.subr.bf16.mxu0 0
      %2365 = vmatpush1.bf16.xpose.msra.mxu0 0
      %2366 = vmatprep.subr.bf16.mxu0 0
      %2367 = vmatpush1.bf16.xpose.msra.mxu0 0
      %2368 = vmatprep.subr.bf16.mxu0 0
      %2369 = vmatpush1.bf16.xpose.msra.mxu0 0
      %2370 = vmatprep.subr.bf16.mxu0 0
      %2371 = vmatpush1.bf16.xpose.msra.mxu0 0
      %2372 = vmatprep.subr.bf16.mxu0 0
      %2373 = vmatpush1.bf16.xpose.msra.mxu0 %v2356
      %2374 = vmatprep.subr.bf16.mxu0 0
      %2375 = vmatpush2.bf16.xpose.msra.mxu0 0
      %2376 = vmatprep.subr.bf16.mxu0 0
      %2377 = vmatpush2.bf16.xpose.msra.mxu0 0
      %2378 = vmatprep.subr.bf16.mxu0 0
      %2379 = vmatpush2.bf16.xpose.msra.mxu0 0
      %2380 = vmatprep.subr.bf16.mxu0 0
      %2381 = vmatpush2.bf16.xpose.msra.mxu0 0
      %2382 = vmatprep.subr.bf16.mxu0 0
      %2383 = vmatpush2.bf16.xpose.msra.mxu0 0
      %2384 = vmatprep.subr.bf16.mxu0 0
      %2385 = vmatpush2.bf16.xpose.msra.mxu0 0
      %2386 = vmatprep.subr.bf16.mxu0 0
      %2387 = vmatpush2.bf16.xpose.msra.mxu0 0
      %2388 = vmatprep.subr.bf16.mxu0 0
      %2389 = vmatpush2.bf16.xpose.msra.mxu0 0
      %2390 = vmatprep.mubr.bf16.mxu0 0
      %2391 = vmatmul.mubr.bf16.gmra.mxu0 %v2353
      %v2392 = vpop.f32.mrf.mxu0
      %v2393 = vadd.f32 0.0, %v2392
      %v2394 = vpop.f32.mrf.mxu0
      %v2395 = vpop.f32.mrf.mxu0
      %v2396 = vpop.f32.mrf.mxu0
      %2397 = vdwg.mxu0
      %v2398 = vmul.f32 %v2393, 0.25
      %v2399 = vadd.f32 %v2398, %v632
      %v2400 = vsel %vm1381, %v2399, -inf
      %2401 = vmax.xlane.f32.xlu0 %v2400
      %v2402 = vpop.xlane.xlu0 %2401
      %v2403 = vsub.f32 %v2399, %v2402
      %v2404 = vmul.f32 %v2403, 1.442695
      %v2405 = vpow.pop %v2404
      %v2406 = vsel %vm1381, %v2405, 0.0
      %2407 = vadd.xlane.f32.xlu0 %v2406
      %v2408 = vpop.xlane.xlu0 %2407
      %v2409 = vrcp.pop %v2408
      %v2410 = vmul.f32 %v2405, %v2409
      %v2411 = vpack.c.bf16 %v2410, %v2410
      %v2413 = vsel %vm1381, %v2411, 0
      %v2416 = vsel %vm1397, %v2348, 0
      %2418 = vmatprep.subr.bf16.mxu0 0
      %2419 = vmatpush1.bf16.msra.mxu0 0
      %2420 = vmatprep.subr.bf16.mxu0 0
      %2421 = vmatpush1.bf16.msra.mxu0 0
      %2422 = vmatprep.subr.bf16.mxu0 0
      %2423 = vmatpush1.bf16.msra.mxu0 0
      %2424 = vmatprep.subr.bf16.mxu0 0
      %2425 = vmatpush1.bf16.msra.mxu0 0
      %2426 = vmatprep.subr.bf16.mxu0 0
      %2427 = vmatpush1.bf16.msra.mxu0 0
      %2428 = vmatprep.subr.bf16.mxu0 0
      %2429 = vmatpush1.bf16.msra.mxu0 0
      %2430 = vmatprep.subr.bf16.mxu0 0
      %2431 = vmatpush1.bf16.msra.mxu0 0
      %2432 = vmatprep.subr.bf16.mxu0 0
      %2433 = vmatpush1.bf16.msra.mxu0 %v2416
      %2434 = vmatprep.subr.bf16.mxu0 0
      %2435 = vmatpush2.bf16.msra.mxu0 0
      %2436 = vmatprep.subr.bf16.mxu0 0
      %2437 = vmatpush2.bf16.msra.mxu0 0
      %2438 = vmatprep.subr.bf16.mxu0 0
      %2439 = vmatpush2.bf16.msra.mxu0 0
      %2440 = vmatprep.subr.bf16.mxu0 0
      %2441 = vmatpush2.bf16.msra.mxu0 0
      %2442 = vmatprep.subr.bf16.mxu0 0
      %2443 = vmatpush2.bf16.msra.mxu0 0
      %2444 = vmatprep.subr.bf16.mxu0 0
      %2445 = vmatpush2.bf16.msra.mxu0 0
      %2446 = vmatprep.subr.bf16.mxu0 0
      %2447 = vmatpush2.bf16.msra.mxu0 0
      %2448 = vmatprep.subr.bf16.mxu0 0
      %2449 = vmatpush2.bf16.msra.mxu0 0
      %2450 = vmatprep.mubr.bf16.mxu0 0
      %2451 = vmatmul.mubr.bf16.gmra.mxu0 %v2413
      %v2452 = vpop.f32.mrf.mxu0
      %v2453 = vadd.f32 0.0, %v2452
      %v2454 = vpop.f32.mrf.mxu0
      %v2455 = vpop.f32.mrf.mxu0
      %v2456 = vpop.f32.mrf.mxu0
      %2457 = vdwg.mxu0
      %2458 = vrot.lane.b32.xlu0 %v2347, 112
      %v2459 = vpop.permute.xlu0 %2458
      %2460 = vrot.lane.b32.xlu0 %v2347, 48
      %v2461 = vpop.permute.xlu0 %2460
      %v2463 = vsel %vm1332, %v2459, 0
      %v2466 = vsel %vm1332, %v2461, 0
      %2468 = vmatprep.subr.bf16.mxu0 0
      %2469 = vmatpush1.bf16.xpose.msra.mxu0 0
      %2470 = vmatprep.subr.bf16.mxu0 0
      %2471 = vmatpush1.bf16.xpose.msra.mxu0 0
      %2472 = vmatprep.subr.bf16.mxu0 0
      %2473 = vmatpush1.bf16.xpose.msra.mxu0 0
      %2474 = vmatprep.subr.bf16.mxu0 0
      %2475 = vmatpush1.bf16.xpose.msra.mxu0 0
      %2476 = vmatprep.subr.bf16.mxu0 0
      %2477 = vmatpush1.bf16.xpose.msra.mxu0 0
      %2478 = vmatprep.subr.bf16.mxu0 0
      %2479 = vmatpush1.bf16.xpose.msra.mxu0 0
      %2480 = vmatprep.subr.bf16.mxu0 0
      %2481 = vmatpush1.bf16.xpose.msra.mxu0 0
      %2482 = vmatprep.subr.bf16.mxu0 0
      %2483 = vmatpush1.bf16.xpose.msra.mxu0 %v2466
      %2484 = vmatprep.subr.bf16.mxu0 0
      %2485 = vmatpush2.bf16.xpose.msra.mxu0 0
      %2486 = vmatprep.subr.bf16.mxu0 0
      %2487 = vmatpush2.bf16.xpose.msra.mxu0 0
      %2488 = vmatprep.subr.bf16.mxu0 0
      %2489 = vmatpush2.bf16.xpose.msra.mxu0 0
      %2490 = vmatprep.subr.bf16.mxu0 0
      %2491 = vmatpush2.bf16.xpose.msra.mxu0 0
      %2492 = vmatprep.subr.bf16.mxu0 0
      %2493 = vmatpush2.bf16.xpose.msra.mxu0 0
      %2494 = vmatprep.subr.bf16.mxu0 0
      %2495 = vmatpush2.bf16.xpose.msra.mxu0 0
      %2496 = vmatprep.subr.bf16.mxu0 0
      %2497 = vmatpush2.bf16.xpose.msra.mxu0 0
      %2498 = vmatprep.subr.bf16.mxu0 0
      %2499 = vmatpush2.bf16.xpose.msra.mxu0 0
      %2500 = vmatprep.mubr.bf16.mxu0 0
      %2501 = vmatmul.mubr.bf16.gmra.mxu0 %v2463
      %v2502 = vpop.f32.mrf.mxu0
      %v2503 = vadd.f32 0.0, %v2502
      %v2504 = vpop.f32.mrf.mxu0
      %v2505 = vpop.f32.mrf.mxu0
      %v2506 = vpop.f32.mrf.mxu0
      %2507 = vdwg.mxu0
      %v2508 = vmul.f32 %v2503, 0.25
      %v2509 = vadd.f32 %v2508, %v632
      %v2510 = vsel %vm1381, %v2509, -inf
      %2511 = vmax.xlane.f32.xlu0 %v2510
      %v2512 = vpop.xlane.xlu0 %2511
      %v2513 = vsub.f32 %v2509, %v2512
      %v2514 = vmul.f32 %v2513, 1.442695
      %v2515 = vpow.pop %v2514
      %v2516 = vsel %vm1381, %v2515, 0.0
      %2517 = vadd.xlane.f32.xlu0 %v2516
      %v2518 = vpop.xlane.xlu0 %2517
      %v2519 = vrcp.pop %v2518
      %v2520 = vmul.f32 %v2515, %v2519
      %v2521 = vpack.c.bf16 %v2520, %v2520
      %2523 = vrot.lane.b32.xlu0 %v2348, 112
      %v2524 = vpop.permute.xlu0 %2523
      %v2526 = vsel %vm1381, %v2521, 0
      %v2529 = vsel %vm1397, %v2524, 0
      %2531 = vmatprep.subr.bf16.mxu0 0
      %2532 = vmatpush1.bf16.msra.mxu0 0
      %2533 = vmatprep.subr.bf16.mxu0 0
      %2534 = vmatpush1.bf16.msra.mxu0 0
      %2535 = vmatprep.subr.bf16.mxu0 0
      %2536 = vmatpush1.bf16.msra.mxu0 0
      %2537 = vmatprep.subr.bf16.mxu0 0
      %2538 = vmatpush1.bf16.msra.mxu0 0
      %2539 = vmatprep.subr.bf16.mxu0 0
      %2540 = vmatpush1.bf16.msra.mxu0 0
      %2541 = vmatprep.subr.bf16.mxu0 0
      %2542 = vmatpush1.bf16.msra.mxu0 0
      %2543 = vmatprep.subr.bf16.mxu0 0
      %2544 = vmatpush1.bf16.msra.mxu0 0
      %2545 = vmatprep.subr.bf16.mxu0 0
      %2546 = vmatpush1.bf16.msra.mxu0 %v2529
      %2547 = vmatprep.subr.bf16.mxu0 0
      %2548 = vmatpush2.bf16.msra.mxu0 0
      %2549 = vmatprep.subr.bf16.mxu0 0
      %2550 = vmatpush2.bf16.msra.mxu0 0
      %2551 = vmatprep.subr.bf16.mxu0 0
      %2552 = vmatpush2.bf16.msra.mxu0 0
      %2553 = vmatprep.subr.bf16.mxu0 0
      %2554 = vmatpush2.bf16.msra.mxu0 0
      %2555 = vmatprep.subr.bf16.mxu0 0
      %2556 = vmatpush2.bf16.msra.mxu0 0
      %2557 = vmatprep.subr.bf16.mxu0 0
      %2558 = vmatpush2.bf16.msra.mxu0 0
      %2559 = vmatprep.subr.bf16.mxu0 0
      %2560 = vmatpush2.bf16.msra.mxu0 0
      %2561 = vmatprep.subr.bf16.mxu0 0
      %2562 = vmatpush2.bf16.msra.mxu0 0
      %2563 = vmatprep.mubr.bf16.mxu0 0
      %2564 = vmatmul.mubr.bf16.gmra.mxu0 %v2526
      %v2565 = vpop.f32.mrf.mxu0
      %v2566 = vadd.f32 0.0, %v2565
      %v2567 = vpop.f32.mrf.mxu0
      %v2568 = vpop.f32.mrf.mxu0
      %v2569 = vpop.f32.mrf.mxu0
      %2570 = vdwg.mxu0
      %2571 = vrot.lane.b32.xlu0 %v2347, 96
      %v2572 = vpop.permute.xlu0 %2571
      %2573 = vrot.lane.b32.xlu0 %v2347, 32
      %v2574 = vpop.permute.xlu0 %2573
      %v2576 = vsel %vm1332, %v2572, 0
      %v2579 = vsel %vm1332, %v2574, 0
      %2581 = vmatprep.subr.bf16.mxu0 0
      %2582 = vmatpush1.bf16.xpose.msra.mxu0 0
      %2583 = vmatprep.subr.bf16.mxu0 0
      %2584 = vmatpush1.bf16.xpose.msra.mxu0 0
      %2585 = vmatprep.subr.bf16.mxu0 0
      %2586 = vmatpush1.bf16.xpose.msra.mxu0 0
      %2587 = vmatprep.subr.bf16.mxu0 0
      %2588 = vmatpush1.bf16.xpose.msra.mxu0 0
      %2589 = vmatprep.subr.bf16.mxu0 0
      %2590 = vmatpush1.bf16.xpose.msra.mxu0 0
      %2591 = vmatprep.subr.bf16.mxu0 0
      %2592 = vmatpush1.bf16.xpose.msra.mxu0 0
      %2593 = vmatprep.subr.bf16.mxu0 0
      %2594 = vmatpush1.bf16.xpose.msra.mxu0 0
      %2595 = vmatprep.subr.bf16.mxu0 0
      %2596 = vmatpush1.bf16.xpose.msra.mxu0 %v2579
      %2597 = vmatprep.subr.bf16.mxu0 0
      %2598 = vmatpush2.bf16.xpose.msra.mxu0 0
      %2599 = vmatprep.subr.bf16.mxu0 0
      %2600 = vmatpush2.bf16.xpose.msra.mxu0 0
      %2601 = vmatprep.subr.bf16.mxu0 0
      %2602 = vmatpush2.bf16.xpose.msra.mxu0 0
      %2603 = vmatprep.subr.bf16.mxu0 0
      %2604 = vmatpush2.bf16.xpose.msra.mxu0 0
      %2605 = vmatprep.subr.bf16.mxu0 0
      %2606 = vmatpush2.bf16.xpose.msra.mxu0 0
      %2607 = vmatprep.subr.bf16.mxu0 0
      %2608 = vmatpush2.bf16.xpose.msra.mxu0 0
      %2609 = vmatprep.subr.bf16.mxu0 0
      %2610 = vmatpush2.bf16.xpose.msra.mxu0 0
      %2611 = vmatprep.subr.bf16.mxu0 0
      %2612 = vmatpush2.bf16.xpose.msra.mxu0 0
      %2613 = vmatprep.mubr.bf16.mxu0 0
      %2614 = vmatmul.mubr.bf16.gmra.mxu0 %v2576
      %v2615 = vpop.f32.mrf.mxu0
      %v2616 = vadd.f32 0.0, %v2615
      %v2617 = vpop.f32.mrf.mxu0
      %v2618 = vpop.f32.mrf.mxu0
      %v2619 = vpop.f32.mrf.mxu0
      %2620 = vdwg.mxu0
      %v2621 = vmul.f32 %v2616, 0.25
      %v2622 = vadd.f32 %v2621, %v632
      %v2623 = vsel %vm1381, %v2622, -inf
      %2624 = vmax.xlane.f32.xlu0 %v2623
      %v2625 = vpop.xlane.xlu0 %2624
      %v2626 = vsub.f32 %v2622, %v2625
      %v2627 = vmul.f32 %v2626, 1.442695
      %v2628 = vpow.pop %v2627
      %v2629 = vsel %vm1381, %v2628, 0.0
      %2630 = vadd.xlane.f32.xlu0 %v2629
      %v2631 = vpop.xlane.xlu0 %2630
      %v2632 = vrcp.pop %v2631
      %v2633 = vmul.f32 %v2628, %v2632
      %v2634 = vpack.c.bf16 %v2633, %v2633
      %2635 = vrot.lane.b32.xlu0 %v2348, 96
      %v2636 = vpop.permute.xlu0 %2635
      %v2638 = vsel %vm1381, %v2634, 0
      %v2641 = vsel %vm1397, %v2636, 0
      %2643 = vmatprep.subr.bf16.mxu0 0
      %2644 = vmatpush1.bf16.msra.mxu0 0
      %2645 = vmatprep.subr.bf16.mxu0 0
      %2646 = vmatpush1.bf16.msra.mxu0 0
      %2647 = vmatprep.subr.bf16.mxu0 0
      %2648 = vmatpush1.bf16.msra.mxu0 0
      %2649 = vmatprep.subr.bf16.mxu0 0
      %2650 = vmatpush1.bf16.msra.mxu0 0
      %2651 = vmatprep.subr.bf16.mxu0 0
      %2652 = vmatpush1.bf16.msra.mxu0 0
      %2653 = vmatprep.subr.bf16.mxu0 0
      %2654 = vmatpush1.bf16.msra.mxu0 0
      %2655 = vmatprep.subr.bf16.mxu0 0
      %2656 = vmatpush1.bf16.msra.mxu0 0
      %2657 = vmatprep.subr.bf16.mxu0 0
      %2658 = vmatpush1.bf16.msra.mxu0 %v2641
      %2659 = vmatprep.subr.bf16.mxu0 0
      %2660 = vmatpush2.bf16.msra.mxu0 0
      %2661 = vmatprep.subr.bf16.mxu0 0
      %2662 = vmatpush2.bf16.msra.mxu0 0
      %2663 = vmatprep.subr.bf16.mxu0 0
      %2664 = vmatpush2.bf16.msra.mxu0 0
      %2665 = vmatprep.subr.bf16.mxu0 0
      %2666 = vmatpush2.bf16.msra.mxu0 0
      %2667 = vmatprep.subr.bf16.mxu0 0
      %2668 = vmatpush2.bf16.msra.mxu0 0
      %2669 = vmatprep.subr.bf16.mxu0 0
      %2670 = vmatpush2.bf16.msra.mxu0 0
      %2671 = vmatprep.subr.bf16.mxu0 0
      %2672 = vmatpush2.bf16.msra.mxu0 0
      %2673 = vmatprep.subr.bf16.mxu0 0
      %2674 = vmatpush2.bf16.msra.mxu0 0
      %2675 = vmatprep.mubr.bf16.mxu0 0
      %2676 = vmatmul.mubr.bf16.gmra.mxu0 %v2638
      %v2677 = vpop.f32.mrf.mxu0
      %v2678 = vadd.f32 0.0, %v2677
      %v2679 = vpop.f32.mrf.mxu0
      %v2680 = vpop.f32.mrf.mxu0
      %v2681 = vpop.f32.mrf.mxu0
      %2682 = vdwg.mxu0
      %2683 = vrot.lane.b32.xlu0 %v2347, 80
      %v2684 = vpop.permute.xlu0 %2683
      %2685 = vrot.lane.b32.xlu0 %v2347, 16
      %v2686 = vpop.permute.xlu0 %2685
      %v2688 = vsel %vm1332, %v2684, 0
      %v2691 = vsel %vm1332, %v2686, 0
      %2693 = vmatprep.subr.bf16.mxu0 0
      %2694 = vmatpush1.bf16.xpose.msra.mxu0 0
      %2695 = vmatprep.subr.bf16.mxu0 0
      %2696 = vmatpush1.bf16.xpose.msra.mxu0 0
      %2697 = vmatprep.subr.bf16.mxu0 0
      %2698 = vmatpush1.bf16.xpose.msra.mxu0 0
      %2699 = vmatprep.subr.bf16.mxu0 0
      %2700 = vmatpush1.bf16.xpose.msra.mxu0 0
      %2701 = vmatprep.subr.bf16.mxu0 0
      %2702 = vmatpush1.bf16.xpose.msra.mxu0 0
      %2703 = vmatprep.subr.bf16.mxu0 0
      %2704 = vmatpush1.bf16.xpose.msra.mxu0 0
      %2705 = vmatprep.subr.bf16.mxu0 0
      %2706 = vmatpush1.bf16.xpose.msra.mxu0 0
      %2707 = vmatprep.subr.bf16.mxu0 0
      %2708 = vmatpush1.bf16.xpose.msra.mxu0 %v2691
      %2709 = vmatprep.subr.bf16.mxu0 0
      %2710 = vmatpush2.bf16.xpose.msra.mxu0 0
      %2711 = vmatprep.subr.bf16.mxu0 0
      %2712 = vmatpush2.bf16.xpose.msra.mxu0 0
      %2713 = vmatprep.subr.bf16.mxu0 0
      %2714 = vmatpush2.bf16.xpose.msra.mxu0 0
      %2715 = vmatprep.subr.bf16.mxu0 0
      %2716 = vmatpush2.bf16.xpose.msra.mxu0 0
      %2717 = vmatprep.subr.bf16.mxu0 0
      %2718 = vmatpush2.bf16.xpose.msra.mxu0 0
      %2719 = vmatprep.subr.bf16.mxu0 0
      %2720 = vmatpush2.bf16.xpose.msra.mxu0 0
      %2721 = vmatprep.subr.bf16.mxu0 0
      %2722 = vmatpush2.bf16.xpose.msra.mxu0 0
      %2723 = vmatprep.subr.bf16.mxu0 0
      %2724 = vmatpush2.bf16.xpose.msra.mxu0 0
      %2725 = vmatprep.mubr.bf16.mxu0 0
      %2726 = vmatmul.mubr.bf16.gmra.mxu0 %v2688
      %v2727 = vpop.f32.mrf.mxu0
      %v2728 = vadd.f32 0.0, %v2727
      %v2729 = vpop.f32.mrf.mxu0
      %v2730 = vpop.f32.mrf.mxu0
      %v2731 = vpop.f32.mrf.mxu0
      %2732 = vdwg.mxu0
      %v2733 = vmul.f32 %v2728, 0.25
      %v2734 = vadd.f32 %v2733, %v632
      %v2735 = vsel %vm1381, %v2734, -inf
      %2736 = vmax.xlane.f32.xlu0 %v2735
      %v2737 = vpop.xlane.xlu0 %2736
      %v2738 = vsub.f32 %v2734, %v2737
      %v2739 = vmul.f32 %v2738, 1.442695
      %v2740 = vpow.pop %v2739
      %v2741 = vsel %vm1381, %v2740, 0.0
      %2742 = vadd.xlane.f32.xlu0 %v2741
      %v2743 = vpop.xlane.xlu0 %2742
      %v2744 = vrcp.pop %v2743
      %v2745 = vmul.f32 %v2740, %v2744
      %v2746 = vpack.c.bf16 %v2745, %v2745
      %2747 = vrot.lane.b32.xlu0 %v2348, 80
      %v2748 = vpop.permute.xlu0 %2747
      %v2750 = vsel %vm1381, %v2746, 0
      %v2753 = vsel %vm1397, %v2748, 0
      %2755 = vmatprep.subr.bf16.mxu0 0
      %2756 = vmatpush1.bf16.msra.mxu0 0
      %2757 = vmatprep.subr.bf16.mxu0 0
      %2758 = vmatpush1.bf16.msra.mxu0 0
      %2759 = vmatprep.subr.bf16.mxu0 0
      %2760 = vmatpush1.bf16.msra.mxu0 0
      %2761 = vmatprep.subr.bf16.mxu0 0
      %2762 = vmatpush1.bf16.msra.mxu0 0
      %2763 = vmatprep.subr.bf16.mxu0 0
      %2764 = vmatpush1.bf16.msra.mxu0 0
      %2765 = vmatprep.subr.bf16.mxu0 0
      %2766 = vmatpush1.bf16.msra.mxu0 0
      %2767 = vmatprep.subr.bf16.mxu0 0
      %2768 = vmatpush1.bf16.msra.mxu0 0
      %2769 = vmatprep.subr.bf16.mxu0 0
      %2770 = vmatpush1.bf16.msra.mxu0 %v2753
      %2771 = vmatprep.subr.bf16.mxu0 0
      %2772 = vmatpush2.bf16.msra.mxu0 0
      %2773 = vmatprep.subr.bf16.mxu0 0
      %2774 = vmatpush2.bf16.msra.mxu0 0
      %2775 = vmatprep.subr.bf16.mxu0 0
      %2776 = vmatpush2.bf16.msra.mxu0 0
      %2777 = vmatprep.subr.bf16.mxu0 0
      %2778 = vmatpush2.bf16.msra.mxu0 0
      %2779 = vmatprep.subr.bf16.mxu0 0
      %2780 = vmatpush2.bf16.msra.mxu0 0
      %2781 = vmatprep.subr.bf16.mxu0 0
      %2782 = vmatpush2.bf16.msra.mxu0 0
      %2783 = vmatprep.subr.bf16.mxu0 0
      %2784 = vmatpush2.bf16.msra.mxu0 0
      %2785 = vmatprep.subr.bf16.mxu0 0
      %2786 = vmatpush2.bf16.msra.mxu0 0
      %2787 = vmatprep.mubr.bf16.mxu0 0
      %2788 = vmatmul.mubr.bf16.gmra.mxu0 %v2750
      %v2789 = vpop.f32.mrf.mxu0
      %v2790 = vadd.f32 0.0, %v2789
      %v2791 = vpop.f32.mrf.mxu0
      %v2792 = vpop.f32.mrf.mxu0
      %v2793 = vpop.f32.mrf.mxu0
      %2794 = vdwg.mxu0
      %2796 = vrot.lane.b32.xlu0 %v2566, 16
      %v2797 = vpop.permute.xlu0 %2796
      %2800 = vrot.lane.b32.xlu0 %v2678, 32
      %v2801 = vpop.permute.xlu0 %2800
      %2804 = vrot.lane.b32.xlu0 %v2790, 48
      %v2805 = vpop.permute.xlu0 %2804
      %v2807 = vsel %vm1332, %v2453, %v2797
      %v2808 = vsel %vm1791, %v2807, %v2801
      %v2809 = vsel %vm1793, %v2808, %v2805
      %s2810 = scalar_lea.vmem %s9, 32
      %v2811 = vld [vmem:[%s2810] sm:$0xf]
      %v2812 = vld [vmem:[%s2810 + $0x4] sm:$0xf]
      %v2813 = vld [vmem:[%s2810 + $0x8] sm:$0xf]
      %v2814 = vld [vmem:[%s2810 + $0xc] sm:$0xf]
      %v2815 = vld [vmem:[%s2810 + $0x10] sm:$0xf]
      %v2816 = vld [vmem:[%s2810 + $0x14] sm:$0xf]
      %v2817 = vld [vmem:[%s2810 + $0x18] sm:$0xf]
      %v2818 = vld [vmem:[%s2810 + $0x1c] sm:$0xf]
      %v2819 = vpack.c.bf16 %v2809, %v2809
      %v2828 = vunpack.c.l.b16 %v2811
      %v2829 = vunpack.c.l.b16 %v2812
      %v2830 = vunpack.c.l.b16 %v2813
      %v2831 = vunpack.c.l.b16 %v2814
      %v2832 = vunpack.c.l.b16 %v2815
      %v2833 = vunpack.c.l.b16 %v2816
      %v2834 = vunpack.c.l.b16 %v2817
      %v2835 = vunpack.c.l.b16 %v2818
      %v2836 = vpack.c.b16 %v2829, %v2828
      %v2837 = vpack.c.b16 %v2831, %v2830
      %v2838 = vpack.c.b16 %v2833, %v2832
      %v2839 = vpack.c.b16 %v2835, %v2834
      %v2845 = vsel %vm1164, %v2819, 0
      %2847 = vmatprep.subr.bf16.mxu0 0
      %2848 = vmatpush1.bf16.msra.mxu0 0
      %2849 = vmatprep.subr.bf16.mxu0 0
      %2850 = vmatpush1.bf16.msra.mxu0 0
      %2851 = vmatprep.subr.bf16.mxu0 0
      %2852 = vmatpush1.bf16.msra.mxu0 0
      %2853 = vmatprep.subr.bf16.mxu0 0
      %2854 = vmatpush1.bf16.msra.mxu0 0
      %2855 = vmatprep.subr.bf16.mxu0 0
      %2856 = vmatpush1.bf16.msra.mxu0 %v2839
      %2857 = vmatprep.subr.bf16.mxu0 0
      %2858 = vmatpush1.bf16.msra.mxu0 %v2838
      %2859 = vmatprep.subr.bf16.mxu0 0
      %2860 = vmatpush1.bf16.msra.mxu0 %v2837
      %2861 = vmatprep.subr.bf16.mxu0 0
      %2862 = vmatpush1.bf16.msra.mxu0 %v2836
      %2863 = vmatprep.subr.bf16.mxu0 0
      %2864 = vmatpush2.bf16.msra.mxu0 0
      %2865 = vmatprep.subr.bf16.mxu0 0
      %2866 = vmatpush2.bf16.msra.mxu0 0
      %2867 = vmatprep.subr.bf16.mxu0 0
      %2868 = vmatpush2.bf16.msra.mxu0 0
      %2869 = vmatprep.subr.bf16.mxu0 0
      %2870 = vmatpush2.bf16.msra.mxu0 0
      %2871 = vmatprep.subr.bf16.mxu0 0
      %2872 = vmatpush2.bf16.msra.mxu0 0
      %2873 = vmatprep.subr.bf16.mxu0 0
      %2874 = vmatpush2.bf16.msra.mxu0 0
      %2875 = vmatprep.subr.bf16.mxu0 0
      %2876 = vmatpush2.bf16.msra.mxu0 0
      %2877 = vmatprep.subr.bf16.mxu0 0
      %2878 = vmatpush2.bf16.msra.mxu0 0
      %2879 = vmatprep.mubr.bf16.mxu0 0
      %2880 = vmatmul.mubr.bf16.gmra.mxu0 %v2845
      %v2881 = vpop.f32.mrf.mxu0
      %v2882 = vadd.f32 0.0, %v2881
      %v2883 = vpop.f32.mrf.mxu0
      %v2884 = vpop.f32.mrf.mxu0
      %v2885 = vpop.f32.mrf.mxu0
      %2886 = vdwg.mxu0
      %v2887 = vadd.f32 %v2208, %v2882
      %s2888 = scalar_lea.vmem %s10, 1
      %v2889 = vld [vmem:[%s2888] sm:$0x1]
      %v2891 = vlaneseq
      %v2892 = vshrl.u32 %v2891, 7
      %v2893 = vsub.s32 0, %v2892
      %v2894 = vrot.slane %v2889, %v2893
      %v2896 = vadd.f32 %v2887, %v2894
      %s2897 = scalar_lea.vmem %s11, 1
      %v2898 = vld [vmem:[%s2897] sm:$0x1]
      %s2899 = scalar_lea.vmem %s12, 1
      %v2900 = vld [vmem:[%s2899] sm:$0x1]
      %v2901 = vsel %vm1164, %v2896, 0.0
      %2902 = vadd.xlane.f32.xlu0 %v2901
      %v2903 = vpop.xlane.xlu0 %2902
      %v2904 = vmul.f32 %v2903, %v1168
      %v2905 = vsub.f32 %v2896, %v2904
      %v2906 = vmul.f32 %v2905, %v2905
      %v2907 = vsel %vm1164, %v2906, 0.0
      %2908 = vadd.xlane.f32.xlu0 %v2907
      %v2909 = vpop.xlane.xlu0 %2908
      %v2910 = vmul.f32 %v2909, %v1168
      %v2911 = vadd.f32 %v2910, 1e-05
      %v2912 = vrsqrt.pop %v2911
      %v2913 = vmul.f32 %v2905, %v2912
      %v2915 = vlaneseq
      %v2916 = vshrl.u32 %v2915, 7
      %v2917 = vsub.s32 0, %v2916
      %v2918 = vrot.slane %v2898, %v2917
      %v2920 = vmul.f32 %v2913, %v2918
      %v2922 = vlaneseq
      %v2923 = vshrl.u32 %v2922, 7
      %v2924 = vsub.s32 0, %v2923
      %v2925 = vrot.slane %v2900, %v2924
      %v2927 = vadd.f32 %v2920, %v2925
      %s2928 = scalar_lea.vmem %s13, 64
      %v2929 = vld [vmem:[%s2928] sm:$0xff]
      %v2930 = vld [vmem:[%s2928 + $0x8] sm:$0xff]
      %v2931 = vld [vmem:[%s2928 + $0x10] sm:$0xff]
      %v2932 = vld [vmem:[%s2928 + $0x18] sm:$0xff]
      %v2933 = vld [vmem:[%s2928 + $0x20] sm:$0xff]
      %v2934 = vld [vmem:[%s2928 + $0x28] sm:$0xff]
      %v2935 = vld [vmem:[%s2928 + $0x30] sm:$0xff]
      %v2936 = vld [vmem:[%s2928 + $0x38] sm:$0xff]
      %v2937 = vpack.c.bf16 %v2927, %v2927
      %s2938 = scalar_lea.vmem %s14, 2
      %v2939 = vld [vmem:[%s2938] sm:$0x3]
      %v2941 = vlaneseq
      %v2942 = vshrl.u32 %v2941, 7
      %v2943 = vsub.s32 0, %v2942
      %v2944 = vrot.slane %v2939, %v2943
      %v2945 = vlaneseq
      %v2946 = vshrl.u32 %v2945, 7
      %v2947 = vsub.s32 1, %v2946
      %v2948 = vrot.slane %v2939, %v2947
      %v2959 = vunpack.c.l.b16 %v2929
      %v2960 = vunpack.c.h.b16 %v2929
      %v2961 = vunpack.c.l.b16 %v2930
      %v2962 = vunpack.c.h.b16 %v2930
      %v2963 = vunpack.c.l.b16 %v2931
      %v2964 = vunpack.c.h.b16 %v2931
      %v2965 = vunpack.c.l.b16 %v2932
      %v2966 = vunpack.c.h.b16 %v2932
      %v2967 = vunpack.c.l.b16 %v2933
      %v2968 = vunpack.c.h.b16 %v2933
      %v2969 = vunpack.c.l.b16 %v2934
      %v2970 = vunpack.c.h.b16 %v2934
      %v2971 = vunpack.c.l.b16 %v2935
      %v2972 = vunpack.c.h.b16 %v2935
      %v2973 = vunpack.c.l.b16 %v2936
      %v2974 = vunpack.c.h.b16 %v2936
      %v2975 = vpack.c.b16 %v2961, %v2959
      %v2976 = vpack.c.b16 %v2962, %v2960
      %v2977 = vpack.c.b16 %v2965, %v2963
      %v2978 = vpack.c.b16 %v2966, %v2964
      %v2979 = vpack.c.b16 %v2969, %v2967
      %v2980 = vpack.c.b16 %v2970, %v2968
      %v2981 = vpack.c.b16 %v2973, %v2971
      %v2982 = vpack.c.b16 %v2974, %v2972
      %v2992 = vsel %vm1164, %v2937, 0
      %2994 = vmatprep.subr.bf16.mxu0 0
      %2995 = vmatpush1.bf16.msra.mxu0 0
      %2996 = vmatprep.subr.bf16.mxu0 0
      %2997 = vmatpush1.bf16.msra.mxu0 0
      %2998 = vmatprep.subr.bf16.mxu0 0
      %2999 = vmatpush1.bf16.msra.mxu0 0
      %3000 = vmatprep.subr.bf16.mxu0 0
      %3001 = vmatpush1.bf16.msra.mxu0 0
      %3002 = vmatprep.subr.bf16.mxu0 %v2982
      %3003 = vmatpush1.bf16.msra.mxu0 %v2981
      %3004 = vmatprep.subr.bf16.mxu0 %v2980
      %3005 = vmatpush1.bf16.msra.mxu0 %v2979
      %3006 = vmatprep.subr.bf16.mxu0 %v2978
      %3007 = vmatpush1.bf16.msra.mxu0 %v2977
      %3008 = vmatprep.subr.bf16.mxu0 %v2976
      %3009 = vmatpush1.bf16.msra.mxu0 %v2975
      %3010 = vmatprep.subr.bf16.mxu0 0
      %3011 = vmatpush2.bf16.msra.mxu0 0
      %3012 = vmatprep.subr.bf16.mxu0 0
      %3013 = vmatpush2.bf16.msra.mxu0 0
      %3014 = vmatprep.subr.bf16.mxu0 0
      %3015 = vmatpush2.bf16.msra.mxu0 0
      %3016 = vmatprep.subr.bf16.mxu0 0
      %3017 = vmatpush2.bf16.msra.mxu0 0
      %3018 = vmatprep.subr.bf16.mxu0 0
      %3019 = vmatpush2.bf16.msra.mxu0 0
      %3020 = vmatprep.subr.bf16.mxu0 0
      %3021 = vmatpush2.bf16.msra.mxu0 0
      %3022 = vmatprep.subr.bf16.mxu0 0
      %3023 = vmatpush2.bf16.msra.mxu0 0
      %3024 = vmatprep.subr.bf16.mxu0 0
      %3025 = vmatpush2.bf16.msra.mxu0 0
      %3026 = vmatprep.mubr.bf16.mxu0 0
      %3027 = vmatmul.mubr.bf16.gmra.mxu0 %v2992
      %v3028 = vpop.f32.mrf.mxu0
      %v3029 = vadd.f32 %v2944, %v3028
      %v3030 = vpop.f32.mrf.mxu0
      %v3031 = vadd.f32 %v2948, %v3030
      %v3032 = vpop.f32.mrf.mxu0
      %v3033 = vpop.f32.mrf.mxu0
      %3034 = vdwg.mxu0
      %v3035 = vmul.f32 %v3029, 1.702
      %v3036 = vmul.f32 %v3031, 1.702
      %v3037 = vxor.u32 %v3035, 2147483648
      %v3038 = vxor.u32 %v3036, 2147483648
      %v3039 = vmul.f32 %v3037, 1.442695
      %v3040 = vpow.pop %v3039
      %v3041 = vmul.f32 %v3038, 1.442695
      %v3042 = vpow.pop %v3041
      %v3043 = vadd.f32 %v3040, 1.0
      %v3044 = vadd.f32 %v3042, 1.0
      %v3045 = vrcp.pop %v3043
      %v3046 = vmul.f32 1.0, %v3045
      %v3047 = vrcp.pop %v3044
      %v3048 = vmul.f32 1.0, %v3047
      %v3049 = vmul.f32 %v3029, %v3046
      %v3050 = vmul.f32 %v3031, %v3048
      %s3051 = scalar_lea.vmem %s15, 128
      %v3052 = vld [vmem:[%s3051] sm:$0xf]
      %v3053 = vld [vmem:[%s3051 + $0x4] sm:$0xf]
      %v3054 = vld [vmem:[%s3051 + $0x8] sm:$0xf]
      %v3055 = vld [vmem:[%s3051 + $0xc] sm:$0xf]
      %v3056 = vld [vmem:[%s3051 + $0x10] sm:$0xf]
      %v3057 = vld [vmem:[%s3051 + $0x14] sm:$0xf]
      %v3058 = vld [vmem:[%s3051 + $0x18] sm:$0xf]
      %v3059 = vld [vmem:[%s3051 + $0x1c] sm:$0xf]
      %v3060 = vld [vmem:[%s3051 + $0x20] sm:$0xf]
      %v3061 = vld [vmem:[%s3051 + $0x24] sm:$0xf]
      %v3062 = vld [vmem:[%s3051 + $0x28] sm:$0xf]
      %v3063 = vld [vmem:[%s3051 + $0x2c] sm:$0xf]
      %v3064 = vld [vmem:[%s3051 + $0x30] sm:$0xf]
      %v3065 = vld [vmem:[%s3051 + $0x34] sm:$0xf]
      %v3066 = vld [vmem:[%s3051 + $0x38] sm:$0xf]
      %v3067 = vld [vmem:[%s3051 + $0x3c] sm:$0xf]
      %v3068 = vld [vmem:[%s3051 + $0x40] sm:$0xf]
      %v3069 = vld [vmem:[%s3051 + $0x44] sm:$0xf]
      %v3070 = vld [vmem:[%s3051 + $0x48] sm:$0xf]
      %v3071 = vld [vmem:[%s3051 + $0x4c] sm:$0xf]
      %v3072 = vld [vmem:[%s3051 + $0x50] sm:$0xf]
      %v3073 = vld [vmem:[%s3051 + $0x54] sm:$0xf]
      %v3074 = vld [vmem:[%s3051 + $0x58] sm:$0xf]
      %v3075 = vld [vmem:[%s3051 + $0x5c] sm:$0xf]
      %v3076 = vld [vmem:[%s3051 + $0x60] sm:$0xf]
      %v3077 = vld [vmem:[%s3051 + $0x64] sm:$0xf]
      %v3078 = vld [vmem:[%s3051 + $0x68] sm:$0xf]
      %v3079 = vld [vmem:[%s3051 + $0x6c] sm:$0xf]
      %v3080 = vld [vmem:[%s3051 + $0x70] sm:$0xf]
      %v3081 = vld [vmem:[%s3051 + $0x74] sm:$0xf]
      %v3082 = vld [vmem:[%s3051 + $0x78] sm:$0xf]
      %v3083 = vld [vmem:[%s3051 + $0x7c] sm:$0xf]
      %v3084 = vpack.c.bf16 %v3049, %v3049
      %v3085 = vpack.c.bf16 %v3050, %v3050
      %v3118 = vunpack.c.l.b16 %v3052
      %v3119 = vunpack.c.l.b16 %v3053
      %v3120 = vunpack.c.l.b16 %v3054
      %v3121 = vunpack.c.l.b16 %v3055
      %v3122 = vunpack.c.l.b16 %v3056
      %v3123 = vunpack.c.l.b16 %v3057
      %v3124 = vunpack.c.l.b16 %v3058
      %v3125 = vunpack.c.l.b16 %v3059
      %v3126 = vunpack.c.l.b16 %v3060
      %v3127 = vunpack.c.l.b16 %v3061
      %v3128 = vunpack.c.l.b16 %v3062
      %v3129 = vunpack.c.l.b16 %v3063
      %v3130 = vunpack.c.l.b16 %v3064
      %v3131 = vunpack.c.l.b16 %v3065
      %v3132 = vunpack.c.l.b16 %v3066
      %v3133 = vunpack.c.l.b16 %v3067
      %v3134 = vunpack.c.l.b16 %v3068
      %v3135 = vunpack.c.l.b16 %v3069
      %v3136 = vunpack.c.l.b16 %v3070
      %v3137 = vunpack.c.l.b16 %v3071
      %v3138 = vunpack.c.l.b16 %v3072
      %v3139 = vunpack.c.l.b16 %v3073
      %v3140 = vunpack.c.l.b16 %v3074
      %v3141 = vunpack.c.l.b16 %v3075
      %v3142 = vunpack.c.l.b16 %v3076
      %v3143 = vunpack.c.l.b16 %v3077
      %v3144 = vunpack.c.l.b16 %v3078
      %v3145 = vunpack.c.l.b16 %v3079
      %v3146 = vunpack.c.l.b16 %v3080
      %v3147 = vunpack.c.l.b16 %v3081
      %v3148 = vunpack.c.l.b16 %v3082
      %v3149 = vunpack.c.l.b16 %v3083
      %v3150 = vpack.c.b16 %v3119, %v3118
      %v3151 = vpack.c.b16 %v3121, %v3120
      %v3152 = vpack.c.b16 %v3123, %v3122
      %v3153 = vpack.c.b16 %v3125, %v3124
      %v3154 = vpack.c.b16 %v3127, %v3126
      %v3155 = vpack.c.b16 %v3129, %v3128
      %v3156 = vpack.c.b16 %v3131, %v3130
      %v3157 = vpack.c.b16 %v3133, %v3132
      %v3158 = vpack.c.b16 %v3135, %v3134
      %v3159 = vpack.c.b16 %v3137, %v3136
      %v3160 = vpack.c.b16 %v3139, %v3138
      %v3161 = vpack.c.b16 %v3141, %v3140
      %v3162 = vpack.c.b16 %v3143, %v3142
      %v3163 = vpack.c.b16 %v3145, %v3144
      %v3164 = vpack.c.b16 %v3147, %v3146
      %v3165 = vpack.c.b16 %v3149, %v3148
      %3182 = vmatprep.subr.bf16.mxu0 0
      %3183 = vmatpush1.bf16.msra.mxu0 %v3157
      %3184 = vmatprep.subr.bf16.mxu0 0
      %3185 = vmatpush1.bf16.msra.mxu0 %v3156
      %3186 = vmatprep.subr.bf16.mxu0 0
      %3187 = vmatpush1.bf16.msra.mxu0 %v3155
      %3188 = vmatprep.subr.bf16.mxu0 0
      %3189 = vmatpush1.bf16.msra.mxu0 %v3154
      %3190 = vmatprep.subr.bf16.mxu0 0
      %3191 = vmatpush1.bf16.msra.mxu0 %v3153
      %3192 = vmatprep.subr.bf16.mxu0 0
      %3193 = vmatpush1.bf16.msra.mxu0 %v3152
      %3194 = vmatprep.subr.bf16.mxu0 0
      %3195 = vmatpush1.bf16.msra.mxu0 %v3151
      %3196 = vmatprep.subr.bf16.mxu0 0
      %3197 = vmatpush1.bf16.msra.mxu0 %v3150
      %3198 = vmatprep.subr.bf16.mxu0 0
      %3199 = vmatpush2.bf16.msra.mxu0 %v3165
      %3200 = vmatprep.subr.bf16.mxu0 0
      %3201 = vmatpush2.bf16.msra.mxu0 %v3164
      %3202 = vmatprep.subr.bf16.mxu0 0
      %3203 = vmatpush2.bf16.msra.mxu0 %v3163
      %3204 = vmatprep.subr.bf16.mxu0 0
      %3205 = vmatpush2.bf16.msra.mxu0 %v3162
      %3206 = vmatprep.subr.bf16.mxu0 0
      %3207 = vmatpush2.bf16.msra.mxu0 %v3161
      %3208 = vmatprep.subr.bf16.mxu0 0
      %3209 = vmatpush2.bf16.msra.mxu0 %v3160
      %3210 = vmatprep.subr.bf16.mxu0 0
      %3211 = vmatpush2.bf16.msra.mxu0 %v3159
      %3212 = vmatprep.subr.bf16.mxu0 0
      %3213 = vmatpush2.bf16.msra.mxu0 %v3158
      %3214 = vmatprep.mubr.bf16.mxu0 %v3085
      %3215 = vmatmul.mubr.bf16.gmra.mxu0 %v3084
      %v3216 = vpop.f32.mrf.mxu0
      %v3217 = vadd.f32 0.0, %v3216
      %v3218 = vpop.f32.mrf.mxu0
      %v3219 = vpop.f32.mrf.mxu0
      %v3220 = vpop.f32.mrf.mxu0
      %3221 = vdwg.mxu0
      %v3222 = vadd.f32 %v2896, %v3217
      %s3223 = scalar_lea.vmem %s16, 1
      %v3224 = vld [vmem:[%s3223] sm:$0x1]
      %v3226 = vlaneseq
      %v3227 = vshrl.u32 %v3226, 7
      %v3228 = vsub.s32 0, %v3227
      %v3229 = vrot.slane %v3224, %v3228
      %v3231 = vadd.f32 %v3222, %v3229
      %v3232 = vld [vmem:[%s17] sm:$0x1]
      %v3233 = vld [vmem:[%s18] sm:$0x1]
      %vm3234 = vcmask 516096
      %v3235 = vsel %vm3234, %v3231, 0.0
      %3236 = vadd.xlane.f32.xlu0 %v3235
      %v3237 = vpop.xlane.xlu0 %3236
      %v3238 = vmul.f32 %v3237, %v1168
      %v3239 = vsub.f32 %v3231, %v3238
      %v3240 = vmul.f32 %v3239, %v3239
      %v3241 = vsel %vm3234, %v3240, 0.0
      %3242 = vadd.xlane.f32.xlu0 %v3241
      %v3243 = vpop.xlane.xlu0 %3242
      %v3244 = vmul.f32 %v3243, %v1168
      %v3245 = vadd.f32 %v3244, 1e-05
      %v3246 = vrsqrt.pop %v3245
      %v3247 = vmul.f32 %v3239, %v3246
      %v3248 = vmul.f32 %v3247, %v3232
      %v3249 = vadd.f32 %v3248, %v3233
      %v3250 = vld [vmem:[%s19] sm:$0xf]
      %v3251 = vld [vmem:[%s19 + $0x4] sm:$0xf]
      %v3252 = vld [vmem:[%s19 + $0x8] sm:$0xf]
      %v3253 = vld [vmem:[%s19 + $0xc] sm:$0xf]
      %v3254 = vld [vmem:[%s19 + $0x10] sm:$0xf]
      %v3255 = vld [vmem:[%s19 + $0x14] sm:$0xf]
      %v3256 = vld [vmem:[%s19 + $0x18] sm:$0xf]
      %v3257 = vld [vmem:[%s19 + $0x1c] sm:$0xf]
      %v3258 = vpack.c.bf16 %v3249, %v3249
      %v3267 = vunpack.c.l.b16 %v3250
      %v3268 = vunpack.c.l.b16 %v3251
      %v3269 = vunpack.c.l.b16 %v3252
      %v3270 = vunpack.c.l.b16 %v3253
      %v3271 = vunpack.c.l.b16 %v3254
      %v3272 = vunpack.c.l.b16 %v3255
      %v3273 = vunpack.c.l.b16 %v3256
      %v3274 = vunpack.c.l.b16 %v3257
      %v3275 = vpack.c.b16 %v3268, %v3267
      %v3276 = vpack.c.b16 %v3270, %v3269
      %v3277 = vpack.c.b16 %v3272, %v3271
      %v3278 = vpack.c.b16 %v3274, %v3273
      %v3284 = vsel %vm1164, %v3258, 0
      %3286 = vmatprep.subr.bf16.mxu0 0
      %3287 = vmatpush1.bf16.msra.mxu0 0
      %3288 = vmatprep.subr.bf16.mxu0 0
      %3289 = vmatpush1.bf16.msra.mxu0 0
      %3290 = vmatprep.subr.bf16.mxu0 0
      %3291 = vmatpush1.bf16.msra.mxu0 0
      %3292 = vmatprep.subr.bf16.mxu0 0
      %3293 = vmatpush1.bf16.msra.mxu0 0
      %3294 = vmatprep.subr.bf16.mxu0 0
      %3295 = vmatpush1.bf16.msra.mxu0 %v3278
      %3296 = vmatprep.subr.bf16.mxu0 0
      %3297 = vmatpush1.bf16.msra.mxu0 %v3277
      %3298 = vmatprep.subr.bf16.mxu0 0
      %3299 = vmatpush1.bf16.msra.mxu0 %v3276
      %3300 = vmatprep.subr.bf16.mxu0 0
      %3301 = vmatpush1.bf16.msra.mxu0 %v3275
      %3302 = vmatprep.subr.bf16.mxu0 0
      %3303 = vmatpush2.bf16.msra.mxu0 0
      %3304 = vmatprep.subr.bf16.mxu0 0
      %3305 = vmatpush2.bf16.msra.mxu0 0
      %3306 = vmatprep.subr.bf16.mxu0 0
      %3307 = vmatpush2.bf16.msra.mxu0 0
      %3308 = vmatprep.subr.bf16.mxu0 0
      %3309 = vmatpush2.bf16.msra.mxu0 0
      %3310 = vmatprep.subr.bf16.mxu0 0
      %3311 = vmatpush2.bf16.msra.mxu0 0
      %3312 = vmatprep.subr.bf16.mxu0 0
      %3313 = vmatpush2.bf16.msra.mxu0 0
      %3314 = vmatprep.subr.bf16.mxu0 0
      %3315 = vmatpush2.bf16.msra.mxu0 0
      %3316 = vmatprep.subr.bf16.mxu0 0
      %3317 = vmatpush2.bf16.msra.mxu0 0
      %3318 = vmatprep.mubr.bf16.mxu0 0
      %3319 = vmatmul.mubr.bf16.gmra.mxu0 %v3284
      %v3320 = vpop.f32.mrf.mxu0
      %v3321 = vadd.f32 0.0, %v3320
      %v3322 = vpop.f32.mrf.mxu0
      %v3323 = vpop.f32.mrf.mxu0
      %v3324 = vpop.f32.mrf.mxu0
      %3325 = vdwg.mxu0
      %v3326 = vmul.f32 %v3321, %v3321
      %vm3327 = vcmask 1040384
      %v3328 = vsel %vm3327, %v3326, 0.0
      %3329 = vadd.xlane.f32.xlu0 %v3328
      %v3330 = vpop.xlane.xlu0 %3329
      %v3331 = vrsqrt.pop %v3330
      %v3332 = vmul.f32 %v3330, %v3331
      %vm3333 = vcmp.eq.f32.partialorder %v3330, inf
      %v3334 = vsel %vm3333, %v3330, %v3332
      %vm3335 = vcmp.eq.f32.partialorder %v3330, 0.0
      %v3336 = vand.u32 %v3330, 2147483648
      %v3337 = vsel %vm3335, %v3336, %v3334
      %v3338 = vmax.f32 %v3337, 1e-12
      %v3339 = vrcp.pop %v3338
      %v3340 = vmul.f32 %v3321, %v3339
      %v3341 = vlaneseq
      %v3342 = vshrl.u32 %v3341, 7
      %v3343 = vsub.s32 0, %v3342
      %v3344 = vrot.slane %v3340, %v3343
      %3345 = vst [vmem:[%s627] sm:$0xff] %v3344
      %p3346 = scmp.lt.s32.totalorder %s31, 2
      %s3347 = scalar_select %p3346, %s31, 2
      %s3348 = smul.addr %s3347, 8
      %s3349 = scalar_lea.vmem %s20, %s3348
      // Predicated region
      $region101: #{define_ref_image_style_prototype.1} parent=99 // pred_check
        %p3350 = pneg %p474
      $region102: #{define_ref_image_style_prototype.1} parent=99 // pred_check_branch
        %3352 = sbr.rel (%p3350) target = $region104
      $region103: #{define_ref_image_style_prototype.1} parent=99 // pred_region
        _
      $region104: #{define_ref_image_style_prototype.1} parent=99 // pred_fallthru
        _
    $region100: #{define_ref_image_style_prototype.1} parent=5 // pred_fallthru
      _
    %p3353 = scmp.le.s32.totalorder 2, %s26
    // Predicated region
    $region105: #{define_ref_image_style_prototype.1} parent=5 // pred_check
      %p3354 = pneg %p3353
    $region106: #{define_ref_image_style_prototype.1} parent=5 // pred_check_branch
      %3356 = sbr.rel (%p3354) target = $region108
    $region107: #{define_ref_image_style_prototype.1} parent=5 // pred_region
      %s3357 = ssub.s32 %s26, 2
      // Predicated region
      $region109: #{define_ref_image_style_prototype.1} parent=107 // pred_check
        %p3358 = pneg %p480
      $region110: #{define_ref_image_style_prototype.1} parent=107 // pred_check_branch
        %3360 = sbr.rel (%p3358) target = $region112
      $region111: #{define_ref_image_style_prototype.1} parent=107 // pred_region
        %p3361 = scmp.lt.s32.totalorder %s32, 2
        %s3362 = scalar_select %p3361, %s32, 2
        %s3363 = smul.addr %s3362, 8
        %s3364 = scalar_lea.vmem %s20, %s3363
      $region112: #{define_ref_image_style_prototype.1} parent=107 // pred_fallthru
        _
    $region108: #{define_ref_image_style_prototype.1} parent=5 // pred_fallthru
      _
  $region6: #{define_ref_image_style_prototype.1} parent=0 // loop_footer
    %s30 = sadd.s32 1, %s26
  $region7: #{define_ref_image_style_prototype.1} parent=0 // loop_footer_branch
    %25 = sbr.rel target = $region3
  $region8: #{define_ref_image_style_prototype.1} parent=0 // loop_exit
    _

</llo_original>
